<compile_context>
chip_gen: v5e
topology: v5e:2x2
jax: 0.10.0
libtpu: 0.0.40
codegen_flags: <defaults>
</compile_context>

<pallas_src>
import math
import functools

import jax
import jax.numpy as jnp
from jax import lax
from jax.experimental import pallas as pl
from jax.experimental.pallas import tpu as pltpu


# ----------------------------------------------------------------------------
# Kernel
# ----------------------------------------------------------------------------

def _layer_norm(x, gamma, beta, eps):
    """PyTorch nn.LayerNorm over the last dim (biased variance, eps inside sqrt)."""
    mu = jnp.mean(x, axis=-1, keepdims=True)
    xc = x - mu
    var = jnp.mean(xc * xc, axis=-1, keepdims=True)
    return xc * lax.rsqrt(var + eps) * gamma + beta


def tfblock_kernel(z_ref, rz_ref,
                   wv_ref, bv_ref, wo_ref, bo_ref,
                   g0_ref, be0_ref,
                   w1_ref, b1_ref, w2_ref, b2_ref,
                   g1_ref, be1_ref,
                   out_ref, *, num_layers, eps):
    # TODO(synk): nn.Dropout (p=0.1 / 0.3) omitted everywhere -> eval semantics.
    z = z_ref[...]
    rz = rz_ref[...]

    for l in range(num_layers):  # static unroll; weights resident in VMEM
        # --- MultiHeadAttention, seq_len == 1 ---
        # softmax over a singleton key axis == 1 exactly, so the head outputs
        # equal the V projection and Q/K matmuls are dead:
        #   attn_out = (res_z @ Wv + bv) @ Wo + bo
        vproj = jnp.dot(rz, wv_ref[l], preferred_element_type=jnp.float32) + bv_ref[l]
        attn = jnp.dot(vproj, wo_ref[l], preferred_element_type=jnp.float32) + bo_ref[l]

        # --- residual + LayerNorm 0 ---
        x = _layer_norm(attn + z, g0_ref[l], be0_ref[l], eps)

        # --- feed-forward: Linear -> ReLU -> Linear ---
        h = jnp.dot(x, w1_ref[l], preferred_element_type=jnp.float32) + b1_ref[l]
        h = jnp.maximum(h, 0.0)
        f = jnp.dot(h, w2_ref[l], preferred_element_type=jnp.float32) + b2_ref[l]

        # --- residual + LayerNorm 1 ---
        z = _layer_norm(x + f, g1_ref[l], be1_ref[l], eps)

    out_ref[...] = z


def tfblock_forward(z, res_z, stacked_params, *, num_layers, block_rows=64, eps=1e-5):
    """stacked_params: tuple of 12 arrays, each with a leading (num_layers,) axis:
       (Wv, bv, Wo, bo, gamma0, beta0, W1, b1, W2, b2, gamma1, beta1)."""
    N, d_model = z.shape
    bn = min(block_rows, N)
    assert N % bn == 0 and bn % 8 == 0, "row tile must divide N and be a multiple of 8"

    row_spec = pl.BlockSpec((bn, d_model), lambda i: (i, 0))

    def const_spec(a):
        # full-array block, constant index -> fetched once, resident across the grid
        return pl.BlockSpec(a.shape, lambda i, nd=a.ndim: (0,) * nd)

    in_specs = [row_spec, row_spec] + [const_spec(a) for a in stacked_params]

    kernel = functools.partial(tfblock_kernel, num_layers=num_layers, eps=eps)

    return pl.pallas_call(
        kernel,
        out_shape=jax.ShapeDtypeStruct((N, d_model), jnp.float32),
        grid_spec=pltpu.PrefetchScalarGridSpec(
            num_scalar_prefetch=0,
            grid=(N // bn,),
            in_specs=in_specs,
            out_specs=row_spec,
        ),
        compiler_params=pltpu.CompilerParams(
            dimension_semantics=("parallel",),
        ),
    )(z, res_z, *stacked_params)


# ----------------------------------------------------------------------------
# Pure-JAX reference mirroring the PyTorch forward exactly (eval/dropout=identity),
# including the full (non-folded) multi-head attention with explicit softmax.
# ----------------------------------------------------------------------------

def ref_mha(q, k, v, p, nheads):
    wq, bq, wk, bk, wv, bv, wo, bo = p
    N, d = q.shape
    dk = d // nheads
    Q = q @ wq + bq
    K = k @ wk + bk
    V = v @ wv + bv
    Qh = Q.reshape(N, 1, nheads, dk).transpose(0, 2, 1, 3)
    Kh = K.reshape(N, 1, nheads, dk).transpose(0, 2, 1, 3)
    Vh = V.reshape(N, 1, nheads, dk).transpose(0, 2, 1, 3)
    scores = jnp.einsum('nhqd,nhkd->nhqk', Qh, Kh) / math.sqrt(dk)
    attn = jax.nn.softmax(scores, axis=-1)
    x = jnp.einsum('nhqk,nhkd->nhqd', attn, Vh)
    x = x.transpose(0, 2, 1, 3).reshape(N, d)
    return x @ wo + bo


def ref_layer_norm(x, g, b, eps=1e-5):
    mu = jnp.mean(x, axis=-1, keepdims=True)
    var = jnp.mean((x - mu) ** 2, axis=-1, keepdims=True)
    return (x - mu) / jnp.sqrt(var + eps) * g + b


def ref_tfblock(z, res_z, layer_params, nheads):
    for lp in layer_params:
        attn = ref_mha(z, res_z, res_z, lp['mha'], nheads)
        x = ref_layer_norm(attn + z, lp['g0'], lp['be0'])
        h = jnp.maximum(x @ lp['w1'] + lp['b1'], 0.0)
        f = h @ lp['w2'] + lp['b2']
        z = ref_layer_norm(x + f, lp['g1'], lp['be1'])
    return z


# ----------------------------------------------------------------------------
# Parameter construction (PyTorch Linear-style init, weights pre-transposed)
# ----------------------------------------------------------------------------

def init_linear(key, d_in, d_out):
    kw, kb = jax.random.split(key)
    bound = 1.0 / math.sqrt(d_in)
    w_t = jax.random.uniform(kw, (d_in, d_out), jnp.float32, -bound, bound)
    b = jax.random.uniform(kb, (1, d_out), jnp.float32, -bound, bound)
    return w_t, b


if __name__ == "__main__":
    d_model = 128      # lane-dense activations (multiple of 128)
    nheads = 4
    num_layers = 3
    hidden_dim = 256
    N = 256            # rows ("batch"; implied seq length is 1)
    block_rows = 64    # grid = (4,) -> double-buffered row pipeline

    key = jax.random.PRNGKey(0)
    layer_params = []
    for _ in range(num_layers):
        key, *ks = jax.random.split(key, 7)
        wq, bq = init_linear(ks[0], d_model, d_model)
        wk, bk = init_linear(ks[1], d_model, d_model)
        wv, bv = init_linear(ks[2], d_model, d_model)
        wo, bo = init_linear(ks[3], d_model, d_model)
        w1, b1 = init_linear(ks[4], d_model, hidden_dim)
        w2, b2 = init_linear(ks[5], hidden_dim, d_model)
        g0 = jnp.ones((1, d_model), jnp.float32)
        be0 = jnp.zeros((1, d_model), jnp.float32)
        g1 = jnp.ones((1, d_model), jnp.float32)
        be1 = jnp.zeros((1, d_model), jnp.float32)
        layer_params.append(dict(mha=(wq, bq, wk, bk, wv, bv, wo, bo),
                                 g0=g0, be0=be0, w1=w1, b1=b1,
                                 w2=w2, b2=b2, g1=g1, be1=be1))

    # Stack per-layer weights (only the ones the folded kernel needs).
    def stack(fn):
        return jnp.stack([fn(lp) for lp in layer_params], axis=0)

    stacked = (
        stack(lambda lp: lp['mha'][4]),   # Wv  (L, d, d)
        stack(lambda lp: lp['mha'][5]),   # bv  (L, 1, d)
        stack(lambda lp: lp['mha'][6]),   # Wo  (L, d, d)
        stack(lambda lp: lp['mha'][7]),   # bo  (L, 1, d)
        stack(lambda lp: lp['g0']),       # gamma0 (L, 1, d)
        stack(lambda lp: lp['be0']),      # beta0  (L, 1, d)
        stack(lambda lp: lp['w1']),       # W1 (L, d, H)
        stack(lambda lp: lp['b1']),       # b1 (L, 1, H)
        stack(lambda lp: lp['w2']),       # W2 (L, H, d)
        stack(lambda lp: lp['b2']),       # b2 (L, 1, d)
        stack(lambda lp: lp['g1']),       # gamma1 (L, 1, d)
        stack(lambda lp: lp['be1']),      # beta1  (L, 1, d)
    )

    key, kz, kr = jax.random.split(key, 3)
    z = jax.random.normal(kz, (N, d_model), jnp.float32)
    res_z = jax.random.normal(kr, (N, d_model), jnp.float32)

    out = tfblock_forward(z, res_z, stacked, num_layers=num_layers,
                          block_rows=block_rows)
    out = jax.block_until_ready(out)

    ref = ref_tfblock(z, res_z, layer_params, nheads)
    assert out.shape == (N, d_model)
    assert jnp.allclose(out, ref, atol=1e-3, rtol=1e-3), \
        "mismatch vs full (non-folded) pure-JAX reference"

    print("KERNEL_OK")
</pallas_src>

<mosaic_0001>
module attributes {stable_mosaic.version = 11 : i64} {
  func.func @tfblock_kernel(%arg0: i32, %arg1: memref<64x128xf32, #tpu.memory_space<vmem>>, %arg2: memref<64x128xf32, #tpu.memory_space<vmem>>, %arg3: memref<3x128x128xf32, #tpu.memory_space<vmem>>, %arg4: memref<3x1x128xf32, #tpu.memory_space<vmem>>, %arg5: memref<3x128x128xf32, #tpu.memory_space<vmem>>, %arg6: memref<3x1x128xf32, #tpu.memory_space<vmem>>, %arg7: memref<3x1x128xf32, #tpu.memory_space<vmem>>, %arg8: memref<3x1x128xf32, #tpu.memory_space<vmem>>, %arg9: memref<3x128x256xf32, #tpu.memory_space<vmem>>, %arg10: memref<3x1x256xf32, #tpu.memory_space<vmem>>, %arg11: memref<3x256x128xf32, #tpu.memory_space<vmem>>, %arg12: memref<3x1x128xf32, #tpu.memory_space<vmem>>, %arg13: memref<3x1x128xf32, #tpu.memory_space<vmem>>, %arg14: memref<3x1x128xf32, #tpu.memory_space<vmem>>, %arg15: memref<64x128xf32, #tpu.memory_space<vmem>>) attributes {dimension_semantics = [#tpu.dimension_semantics<parallel>], iteration_bounds = array<i64: 4>, scalar_prefetch = 0 : i64, scratch_operands = 0 : i64, tpu.core_type = #tpu.core_type<tc>, window_params = [{transform_indices = @transform_0, window_bounds = array<i64: 64, 128>}, {transform_indices = @transform_1, window_bounds = array<i64: 64, 128>}, {pipeline_mode = #tpu.pipeline_mode<synchronous>, transform_indices = @transform_2, window_bounds = array<i64: 3, 128, 128>}, {pipeline_mode = #tpu.pipeline_mode<synchronous>, transform_indices = @transform_3, window_bounds = array<i64: 3, 1, 128>}, {pipeline_mode = #tpu.pipeline_mode<synchronous>, transform_indices = @transform_4, window_bounds = array<i64: 3, 128, 128>}, {pipeline_mode = #tpu.pipeline_mode<synchronous>, transform_indices = @transform_5, window_bounds = array<i64: 3, 1, 128>}, {pipeline_mode = #tpu.pipeline_mode<synchronous>, transform_indices = @transform_6, window_bounds = array<i64: 3, 1, 128>}, {pipeline_mode = #tpu.pipeline_mode<synchronous>, transform_indices = @transform_7, window_bounds = array<i64: 3, 1, 128>}, {pipeline_mode = #tpu.pipeline_mode<synchronous>, transform_indices = @transform_8, window_bounds = array<i64: 3, 128, 256>}, {pipeline_mode = #tpu.pipeline_mode<synchronous>, transform_indices = @transform_9, window_bounds = array<i64: 3, 1, 256>}, {pipeline_mode = #tpu.pipeline_mode<synchronous>, transform_indices = @transform_10, window_bounds = array<i64: 3, 256, 128>}, {pipeline_mode = #tpu.pipeline_mode<synchronous>, transform_indices = @transform_11, window_bounds = array<i64: 3, 1, 128>}, {pipeline_mode = #tpu.pipeline_mode<synchronous>, transform_indices = @transform_12, window_bounds = array<i64: 3, 1, 128>}, {pipeline_mode = #tpu.pipeline_mode<synchronous>, transform_indices = @transform_13, window_bounds = array<i64: 3, 1, 128>}, {transform_indices = @transform_14, window_bounds = array<i64: 64, 128>}]} {
    %c0 = arith.constant 0 : index
    %c0_0 = arith.constant 0 : index
    %0 = vector.load %arg1[%c0, %c0_0] : memref<64x128xf32, #tpu.memory_space<vmem>>, vector<64x128xf32>
    %c0_1 = arith.constant 0 : index
    %c0_2 = arith.constant 0 : index
    %1 = vector.load %arg2[%c0_1, %c0_2] : memref<64x128xf32, #tpu.memory_space<vmem>>, vector<64x128xf32>
    %c0_3 = arith.constant 0 : index
    %c0_4 = arith.constant 0 : index
    %c0_5 = arith.constant 0 : index
    %2 = vector.load %arg3[%c0_3, %c0_4, %c0_5] : memref<3x128x128xf32, #tpu.memory_space<vmem>>, vector<1x128x128xf32>
    %3 = vector.shape_cast %2 : vector<1x128x128xf32> to vector<128x128xf32>
    %cst = arith.constant dense<0.000000e+00> : vector<64x128xf32>
    %4 = tpu.matmul %1, %3, %cst {dimension_numbers = #tpu.dot_dimension_numbers<[1], [0], [0], [1], [0, 0, 1, 1], [], []>} : vector<64x128xf32>, vector<128x128xf32>, vector<64x128xf32> -> vector<64x128xf32>
    %c0_6 = arith.constant 0 : index
    %c0_7 = arith.constant 0 : index
    %c0_8 = arith.constant 0 : index
    %5 = vector.load %arg4[%c0_6, %c0_7, %c0_8] : memref<3x1x128xf32, #tpu.memory_space<vmem>>, vector<1x1x128xf32>
    %6 = vector.shape_cast %5 : vector<1x1x128xf32> to vector<1x128xf32>
    %7 = vector.broadcast %6 : vector<1x128xf32> to vector<64x128xf32>
    %8 = arith.addf %4, %7 : vector<64x128xf32>
    %c0_9 = arith.constant 0 : index
    %c0_10 = arith.constant 0 : index
    %c0_11 = arith.constant 0 : index
    %9 = vector.load %arg5[%c0_9, %c0_10, %c0_11] : memref<3x128x128xf32, #tpu.memory_space<vmem>>, vector<1x128x128xf32>
    %10 = vector.shape_cast %9 : vector<1x128x128xf32> to vector<128x128xf32>
    %cst_12 = arith.constant dense<0.000000e+00> : vector<64x128xf32>
    %11 = tpu.matmul %8, %10, %cst_12 {dimension_numbers = #tpu.dot_dimension_numbers<[1], [0], [0], [1], [0, 0, 1, 1], [], []>} : vector<64x128xf32>, vector<128x128xf32>, vector<64x128xf32> -> vector<64x128xf32>
    %c0_13 = arith.constant 0 : index
    %c0_14 = arith.constant 0 : index
    %c0_15 = arith.constant 0 : index
    %12 = vector.load %arg6[%c0_13, %c0_14, %c0_15] : memref<3x1x128xf32, #tpu.memory_space<vmem>>, vector<1x1x128xf32>
    %13 = vector.shape_cast %12 : vector<1x1x128xf32> to vector<1x128xf32>
    %14 = vector.broadcast %13 : vector<1x128xf32> to vector<64x128xf32>
    %15 = arith.addf %11, %14 : vector<64x128xf32>
    %16 = arith.addf %15, %0 : vector<64x128xf32>
    %c0_16 = arith.constant 0 : index
    %c0_17 = arith.constant 0 : index
    %c0_18 = arith.constant 0 : index
    %17 = vector.load %arg7[%c0_16, %c0_17, %c0_18] : memref<3x1x128xf32, #tpu.memory_space<vmem>>, vector<1x1x128xf32>
    %18 = vector.shape_cast %17 : vector<1x1x128xf32> to vector<1x128xf32>
    %c0_19 = arith.constant 0 : index
    %c0_20 = arith.constant 0 : index
    %c0_21 = arith.constant 0 : index
    %19 = vector.load %arg8[%c0_19, %c0_20, %c0_21] : memref<3x1x128xf32, #tpu.memory_space<vmem>>, vector<1x1x128xf32>
    %20 = vector.shape_cast %19 : vector<1x1x128xf32> to vector<1x128xf32>
    %cst_22 = arith.constant dense<0.000000e+00> : vector<64xf32>
    %21 = vector.multi_reduction <add>, %16, %cst_22 [1] : vector<64x128xf32> to vector<64xf32>
    %22 = vector.shape_cast %21 : vector<64xf32> to vector<64x1xf32>
    %cst_23 = arith.constant 1.280000e+02 : f32
    %23 = vector.broadcast %cst_23 : f32 to vector<64x1xf32>
    %24 = arith.divf %22, %23 : vector<64x1xf32>
    %25 = vector.broadcast %24 : vector<64x1xf32> to vector<64x128xf32>
    %26 = arith.subf %16, %25 : vector<64x128xf32>
    %27 = arith.mulf %26, %26 : vector<64x128xf32>
    %cst_24 = arith.constant dense<0.000000e+00> : vector<64xf32>
    %28 = vector.multi_reduction <add>, %27, %cst_24 [1] : vector<64x128xf32> to vector<64xf32>
    %29 = vector.shape_cast %28 : vector<64xf32> to vector<64x1xf32>
    %cst_25 = arith.constant 1.280000e+02 : f32
    %30 = vector.broadcast %cst_25 : f32 to vector<64x1xf32>
    %31 = arith.divf %29, %30 : vector<64x1xf32>
    %cst_26 = arith.constant 9.99999974E-6 : f32
    %32 = vector.broadcast %cst_26 : f32 to vector<64x1xf32>
    %33 = arith.addf %31, %32 : vector<64x1xf32>
    %34 = math.rsqrt %33 : vector<64x1xf32>
    %35 = vector.broadcast %34 : vector<64x1xf32> to vector<64x128xf32>
    %36 = arith.mulf %26, %35 : vector<64x128xf32>
    %37 = vector.broadcast %18 : vector<1x128xf32> to vector<64x128xf32>
    %38 = arith.mulf %36, %37 : vector<64x128xf32>
    %39 = vector.broadcast %20 : vector<1x128xf32> to vector<64x128xf32>
    %40 = arith.addf %38, %39 : vector<64x128xf32>
    %c0_27 = arith.constant 0 : index
    %c0_28 = arith.constant 0 : index
    %c0_29 = arith.constant 0 : index
    %41 = vector.load %arg9[%c0_27, %c0_28, %c0_29] : memref<3x128x256xf32, #tpu.memory_space<vmem>>, vector<1x128x256xf32>
    %42 = vector.shape_cast %41 : vector<1x128x256xf32> to vector<128x256xf32>
    %cst_30 = arith.constant dense<0.000000e+00> : vector<64x256xf32>
    %43 = tpu.matmul %40, %42, %cst_30 {dimension_numbers = #tpu.dot_dimension_numbers<[1], [0], [0], [1], [0, 0, 1, 1], [], []>} : vector<64x128xf32>, vector<128x256xf32>, vector<64x256xf32> -> vector<64x256xf32>
    %c0_31 = arith.constant 0 : index
    %c0_32 = arith.constant 0 : index
    %c0_33 = arith.constant 0 : index
    %44 = vector.load %arg10[%c0_31, %c0_32, %c0_33] : memref<3x1x256xf32, #tpu.memory_space<vmem>>, vector<1x1x256xf32>
    %45 = vector.shape_cast %44 : vector<1x1x256xf32> to vector<1x256xf32>
    %46 = vector.broadcast %45 : vector<1x256xf32> to vector<64x256xf32>
    %47 = arith.addf %43, %46 : vector<64x256xf32>
    %cst_34 = arith.constant 0.000000e+00 : f32
    %48 = vector.broadcast %cst_34 : f32 to vector<64x256xf32>
    %49 = arith.maximumf %47, %48 : vector<64x256xf32>
    %c0_35 = arith.constant 0 : index
    %c0_36 = arith.constant 0 : index
    %c0_37 = arith.constant 0 : index
    %50 = vector.load %arg11[%c0_35, %c0_36, %c0_37] : memref<3x256x128xf32, #tpu.memory_space<vmem>>, vector<1x256x128xf32>
    %51 = vector.shape_cast %50 : vector<1x256x128xf32> to vector<256x128xf32>
    %cst_38 = arith.constant dense<0.000000e+00> : vector<64x128xf32>
    %52 = tpu.matmul %49, %51, %cst_38 {dimension_numbers = #tpu.dot_dimension_numbers<[1], [0], [0], [1], [0, 0, 1, 1], [], []>} : vector<64x256xf32>, vector<256x128xf32>, vector<64x128xf32> -> vector<64x128xf32>
    %c0_39 = arith.constant 0 : index
    %c0_40 = arith.constant 0 : index
    %c0_41 = arith.constant 0 : index
    %53 = vector.load %arg12[%c0_39, %c0_40, %c0_41] : memref<3x1x128xf32, #tpu.memory_space<vmem>>, vector<1x1x128xf32>
    %54 = vector.shape_cast %53 : vector<1x1x128xf32> to vector<1x128xf32>
    %55 = vector.broadcast %54 : vector<1x128xf32> to vector<64x128xf32>
    %56 = arith.addf %52, %55 : vector<64x128xf32>
    %57 = arith.addf %40, %56 : vector<64x128xf32>
    %c0_42 = arith.constant 0 : index
    %c0_43 = arith.constant 0 : index
    %c0_44 = arith.constant 0 : index
    %58 = vector.load %arg13[%c0_42, %c0_43, %c0_44] : memref<3x1x128xf32, #tpu.memory_space<vmem>>, vector<1x1x128xf32>
    %59 = vector.shape_cast %58 : vector<1x1x128xf32> to vector<1x128xf32>
    %c0_45 = arith.constant 0 : index
    %c0_46 = arith.constant 0 : index
    %c0_47 = arith.constant 0 : index
    %60 = vector.load %arg14[%c0_45, %c0_46, %c0_47] : memref<3x1x128xf32, #tpu.memory_space<vmem>>, vector<1x1x128xf32>
    %61 = vector.shape_cast %60 : vector<1x1x128xf32> to vector<1x128xf32>
    %cst_48 = arith.constant dense<0.000000e+00> : vector<64xf32>
    %62 = vector.multi_reduction <add>, %57, %cst_48 [1] : vector<64x128xf32> to vector<64xf32>
    %63 = vector.shape_cast %62 : vector<64xf32> to vector<64x1xf32>
    %cst_49 = arith.constant 1.280000e+02 : f32
    %64 = vector.broadcast %cst_49 : f32 to vector<64x1xf32>
    %65 = arith.divf %63, %64 : vector<64x1xf32>
    %66 = vector.broadcast %65 : vector<64x1xf32> to vector<64x128xf32>
    %67 = arith.subf %57, %66 : vector<64x128xf32>
    %68 = arith.mulf %67, %67 : vector<64x128xf32>
    %cst_50 = arith.constant dense<0.000000e+00> : vector<64xf32>
    %69 = vector.multi_reduction <add>, %68, %cst_50 [1] : vector<64x128xf32> to vector<64xf32>
    %70 = vector.shape_cast %69 : vector<64xf32> to vector<64x1xf32>
    %cst_51 = arith.constant 1.280000e+02 : f32
    %71 = vector.broadcast %cst_51 : f32 to vector<64x1xf32>
    %72 = arith.divf %70, %71 : vector<64x1xf32>
    %cst_52 = arith.constant 9.99999974E-6 : f32
    %73 = vector.broadcast %cst_52 : f32 to vector<64x1xf32>
    %74 = arith.addf %72, %73 : vector<64x1xf32>
    %75 = math.rsqrt %74 : vector<64x1xf32>
    %76 = vector.broadcast %75 : vector<64x1xf32> to vector<64x128xf32>
    %77 = arith.mulf %67, %76 : vector<64x128xf32>
    %78 = vector.broadcast %59 : vector<1x128xf32> to vector<64x128xf32>
    %79 = arith.mulf %77, %78 : vector<64x128xf32>
    %80 = vector.broadcast %61 : vector<1x128xf32> to vector<64x128xf32>
    %81 = arith.addf %79, %80 : vector<64x128xf32>
    %c1 = arith.constant 1 : index
    %c0_53 = arith.constant 0 : index
    %c0_54 = arith.constant 0 : index
    %82 = vector.load %arg3[%c1, %c0_53, %c0_54] : memref<3x128x128xf32, #tpu.memory_space<vmem>>, vector<1x128x128xf32>
    %83 = vector.shape_cast %82 : vector<1x128x128xf32> to vector<128x128xf32>
    %cst_55 = arith.constant dense<0.000000e+00> : vector<64x128xf32>
    %84 = tpu.matmul %1, %83, %cst_55 {dimension_numbers = #tpu.dot_dimension_numbers<[1], [0], [0], [1], [0, 0, 1, 1], [], []>} : vector<64x128xf32>, vector<128x128xf32>, vector<64x128xf32> -> vector<64x128xf32>
    %c1_56 = arith.constant 1 : index
    %c0_57 = arith.constant 0 : index
    %c0_58 = arith.constant 0 : index
    %85 = vector.load %arg4[%c1_56, %c0_57, %c0_58] : memref<3x1x128xf32, #tpu.memory_space<vmem>>, vector<1x1x128xf32>
    %86 = vector.shape_cast %85 : vector<1x1x128xf32> to vector<1x128xf32>
    %87 = vector.broadcast %86 : vector<1x128xf32> to vector<64x128xf32>
    %88 = arith.addf %84, %87 : vector<64x128xf32>
    %c1_59 = arith.constant 1 : index
    %c0_60 = arith.constant 0 : index
    %c0_61 = arith.constant 0 : index
    %89 = vector.load %arg5[%c1_59, %c0_60, %c0_61] : memref<3x128x128xf32, #tpu.memory_space<vmem>>, vector<1x128x128xf32>
    %90 = vector.shape_cast %89 : vector<1x128x128xf32> to vector<128x128xf32>
    %cst_62 = arith.constant dense<0.000000e+00> : vector<64x128xf32>
    %91 = tpu.matmul %88, %90, %cst_62 {dimension_numbers = #tpu.dot_dimension_numbers<[1], [0], [0], [1], [0, 0, 1, 1], [], []>} : vector<64x128xf32>, vector<128x128xf32>, vector<64x128xf32> -> vector<64x128xf32>
    %c1_63 = arith.constant 1 : index
    %c0_64 = arith.constant 0 : index
    %c0_65 = arith.constant 0 : index
    %92 = vector.load %arg6[%c1_63, %c0_64, %c0_65] : memref<3x1x128xf32, #tpu.memory_space<vmem>>, vector<1x1x128xf32>
    %93 = vector.shape_cast %92 : vector<1x1x128xf32> to vector<1x128xf32>
    %94 = vector.broadcast %93 : vector<1x128xf32> to vector<64x128xf32>
    %95 = arith.addf %91, %94 : vector<64x128xf32>
    %96 = arith.addf %95, %81 : vector<64x128xf32>
    %c1_66 = arith.constant 1 : index
    %c0_67 = arith.constant 0 : index
    %c0_68 = arith.constant 0 : index
    %97 = vector.load %arg7[%c1_66, %c0_67, %c0_68] : memref<3x1x128xf32, #tpu.memory_space<vmem>>, vector<1x1x128xf32>
    %98 = vector.shape_cast %97 : vector<1x1x128xf32> to vector<1x128xf32>
    %c1_69 = arith.constant 1 : index
    %c0_70 = arith.constant 0 : index
    %c0_71 = arith.constant 0 : index
    %99 = vector.load %arg8[%c1_69, %c0_70, %c0_71] : memref<3x1x128xf32, #tpu.memory_space<vmem>>, vector<1x1x128xf32>
    %100 = vector.shape_cast %99 : vector<1x1x128xf32> to vector<1x128xf32>
    %cst_72 = arith.constant dense<0.000000e+00> : vector<64xf32>
    %101 = vector.multi_reduction <add>, %96, %cst_72 [1] : vector<64x128xf32> to vector<64xf32>
    %102 = vector.shape_cast %101 : vector<64xf32> to vector<64x1xf32>
    %cst_73 = arith.constant 1.280000e+02 : f32
    %103 = vector.broadcast %cst_73 : f32 to vector<64x1xf32>
    %104 = arith.divf %102, %103 : vector<64x1xf32>
    %105 = vector.broadcast %104 : vector<64x1xf32> to vector<64x128xf32>
    %106 = arith.subf %96, %105 : vector<64x128xf32>
    %107 = arith.mulf %106, %106 : vector<64x128xf32>
    %cst_74 = arith.constant dense<0.000000e+00> : vector<64xf32>
    %108 = vector.multi_reduction <add>, %107, %cst_74 [1] : vector<64x128xf32> to vector<64xf32>
    %109 = vector.shape_cast %108 : vector<64xf32> to vector<64x1xf32>
    %cst_75 = arith.constant 1.280000e+02 : f32
    %110 = vector.broadcast %cst_75 : f32 to vector<64x1xf32>
    %111 = arith.divf %109, %110 : vector<64x1xf32>
    %cst_76 = arith.constant 9.99999974E-6 : f32
    %112 = vector.broadcast %cst_76 : f32 to vector<64x1xf32>
    %113 = arith.addf %111, %112 : vector<64x1xf32>
    %114 = math.rsqrt %113 : vector<64x1xf32>
    %115 = vector.broadcast %114 : vector<64x1xf32> to vector<64x128xf32>
    %116 = arith.mulf %106, %115 : vector<64x128xf32>
    %117 = vector.broadcast %98 : vector<1x128xf32> to vector<64x128xf32>
    %118 = arith.mulf %116, %117 : vector<64x128xf32>
    %119 = vector.broadcast %100 : vector<1x128xf32> to vector<64x128xf32>
    %120 = arith.addf %118, %119 : vector<64x128xf32>
    %c1_77 = arith.constant 1 : index
    %c0_78 = arith.constant 0 : index
    %c0_79 = arith.constant 0 : index
    %121 = vector.load %arg9[%c1_77, %c0_78, %c0_79] : memref<3x128x256xf32, #tpu.memory_space<vmem>>, vector<1x128x256xf32>
    %122 = vector.shape_cast %121 : vector<1x128x256xf32> to vector<128x256xf32>
    %cst_80 = arith.constant dense<0.000000e+00> : vector<64x256xf32>
    %123 = tpu.matmul %120, %122, %cst_80 {dimension_numbers = #tpu.dot_dimension_numbers<[1], [0], [0], [1], [0, 0, 1, 1], [], []>} : vector<64x128xf32>, vector<128x256xf32>, vector<64x256xf32> -> vector<64x256xf32>
    %c1_81 = arith.constant 1 : index
    %c0_82 = arith.constant 0 : index
    %c0_83 = arith.constant 0 : index
    %124 = vector.load %arg10[%c1_81, %c0_82, %c0_83] : memref<3x1x256xf32, #tpu.memory_space<vmem>>, vector<1x1x256xf32>
    %125 = vector.shape_cast %124 : vector<1x1x256xf32> to vector<1x256xf32>
    %126 = vector.broadcast %125 : vector<1x256xf32> to vector<64x256xf32>
    %127 = arith.addf %123, %126 : vector<64x256xf32>
    %cst_84 = arith.constant 0.000000e+00 : f32
    %128 = vector.broadcast %cst_84 : f32 to vector<64x256xf32>
    %129 = arith.maximumf %127, %128 : vector<64x256xf32>
    %c1_85 = arith.constant 1 : index
    %c0_86 = arith.constant 0 : index
    %c0_87 = arith.constant 0 : index
    %130 = vector.load %arg11[%c1_85, %c0_86, %c0_87] : memref<3x256x128xf32, #tpu.memory_space<vmem>>, vector<1x256x128xf32>
    %131 = vector.shape_cast %130 : vector<1x256x128xf32> to vector<256x128xf32>
    %cst_88 = arith.constant dense<0.000000e+00> : vector<64x128xf32>
    %132 = tpu.matmul %129, %131, %cst_88 {dimension_numbers = #tpu.dot_dimension_numbers<[1], [0], [0], [1], [0, 0, 1, 1], [], []>} : vector<64x256xf32>, vector<256x128xf32>, vector<64x128xf32> -> vector<64x128xf32>
    %c1_89 = arith.constant 1 : index
    %c0_90 = arith.constant 0 : index
    %c0_91 = arith.constant 0 : index
    %133 = vector.load %arg12[%c1_89, %c0_90, %c0_91] : memref<3x1x128xf32, #tpu.memory_space<vmem>>, vector<1x1x128xf32>
    %134 = vector.shape_cast %133 : vector<1x1x128xf32> to vector<1x128xf32>
    %135 = vector.broadcast %134 : vector<1x128xf32> to vector<64x128xf32>
    %136 = arith.addf %132, %135 : vector<64x128xf32>
    %137 = arith.addf %120, %136 : vector<64x128xf32>
    %c1_92 = arith.constant 1 : index
    %c0_93 = arith.constant 0 : index
    %c0_94 = arith.constant 0 : index
    %138 = vector.load %arg13[%c1_92, %c0_93, %c0_94] : memref<3x1x128xf32, #tpu.memory_space<vmem>>, vector<1x1x128xf32>
    %139 = vector.shape_cast %138 : vector<1x1x128xf32> to vector<1x128xf32>
    %c1_95 = arith.constant 1 : index
    %c0_96 = arith.constant 0 : index
    %c0_97 = arith.constant 0 : index
    %140 = vector.load %arg14[%c1_95, %c0_96, %c0_97] : memref<3x1x128xf32, #tpu.memory_space<vmem>>, vector<1x1x128xf32>
    %141 = vector.shape_cast %140 : vector<1x1x128xf32> to vector<1x128xf32>
    %cst_98 = arith.constant dense<0.000000e+00> : vector<64xf32>
    %142 = vector.multi_reduction <add>, %137, %cst_98 [1] : vector<64x128xf32> to vector<64xf32>
    %143 = vector.shape_cast %142 : vector<64xf32> to vector<64x1xf32>
    %cst_99 = arith.constant 1.280000e+02 : f32
    %144 = vector.broadcast %cst_99 : f32 to vector<64x1xf32>
    %145 = arith.divf %143, %144 : vector<64x1xf32>
    %146 = vector.broadcast %145 : vector<64x1xf32> to vector<64x128xf32>
    %147 = arith.subf %137, %146 : vector<64x128xf32>
    %148 = arith.mulf %147, %147 : vector<64x128xf32>
    %cst_100 = arith.constant dense<0.000000e+00> : vector<64xf32>
    %149 = vector.multi_reduction <add>, %148, %cst_100 [1] : vector<64x128xf32> to vector<64xf32>
    %150 = vector.shape_cast %149 : vector<64xf32> to vector<64x1xf32>
    %cst_101 = arith.constant 1.280000e+02 : f32
    %151 = vector.broadcast %cst_101 : f32 to vector<64x1xf32>
    %152 = arith.divf %150, %151 : vector<64x1xf32>
    %cst_102 = arith.constant 9.99999974E-6 : f32
    %153 = vector.broadcast %cst_102 : f32 to vector<64x1xf32>
    %154 = arith.addf %152, %153 : vector<64x1xf32>
    %155 = math.rsqrt %154 : vector<64x1xf32>
    %156 = vector.broadcast %155 : vector<64x1xf32> to vector<64x128xf32>
    %157 = arith.mulf %147, %156 : vector<64x128xf32>
    %158 = vector.broadcast %139 : vector<1x128xf32> to vector<64x128xf32>
    %159 = arith.mulf %157, %158 : vector<64x128xf32>
    %160 = vector.broadcast %141 : vector<1x128xf32> to vector<64x128xf32>
    %161 = arith.addf %159, %160 : vector<64x128xf32>
    %c2 = arith.constant 2 : index
    %c0_103 = arith.constant 0 : index
    %c0_104 = arith.constant 0 : index
    %162 = vector.load %arg3[%c2, %c0_103, %c0_104] : memref<3x128x128xf32, #tpu.memory_space<vmem>>, vector<1x128x128xf32>
    %163 = vector.shape_cast %162 : vector<1x128x128xf32> to vector<128x128xf32>
    %cst_105 = arith.constant dense<0.000000e+00> : vector<64x128xf32>
    %164 = tpu.matmul %1, %163, %cst_105 {dimension_numbers = #tpu.dot_dimension_numbers<[1], [0], [0], [1], [0, 0, 1, 1], [], []>} : vector<64x128xf32>, vector<128x128xf32>, vector<64x128xf32> -> vector<64x128xf32>
    %c2_106 = arith.constant 2 : index
    %c0_107 = arith.constant 0 : index
    %c0_108 = arith.constant 0 : index
    %165 = vector.load %arg4[%c2_106, %c0_107, %c0_108] : memref<3x1x128xf32, #tpu.memory_space<vmem>>, vector<1x1x128xf32>
    %166 = vector.shape_cast %165 : vector<1x1x128xf32> to vector<1x128xf32>
    %167 = vector.broadcast %166 : vector<1x128xf32> to vector<64x128xf32>
    %168 = arith.addf %164, %167 : vector<64x128xf32>
    %c2_109 = arith.constant 2 : index
    %c0_110 = arith.constant 0 : index
    %c0_111 = arith.constant 0 : index
    %169 = vector.load %arg5[%c2_109, %c0_110, %c0_111] : memref<3x128x128xf32, #tpu.memory_space<vmem>>, vector<1x128x128xf32>
    %170 = vector.shape_cast %169 : vector<1x128x128xf32> to vector<128x128xf32>
    %cst_112 = arith.constant dense<0.000000e+00> : vector<64x128xf32>
    %171 = tpu.matmul %168, %170, %cst_112 {dimension_numbers = #tpu.dot_dimension_numbers<[1], [0], [0], [1], [0, 0, 1, 1], [], []>} : vector<64x128xf32>, vector<128x128xf32>, vector<64x128xf32> -> vector<64x128xf32>
    %c2_113 = arith.constant 2 : index
    %c0_114 = arith.constant 0 : index
    %c0_115 = arith.constant 0 : index
    %172 = vector.load %arg6[%c2_113, %c0_114, %c0_115] : memref<3x1x128xf32, #tpu.memory_space<vmem>>, vector<1x1x128xf32>
    %173 = vector.shape_cast %172 : vector<1x1x128xf32> to vector<1x128xf32>
    %174 = vector.broadcast %173 : vector<1x128xf32> to vector<64x128xf32>
    %175 = arith.addf %171, %174 : vector<64x128xf32>
    %176 = arith.addf %175, %161 : vector<64x128xf32>
    %c2_116 = arith.constant 2 : index
    %c0_117 = arith.constant 0 : index
    %c0_118 = arith.constant 0 : index
    %177 = vector.load %arg7[%c2_116, %c0_117, %c0_118] : memref<3x1x128xf32, #tpu.memory_space<vmem>>, vector<1x1x128xf32>
    %178 = vector.shape_cast %177 : vector<1x1x128xf32> to vector<1x128xf32>
    %c2_119 = arith.constant 2 : index
    %c0_120 = arith.constant 0 : index
    %c0_121 = arith.constant 0 : index
    %179 = vector.load %arg8[%c2_119, %c0_120, %c0_121] : memref<3x1x128xf32, #tpu.memory_space<vmem>>, vector<1x1x128xf32>
    %180 = vector.shape_cast %179 : vector<1x1x128xf32> to vector<1x128xf32>
    %cst_122 = arith.constant dense<0.000000e+00> : vector<64xf32>
    %181 = vector.multi_reduction <add>, %176, %cst_122 [1] : vector<64x128xf32> to vector<64xf32>
    %182 = vector.shape_cast %181 : vector<64xf32> to vector<64x1xf32>
    %cst_123 = arith.constant 1.280000e+02 : f32
    %183 = vector.broadcast %cst_123 : f32 to vector<64x1xf32>
    %184 = arith.divf %182, %183 : vector<64x1xf32>
    %185 = vector.broadcast %184 : vector<64x1xf32> to vector<64x128xf32>
    %186 = arith.subf %176, %185 : vector<64x128xf32>
    %187 = arith.mulf %186, %186 : vector<64x128xf32>
    %cst_124 = arith.constant dense<0.000000e+00> : vector<64xf32>
    %188 = vector.multi_reduction <add>, %187, %cst_124 [1] : vector<64x128xf32> to vector<64xf32>
    %189 = vector.shape_cast %188 : vector<64xf32> to vector<64x1xf32>
    %cst_125 = arith.constant 1.280000e+02 : f32
    %190 = vector.broadcast %cst_125 : f32 to vector<64x1xf32>
    %191 = arith.divf %189, %190 : vector<64x1xf32>
    %cst_126 = arith.constant 9.99999974E-6 : f32
    %192 = vector.broadcast %cst_126 : f32 to vector<64x1xf32>
    %193 = arith.addf %191, %192 : vector<64x1xf32>
    %194 = math.rsqrt %193 : vector<64x1xf32>
    %195 = vector.broadcast %194 : vector<64x1xf32> to vector<64x128xf32>
    %196 = arith.mulf %186, %195 : vector<64x128xf32>
    %197 = vector.broadcast %178 : vector<1x128xf32> to vector<64x128xf32>
    %198 = arith.mulf %196, %197 : vector<64x128xf32>
    %199 = vector.broadcast %180 : vector<1x128xf32> to vector<64x128xf32>
    %200 = arith.addf %198, %199 : vector<64x128xf32>
    %c2_127 = arith.constant 2 : index
    %c0_128 = arith.constant 0 : index
    %c0_129 = arith.constant 0 : index
    %201 = vector.load %arg9[%c2_127, %c0_128, %c0_129] : memref<3x128x256xf32, #tpu.memory_space<vmem>>, vector<1x128x256xf32>
    %202 = vector.shape_cast %201 : vector<1x128x256xf32> to vector<128x256xf32>
    %cst_130 = arith.constant dense<0.000000e+00> : vector<64x256xf32>
    %203 = tpu.matmul %200, %202, %cst_130 {dimension_numbers = #tpu.dot_dimension_numbers<[1], [0], [0], [1], [0, 0, 1, 1], [], []>} : vector<64x128xf32>, vector<128x256xf32>, vector<64x256xf32> -> vector<64x256xf32>
    %c2_131 = arith.constant 2 : index
    %c0_132 = arith.constant 0 : index
    %c0_133 = arith.constant 0 : index
    %204 = vector.load %arg10[%c2_131, %c0_132, %c0_133] : memref<3x1x256xf32, #tpu.memory_space<vmem>>, vector<1x1x256xf32>
    %205 = vector.shape_cast %204 : vector<1x1x256xf32> to vector<1x256xf32>
    %206 = vector.broadcast %205 : vector<1x256xf32> to vector<64x256xf32>
    %207 = arith.addf %203, %206 : vector<64x256xf32>
    %cst_134 = arith.constant 0.000000e+00 : f32
    %208 = vector.broadcast %cst_134 : f32 to vector<64x256xf32>
    %209 = arith.maximumf %207, %208 : vector<64x256xf32>
    %c2_135 = arith.constant 2 : index
    %c0_136 = arith.constant 0 : index
    %c0_137 = arith.constant 0 : index
    %210 = vector.load %arg11[%c2_135, %c0_136, %c0_137] : memref<3x256x128xf32, #tpu.memory_space<vmem>>, vector<1x256x128xf32>
    %211 = vector.shape_cast %210 : vector<1x256x128xf32> to vector<256x128xf32>
    %cst_138 = arith.constant dense<0.000000e+00> : vector<64x128xf32>
    %212 = tpu.matmul %209, %211, %cst_138 {dimension_numbers = #tpu.dot_dimension_numbers<[1], [0], [0], [1], [0, 0, 1, 1], [], []>} : vector<64x256xf32>, vector<256x128xf32>, vector<64x128xf32> -> vector<64x128xf32>
    %c2_139 = arith.constant 2 : index
    %c0_140 = arith.constant 0 : index
    %c0_141 = arith.constant 0 : index
    %213 = vector.load %arg12[%c2_139, %c0_140, %c0_141] : memref<3x1x128xf32, #tpu.memory_space<vmem>>, vector<1x1x128xf32>
    %214 = vector.shape_cast %213 : vector<1x1x128xf32> to vector<1x128xf32>
    %215 = vector.broadcast %214 : vector<1x128xf32> to vector<64x128xf32>
    %216 = arith.addf %212, %215 : vector<64x128xf32>
    %217 = arith.addf %200, %216 : vector<64x128xf32>
    %c2_142 = arith.constant 2 : index
    %c0_143 = arith.constant 0 : index
    %c0_144 = arith.constant 0 : index
    %218 = vector.load %arg13[%c2_142, %c0_143, %c0_144] : memref<3x1x128xf32, #tpu.memory_space<vmem>>, vector<1x1x128xf32>
    %219 = vector.shape_cast %218 : vector<1x1x128xf32> to vector<1x128xf32>
    %c2_145 = arith.constant 2 : index
    %c0_146 = arith.constant 0 : index
    %c0_147 = arith.constant 0 : index
    %220 = vector.load %arg14[%c2_145, %c0_146, %c0_147] : memref<3x1x128xf32, #tpu.memory_space<vmem>>, vector<1x1x128xf32>
    %221 = vector.shape_cast %220 : vector<1x1x128xf32> to vector<1x128xf32>
    %cst_148 = arith.constant dense<0.000000e+00> : vector<64xf32>
    %222 = vector.multi_reduction <add>, %217, %cst_148 [1] : vector<64x128xf32> to vector<64xf32>
    %223 = vector.shape_cast %222 : vector<64xf32> to vector<64x1xf32>
    %cst_149 = arith.constant 1.280000e+02 : f32
    %224 = vector.broadcast %cst_149 : f32 to vector<64x1xf32>
    %225 = arith.divf %223, %224 : vector<64x1xf32>
    %226 = vector.broadcast %225 : vector<64x1xf32> to vector<64x128xf32>
    %227 = arith.subf %217, %226 : vector<64x128xf32>
    %228 = arith.mulf %227, %227 : vector<64x128xf32>
    %cst_150 = arith.constant dense<0.000000e+00> : vector<64xf32>
    %229 = vector.multi_reduction <add>, %228, %cst_150 [1] : vector<64x128xf32> to vector<64xf32>
    %230 = vector.shape_cast %229 : vector<64xf32> to vector<64x1xf32>
    %cst_151 = arith.constant 1.280000e+02 : f32
    %231 = vector.broadcast %cst_151 : f32 to vector<64x1xf32>
    %232 = arith.divf %230, %231 : vector<64x1xf32>
    %cst_152 = arith.constant 9.99999974E-6 : f32
    %233 = vector.broadcast %cst_152 : f32 to vector<64x1xf32>
    %234 = arith.addf %232, %233 : vector<64x1xf32>
    %235 = math.rsqrt %234 : vector<64x1xf32>
    %236 = vector.broadcast %235 : vector<64x1xf32> to vector<64x128xf32>
    %237 = arith.mulf %227, %236 : vector<64x128xf32>
    %238 = vector.broadcast %219 : vector<1x128xf32> to vector<64x128xf32>
    %239 = arith.mulf %237, %238 : vector<64x128xf32>
    %240 = vector.broadcast %221 : vector<1x128xf32> to vector<64x128xf32>
    %241 = arith.addf %239, %240 : vector<64x128xf32>
    %c0_153 = arith.constant 0 : index
    %c0_154 = arith.constant 0 : index
    %242 = vector.load %arg15[%c0_153, %c0_154] : memref<64x128xf32, #tpu.memory_space<vmem>>, vector<64x128xf32>
    tpu.vector_store %arg15[%c0_153, %c0_154], %241 {strides = array<i32>} : memref<64x128xf32, #tpu.memory_space<vmem>>, vector<64x128xf32>,
    return
  }
  func.func @transform_0(%arg0: i32) -> (i32, i32) {
    %c0_i32 = arith.constant 0 : i32
    %c0_i32_0 = arith.constant 0 : i32
    return %arg0, %c0_i32 : i32, i32
  }
  func.func @transform_1(%arg0: i32) -> (i32, i32) {
    %c0_i32 = arith.constant 0 : i32
    %c0_i32_0 = arith.constant 0 : i32
    return %arg0, %c0_i32 : i32, i32
  }
  func.func @transform_2(%arg0: i32) -> (i32, i32, i32) {
    %c0_i32 = arith.constant 0 : i32
    %c0_i32_0 = arith.constant 0 : i32
    %c0_i32_1 = arith.constant 0 : i32
    %c0_i32_2 = arith.constant 0 : i32
    return %c0_i32, %c0_i32_0, %c0_i32_1 : i32, i32, i32
  }
  func.func @transform_3(%arg0: i32) -> (i32, i32, i32) {
    %c0_i32 = arith.constant 0 : i32
    %c0_i32_0 = arith.constant 0 : i32
    %c0_i32_1 = arith.constant 0 : i32
    %c0_i32_2 = arith.constant 0 : i32
    return %c0_i32, %c0_i32_0, %c0_i32_1 : i32, i32, i32
  }
  func.func @transform_4(%arg0: i32) -> (i32, i32, i32) {
    %c0_i32 = arith.constant 0 : i32
    %c0_i32_0 = arith.constant 0 : i32
    %c0_i32_1 = arith.constant 0 : i32
    %c0_i32_2 = arith.constant 0 : i32
    return %c0_i32, %c0_i32_0, %c0_i32_1 : i32, i32, i32
  }
  func.func @transform_5(%arg0: i32) -> (i32, i32, i32) {
    %c0_i32 = arith.constant 0 : i32
    %c0_i32_0 = arith.constant 0 : i32
    %c0_i32_1 = arith.constant 0 : i32
    %c0_i32_2 = arith.constant 0 : i32
    return %c0_i32, %c0_i32_0, %c0_i32_1 : i32, i32, i32
  }
  func.func @transform_6(%arg0: i32) -> (i32, i32, i32) {
    %c0_i32 = arith.constant 0 : i32
    %c0_i32_0 = arith.constant 0 : i32
    %c0_i32_1 = arith.constant 0 : i32
    %c0_i32_2 = arith.constant 0 : i32
    return %c0_i32, %c0_i32_0, %c0_i32_1 : i32, i32, i32
  }
  func.func @transform_7(%arg0: i32) -> (i32, i32, i32) {
    %c0_i32 = arith.constant 0 : i32
    %c0_i32_0 = arith.constant 0 : i32
    %c0_i32_1 = arith.constant 0 : i32
    %c0_i32_2 = arith.constant 0 : i32
    return %c0_i32, %c0_i32_0, %c0_i32_1 : i32, i32, i32
  }
  func.func @transform_8(%arg0: i32) -> (i32, i32, i32) {
    %c0_i32 = arith.constant 0 : i32
    %c0_i32_0 = arith.constant 0 : i32
    %c0_i32_1 = arith.constant 0 : i32
    %c0_i32_2 = arith.constant 0 : i32
    return %c0_i32, %c0_i32_0, %c0_i32_1 : i32, i32, i32
  }
  func.func @transform_9(%arg0: i32) -> (i32, i32, i32) {
    %c0_i32 = arith.constant 0 : i32
    %c0_i32_0 = arith.constant 0 : i32
    %c0_i32_1 = arith.constant 0 : i32
    %c0_i32_2 = arith.constant 0 : i32
    return %c0_i32, %c0_i32_0, %c0_i32_1 : i32, i32, i32
  }
  func.func @transform_10(%arg0: i32) -> (i32, i32, i32) {
    %c0_i32 = arith.constant 0 : i32
    %c0_i32_0 = arith.constant 0 : i32
    %c0_i32_1 = arith.constant 0 : i32
    %c0_i32_2 = arith.constant 0 : i32
    return %c0_i32, %c0_i32_0, %c0_i32_1 : i32, i32, i32
  }
  func.func @transform_11(%arg0: i32) -> (i32, i32, i32) {
    %c0_i32 = arith.constant 0 : i32
    %c0_i32_0 = arith.constant 0 : i32
    %c0_i32_1 = arith.constant 0 : i32
    %c0_i32_2 = arith.constant 0 : i32
    return %c0_i32, %c0_i32_0, %c0_i32_1 : i32, i32, i32
  }
  func.func @transform_12(%arg0: i32) -> (i32, i32, i32) {
    %c0_i32 = arith.constant 0 : i32
    %c0_i32_0 = arith.constant 0 : i32
    %c0_i32_1 = arith.constant 0 : i32
    %c0_i32_2 = arith.constant 0 : i32
    return %c0_i32, %c0_i32_0, %c0_i32_1 : i32, i32, i32
  }
  func.func @transform_13(%arg0: i32) -> (i32, i32, i32) {
    %c0_i32 = arith.constant 0 : i32
    %c0_i32_0 = arith.constant 0 : i32
    %c0_i32_1 = arith.constant 0 : i32
    %c0_i32_2 = arith.constant 0 : i32
    return %c0_i32, %c0_i32_0, %c0_i32_1 : i32, i32, i32
  }
  func.func @transform_14(%arg0: i32) -> (i32, i32) {
    %c0_i32 = arith.constant 0 : i32
    %c0_i32_0 = arith.constant 0 : i32
    return %arg0, %c0_i32 : i32, i32
  }
}

</mosaic_0001>

<llo_original>
// kernel: tpu_custom_call.1
$region0: #{tpu_custom_call.1}
  #allocation0 [shape = 'u32[]', space=smem, size = 0x4, offset = 0x4, fixed_abs, tag = 'smem constant byte address 0x4 - core index']
  #allocation1 [shape = 'u32[72,128]{1,0:T(1,128)}', space=vmem, size = 0x9000, scoped, tag = 'internal scratch']
  %s0 = inlined_call_operand.hbm [shape: f32[256,128], index: 0, kind: input, shape index: {}]
  %s1 = inlined_call_operand.hbm [shape: f32[256,128], index: 1, kind: input, shape index: {}]
  %s2 = inlined_call_operand.hbm [shape: f32[3,128,128], index: 2, kind: input, shape index: {}]
  %s3 = inlined_call_operand.hbm [shape: f32[3,1,128], index: 3, kind: input, shape index: {}]
  %s4 = inlined_call_operand.hbm [shape: f32[3,128,128], index: 4, kind: input, shape index: {}]
  %s5 = inlined_call_operand.hbm [shape: f32[3,1,128], index: 5, kind: input, shape index: {}]
  %s6 = inlined_call_operand.hbm [shape: f32[3,1,128], index: 6, kind: input, shape index: {}]
  %s7 = inlined_call_operand.hbm [shape: f32[3,1,128], index: 7, kind: input, shape index: {}]
  %s8 = inlined_call_operand.hbm [shape: f32[3,128,256], index: 8, kind: input, shape index: {}]
  %s9 = inlined_call_operand.vmem [shape: f32[3,1,256], index: 9, kind: input, shape index: {}]
  %s10 = inlined_call_operand.hbm [shape: f32[3,256,128], index: 10, kind: input, shape index: {}]
  %s11 = inlined_call_operand.vmem [shape: f32[3,1,128], index: 11, kind: input, shape index: {}]
  %s12 = inlined_call_operand.hbm [shape: f32[3,1,128], index: 12, kind: input, shape index: {}]
  %s13 = inlined_call_operand.vmem [shape: f32[3,1,128], index: 13, kind: input, shape index: {}]
  %s14 = inlined_call_operand.hbm [shape: f32[256,128], index: 14, kind: output, shape index: {}]
  %s15 = sld [smem:[#allocation0]]
  $region133: #{tpu_custom_call.1} parent=0
    _
  %s17 = ssub.s32 1, %s15
  %s18 = scalar_select 0, %s17, %s15
  $region1: #{tpu_custom_call.1} parent=0
    #allocation2 [shape = 'u8[65536]{0}', space=vmem, size = 0x10000, scoped, tag = 'input window, operand 0']
    #allocation3 [shape = 's32[2]{0}', space=sflag, size = 0x8, scoped, tag = 'scoped memory for tpu_custom_call.1']
    #allocation4 [shape = 's32[2]{0}', space=sflag, size = 0x8, scoped, tag = 'scoped memory for tpu_custom_call.1']
    #allocation5 [shape = 'u8[65536]{0}', space=vmem, size = 0x10000, scoped, tag = 'input window, operand 1']
    #allocation6 [shape = 's32[2]{0}', space=sflag, size = 0x8, scoped, tag = 'scoped memory for tpu_custom_call.1']
    #allocation7 [shape = 'u8[196608]{0}', space=vmem, size = 0x30000, scoped, tag = 'input window, operand 2, single buffered']
    #allocation8 [shape = 'u8[1536]{0}', space=vmem, size = 0x800, scoped, tag = 'input window, operand 3, single buffered']
    #allocation9 [shape = 's32[1]{0}', space=sflag, size = 0x4, scoped, tag = 'scoped memory for tpu_custom_call.1']
    #allocation10 [shape = 'u8[196608]{0}', space=vmem, size = 0x30000, scoped, tag = 'input window, operand 4, single buffered']
    #allocation11 [shape = 'u8[1536]{0}', space=vmem, size = 0x800, scoped, tag = 'input window, operand 5, single buffered']
    #allocation12 [shape = 's32[1]{0}', space=sflag, size = 0x4, scoped, tag = 'scoped memory for tpu_custom_call.1']
    #allocation13 [shape = 'u8[1536]{0}', space=vmem, size = 0x800, scoped, tag = 'input window, operand 6, single buffered']
    #allocation14 [shape = 'u8[1536]{0}', space=vmem, size = 0x800, scoped, tag = 'input window, operand 7, single buffered']
    #allocation15 [shape = 's32[1]{0}', space=sflag, size = 0x4, scoped, tag = 'scoped memory for tpu_custom_call.1']
    #allocation16 [shape = 'u8[393216]{0}', space=vmem, size = 0x60000, scoped, tag = 'input window, operand 8, single buffered']
    #allocation17 [shape = 'u8[393216]{0}', space=vmem, size = 0x60000, scoped, tag = 'input window, operand 10, single buffered']
    #allocation18 [shape = 's32[1]{0}', space=sflag, size = 0x4, scoped, tag = 'scoped memory for tpu_custom_call.1']
    #allocation19 [shape = 'u8[1536]{0}', space=vmem, size = 0x800, scoped, tag = 'input window, operand 12, single buffered']
    #allocation20 [shape = 'u8[65536]{0}', space=vmem, size = 0x10000, scoped, tag = 'output window, operand 0']
    %19 = vsyncpa [#allocation3], 0
    %s20 = scalar_lea.sflag [#allocation3], 1
    %21 = vsyncpa %s20, 0
    %22 = vsyncpa [#allocation6], 0
    %s23 = scalar_lea.sflag [#allocation6], 1
    %24 = vsyncpa %s23, 0
    %25 = vsyncpa [#allocation9], 0
    %26 = vsyncpa [#allocation12], 0
    %27 = vsyncpa [#allocation15], 0
    %28 = vsyncpa [#allocation18], 0
    %29 = vsyncpa [#allocation4], 0
    %s30 = scalar_lea.sflag [#allocation4], 1
    %31 = vsyncpa %s30, 0
    loop: start=0, step=1, limit=6
    $region2: #{tpu_custom_call.1} parent=1 // loop_pre_header
      _
    $region3: #{tpu_custom_call.1} parent=1 // loop_header
      %s33 = sphi 0, %s37
      %p34 = scmp.ge.s32.totalorder %s33, 6
      %s43 = sphi 0, %s45
      %s46 = sphi 0, %s43
      %s47 = sphi 0, %s46
      %s63 = sphi 0, %s47
      %s69 = sphi 0, %s71
      %s72 = sphi 0, %s69
      %s73 = sphi 0, %s72
      %s89 = sphi 0, %s73
      %s93 = sphi 0, %s93
      %s95 = sphi 0, %s93
      %s96 = sphi 0, %s95
      %s110 = sphi 0, %s96
      %s114 = sphi 0, %s114
      %s116 = sphi 0, %s114
      %s117 = sphi 0, %s116
      %s131 = sphi 0, %s117
      %s135 = sphi 0, %s135
      %s137 = sphi 0, %s135
      %s138 = sphi 0, %s137
      %s152 = sphi 0, %s138
      %s156 = sphi 0, %s156
      %s158 = sphi 0, %s156
      %s159 = sphi 0, %s158
      %s173 = sphi 0, %s159
      %s177 = sphi 0, %s177
      %s179 = sphi 0, %s177
      %s180 = sphi 0, %s179
      %s194 = sphi 0, %s180
      %s198 = sphi 0, %s198
      %s200 = sphi 0, %s198
      %s201 = sphi 0, %s200
      %s215 = sphi 0, %s201
      %s219 = sphi 0, %s219
      %s221 = sphi 0, %s219
      %s222 = sphi 0, %s221
      %s236 = sphi 0, %s222
      %s240 = sphi 0, %s240
      %s242 = sphi 0, %s240
      %s243 = sphi 0, %s242
      %s257 = sphi 0, %s243
      %s261 = sphi 0, %s261
      %s263 = sphi 0, %s261
      %s264 = sphi 0, %s263
      %s278 = sphi 0, %s264
      %s282 = sphi 0, %s282
      %s284 = sphi 0, %s282
      %s285 = sphi 0, %s284
      %s299 = sphi 0, %s285
      %s303 = sphi 0, %s303
      %s305 = sphi 0, %s303
      %s306 = sphi 0, %s305
      %s320 = sphi 0, %s306
      %s324 = sphi 0, %s324
      %s326 = sphi 0, %s324
      %s327 = sphi 0, %s326
      %s341 = sphi 0, %s327
      %s347 = sphi 0, %s349
      %s350 = sphi 0, %s347
      %s351 = sphi 0, %s350
      %s367 = sphi 0, %s351
    $region4: #{tpu_custom_call.1} parent=1 // loop_header_branch
      %36 = sbr.rel (%p34) target = $region8
    $region5: #{tpu_custom_call.1} parent=1 // loop_body
      %s38 = ssub.s32 %s33, 1
      %s39 = ssub.s32 %s33, 2
      %s40 = sadd.s32 %s33, 1
      %s41 = ssub.s32 %s33, %s40
      %p42 = scmp.eq.s32.totalorder %s41, 0
      %s44 = sadd.s32 %s43, 1
      %s45 = scalar_select %p42, %s43, %s44
      %p48 = pneg %p42
      %p49 = scmp.eq.s32.totalorder %s33, 3
      %p50 = por %p48, %p49
      %p51 = scmp.ne.s32.totalorder %s43, %s46
      %p52 = scmp.eq.s32.totalorder %s33, 0
      %p53 = por %p51, %p52
      %p54 = scmp.ne.s32.totalorder %s43, %s46
      %p55 = scmp.eq.s32.totalorder %s38, 3
      %p56 = por %p54, %p55
      %p57 = scmp.ne.s32.totalorder %s46, %s47
      %p58 = scmp.eq.s32.totalorder %s38, 0
      %p59 = por %p57, %p58
      %p60 = scmp.ne.s32.totalorder %s46, %s47
      %p61 = scmp.eq.s32.totalorder %s39, 3
      %p62 = por %p60, %p61
      %p64 = scmp.ne.s32.totalorder %s47, %s63
      %p65 = scmp.eq.s32.totalorder %s39, 0
      %p66 = por %p64, %p65
      %s67 = ssub.s32 %s33, %s40
      %p68 = scmp.eq.s32.totalorder %s67, 0
      %s70 = sadd.s32 %s69, 1
      %s71 = scalar_select %p68, %s69, %s70
      %p74 = pneg %p68
      %p75 = scmp.eq.s32.totalorder %s33, 3
      %p76 = por %p74, %p75
      %p77 = scmp.ne.s32.totalorder %s69, %s72
      %p78 = scmp.eq.s32.totalorder %s33, 0
      %p79 = por %p77, %p78
      %p80 = scmp.ne.s32.totalorder %s69, %s72
      %p81 = scmp.eq.s32.totalorder %s38, 3
      %p82 = por %p80, %p81
      %p83 = scmp.ne.s32.totalorder %s72, %s73
      %p84 = scmp.eq.s32.totalorder %s38, 0
      %p85 = por %p83, %p84
      %p86 = scmp.ne.s32.totalorder %s72, %s73
      %p87 = scmp.eq.s32.totalorder %s39, 3
      %p88 = por %p86, %p87
      %p90 = scmp.ne.s32.totalorder %s73, %s89
      %p91 = scmp.eq.s32.totalorder %s39, 0
      %p92 = por %p90, %p91
      %s94 = sadd.s32 %s93, 1
      %p97 = scmp.eq.s32.totalorder %s33, 3
      %p98 = scmp.ne.s32.totalorder %s93, %s95
      %p99 = scmp.eq.s32.totalorder %s33, 0
      %p100 = por %p98, %p99
      %p101 = scmp.ne.s32.totalorder %s93, %s95
      %p102 = scmp.eq.s32.totalorder %s38, 3
      %p103 = por %p101, %p102
      %p104 = scmp.ne.s32.totalorder %s95, %s96
      %p105 = scmp.eq.s32.totalorder %s38, 0
      %p106 = por %p104, %p105
      %p107 = scmp.ne.s32.totalorder %s95, %s96
      %p108 = scmp.eq.s32.totalorder %s39, 3
      %p109 = por %p107, %p108
      %p111 = scmp.ne.s32.totalorder %s96, %s110
      %p112 = scmp.eq.s32.totalorder %s39, 0
      %p113 = por %p111, %p112
      %s115 = sadd.s32 %s114, 1
      %p118 = scmp.eq.s32.totalorder %s33, 3
      %p119 = scmp.ne.s32.totalorder %s114, %s116
      %p120 = scmp.eq.s32.totalorder %s33, 0
      %p121 = por %p119, %p120
      %p122 = scmp.ne.s32.totalorder %s114, %s116
      %p123 = scmp.eq.s32.totalorder %s38, 3
      %p124 = por %p122, %p123
      %p125 = scmp.ne.s32.totalorder %s116, %s117
      %p126 = scmp.eq.s32.totalorder %s38, 0
      %p127 = por %p125, %p126
      %p128 = scmp.ne.s32.totalorder %s116, %s117
      %p129 = scmp.eq.s32.totalorder %s39, 3
      %p130 = por %p128, %p129
      %p132 = scmp.ne.s32.totalorder %s117, %s131
      %p133 = scmp.eq.s32.totalorder %s39, 0
      %p134 = por %p132, %p133
      %s136 = sadd.s32 %s135, 1
      %p139 = scmp.eq.s32.totalorder %s33, 3
      %p140 = scmp.ne.s32.totalorder %s135, %s137
      %p141 = scmp.eq.s32.totalorder %s33, 0
      %p142 = por %p140, %p141
      %p143 = scmp.ne.s32.totalorder %s135, %s137
      %p144 = scmp.eq.s32.totalorder %s38, 3
      %p145 = por %p143, %p144
      %p146 = scmp.ne.s32.totalorder %s137, %s138
      %p147 = scmp.eq.s32.totalorder %s38, 0
      %p148 = por %p146, %p147
      %p149 = scmp.ne.s32.totalorder %s137, %s138
      %p150 = scmp.eq.s32.totalorder %s39, 3
      %p151 = por %p149, %p150
      %p153 = scmp.ne.s32.totalorder %s138, %s152
      %p154 = scmp.eq.s32.totalorder %s39, 0
      %p155 = por %p153, %p154
      %s157 = sadd.s32 %s156, 1
      %p160 = scmp.eq.s32.totalorder %s33, 3
      %p161 = scmp.ne.s32.totalorder %s156, %s158
      %p162 = scmp.eq.s32.totalorder %s33, 0
      %p163 = por %p161, %p162
      %p164 = scmp.ne.s32.totalorder %s156, %s158
      %p165 = scmp.eq.s32.totalorder %s38, 3
      %p166 = por %p164, %p165
      %p167 = scmp.ne.s32.totalorder %s158, %s159
      %p168 = scmp.eq.s32.totalorder %s38, 0
      %p169 = por %p167, %p168
      %p170 = scmp.ne.s32.totalorder %s158, %s159
      %p171 = scmp.eq.s32.totalorder %s39, 3
      %p172 = por %p170, %p171
      %p174 = scmp.ne.s32.totalorder %s159, %s173
      %p175 = scmp.eq.s32.totalorder %s39, 0
      %p176 = por %p174, %p175
      %s178 = sadd.s32 %s177, 1
      %p181 = scmp.eq.s32.totalorder %s33, 3
      %p182 = scmp.ne.s32.totalorder %s177, %s179
      %p183 = scmp.eq.s32.totalorder %s33, 0
      %p184 = por %p182, %p183
      %p185 = scmp.ne.s32.totalorder %s177, %s179
      %p186 = scmp.eq.s32.totalorder %s38, 3
      %p187 = por %p185, %p186
      %p188 = scmp.ne.s32.totalorder %s179, %s180
      %p189 = scmp.eq.s32.totalorder %s38, 0
      %p190 = por %p188, %p189
      %p191 = scmp.ne.s32.totalorder %s179, %s180
      %p192 = scmp.eq.s32.totalorder %s39, 3
      %p193 = por %p191, %p192
      %p195 = scmp.ne.s32.totalorder %s180, %s194
      %p196 = scmp.eq.s32.totalorder %s39, 0
      %p197 = por %p195, %p196
      %s199 = sadd.s32 %s198, 1
      %p202 = scmp.eq.s32.totalorder %s33, 3
      %p203 = scmp.ne.s32.totalorder %s198, %s200
      %p204 = scmp.eq.s32.totalorder %s33, 0
      %p205 = por %p203, %p204
      %p206 = scmp.ne.s32.totalorder %s198, %s200
      %p207 = scmp.eq.s32.totalorder %s38, 3
      %p208 = por %p206, %p207
      %p209 = scmp.ne.s32.totalorder %s200, %s201
      %p210 = scmp.eq.s32.totalorder %s38, 0
      %p211 = por %p209, %p210
      %p212 = scmp.ne.s32.totalorder %s200, %s201
      %p213 = scmp.eq.s32.totalorder %s39, 3
      %p214 = por %p212, %p213
      %p216 = scmp.ne.s32.totalorder %s201, %s215
      %p217 = scmp.eq.s32.totalorder %s39, 0
      %p218 = por %p216, %p217
      %s220 = sadd.s32 %s219, 1
      %p223 = scmp.eq.s32.totalorder %s33, 3
      %p224 = scmp.ne.s32.totalorder %s219, %s221
      %p225 = scmp.eq.s32.totalorder %s33, 0
      %p226 = por %p224, %p225
      %p227 = scmp.ne.s32.totalorder %s219, %s221
      %p228 = scmp.eq.s32.totalorder %s38, 3
      %p229 = por %p227, %p228
      %p230 = scmp.ne.s32.totalorder %s221, %s222
      %p231 = scmp.eq.s32.totalorder %s38, 0
      %p232 = por %p230, %p231
      %p233 = scmp.ne.s32.totalorder %s221, %s222
      %p234 = scmp.eq.s32.totalorder %s39, 3
      %p235 = por %p233, %p234
      %p237 = scmp.ne.s32.totalorder %s222, %s236
      %p238 = scmp.eq.s32.totalorder %s39, 0
      %p239 = por %p237, %p238
      %s241 = sadd.s32 %s240, 1
      %p244 = scmp.eq.s32.totalorder %s33, 3
      %p245 = scmp.ne.s32.totalorder %s240, %s242
      %p246 = scmp.eq.s32.totalorder %s33, 0
      %p247 = por %p245, %p246
      %p248 = scmp.ne.s32.totalorder %s240, %s242
      %p249 = scmp.eq.s32.totalorder %s38, 3
      %p250 = por %p248, %p249
      %p251 = scmp.ne.s32.totalorder %s242, %s243
      %p252 = scmp.eq.s32.totalorder %s38, 0
      %p253 = por %p251, %p252
      %p254 = scmp.ne.s32.totalorder %s242, %s243
      %p255 = scmp.eq.s32.totalorder %s39, 3
      %p256 = por %p254, %p255
      %p258 = scmp.ne.s32.totalorder %s243, %s257
      %p259 = scmp.eq.s32.totalorder %s39, 0
      %p260 = por %p258, %p259
      %s262 = sadd.s32 %s261, 1
      %p265 = scmp.eq.s32.totalorder %s33, 3
      %p266 = scmp.ne.s32.totalorder %s261, %s263
      %p267 = scmp.eq.s32.totalorder %s33, 0
      %p268 = por %p266, %p267
      %p269 = scmp.ne.s32.totalorder %s261, %s263
      %p270 = scmp.eq.s32.totalorder %s38, 3
      %p271 = por %p269, %p270
      %p272 = scmp.ne.s32.totalorder %s263, %s264
      %p273 = scmp.eq.s32.totalorder %s38, 0
      %p274 = por %p272, %p273
      %p275 = scmp.ne.s32.totalorder %s263, %s264
      %p276 = scmp.eq.s32.totalorder %s39, 3
      %p277 = por %p275, %p276
      %p279 = scmp.ne.s32.totalorder %s264, %s278
      %p280 = scmp.eq.s32.totalorder %s39, 0
      %p281 = por %p279, %p280
      %s283 = sadd.s32 %s282, 1
      %p286 = scmp.eq.s32.totalorder %s33, 3
      %p287 = scmp.ne.s32.totalorder %s282, %s284
      %p288 = scmp.eq.s32.totalorder %s33, 0
      %p289 = por %p287, %p288
      %p290 = scmp.ne.s32.totalorder %s282, %s284
      %p291 = scmp.eq.s32.totalorder %s38, 3
      %p292 = por %p290, %p291
      %p293 = scmp.ne.s32.totalorder %s284, %s285
      %p294 = scmp.eq.s32.totalorder %s38, 0
      %p295 = por %p293, %p294
      %p296 = scmp.ne.s32.totalorder %s284, %s285
      %p297 = scmp.eq.s32.totalorder %s39, 3
      %p298 = por %p296, %p297
      %p300 = scmp.ne.s32.totalorder %s285, %s299
      %p301 = scmp.eq.s32.totalorder %s39, 0
      %p302 = por %p300, %p301
      %s304 = sadd.s32 %s303, 1
      %p307 = scmp.eq.s32.totalorder %s33, 3
      %p308 = scmp.ne.s32.totalorder %s303, %s305
      %p309 = scmp.eq.s32.totalorder %s33, 0
      %p310 = por %p308, %p309
      %p311 = scmp.ne.s32.totalorder %s303, %s305
      %p312 = scmp.eq.s32.totalorder %s38, 3
      %p313 = por %p311, %p312
      %p314 = scmp.ne.s32.totalorder %s305, %s306
      %p315 = scmp.eq.s32.totalorder %s38, 0
      %p316 = por %p314, %p315
      %p317 = scmp.ne.s32.totalorder %s305, %s306
      %p318 = scmp.eq.s32.totalorder %s39, 3
      %p319 = por %p317, %p318
      %p321 = scmp.ne.s32.totalorder %s306, %s320
      %p322 = scmp.eq.s32.totalorder %s39, 0
      %p323 = por %p321, %p322
      %s325 = sadd.s32 %s324, 1
      %p328 = scmp.eq.s32.totalorder %s33, 3
      %p329 = scmp.ne.s32.totalorder %s324, %s326
      %p330 = scmp.eq.s32.totalorder %s33, 0
      %p331 = por %p329, %p330
      %p332 = scmp.ne.s32.totalorder %s324, %s326
      %p333 = scmp.eq.s32.totalorder %s38, 3
      %p334 = por %p332, %p333
      %p335 = scmp.ne.s32.totalorder %s326, %s327
      %p336 = scmp.eq.s32.totalorder %s38, 0
      %p337 = por %p335, %p336
      %p338 = scmp.ne.s32.totalorder %s326, %s327
      %p339 = scmp.eq.s32.totalorder %s39, 3
      %p340 = por %p338, %p339
      %p342 = scmp.ne.s32.totalorder %s327, %s341
      %p343 = scmp.eq.s32.totalorder %s39, 0
      %p344 = por %p342, %p343
      %s345 = ssub.s32 %s33, %s40
      %p346 = scmp.eq.s32.totalorder %s345, 0
      %s348 = sadd.s32 %s347, 1
      %s349 = scalar_select %p346, %s347, %s348
      %p352 = pneg %p346
      %p353 = scmp.eq.s32.totalorder %s33, 3
      %p354 = por %p352, %p353
      %p355 = scmp.ne.s32.totalorder %s347, %s350
      %p356 = scmp.eq.s32.totalorder %s33, 0
      %p357 = por %p355, %p356
      %p358 = scmp.ne.s32.totalorder %s347, %s350
      %p359 = scmp.eq.s32.totalorder %s38, 3
      %p360 = por %p358, %p359
      %p361 = scmp.ne.s32.totalorder %s350, %s351
      %p362 = scmp.eq.s32.totalorder %s38, 0
      %p363 = por %p361, %p362
      %p364 = scmp.ne.s32.totalorder %s350, %s351
      %p365 = scmp.eq.s32.totalorder %s39, 3
      %p366 = por %p364, %p365
      %p368 = scmp.ne.s32.totalorder %s351, %s367
      %p369 = scmp.eq.s32.totalorder %s39, 0
      %p370 = por %p368, %p369
      %p371 = scmp.le.s32.totalorder 1, %s33
      %p372 = scmp.lt.s32.totalorder %s33, 5
      %p373 = pnand %p371, %p372
      %p374 = pneg %p373
      // Predicated region
      $region9: #{tpu_custom_call.1} parent=5 // pred_check
        _
      $region10: #{tpu_custom_call.1} parent=5 // pred_check_branch
        %376 = sbr.rel (%p373) target = $region12
      $region11: #{tpu_custom_call.1} parent=5 // pred_region
        %s377 = ssub.s32 %s33, 1
        // Predicated region
        $region13: #{tpu_custom_call.1} parent=11 // pred_check
          %p378 = pneg %p106
        $region14: #{tpu_custom_call.1} parent=11 // pred_check_branch
          %380 = sbr.rel (%p378) target = $region16
        $region15: #{tpu_custom_call.1} parent=11 // pred_region
          %382 = vsyncadd [#allocation6], 0
          %s383 = sshll.u32 %s2, 4
          %s384 = int_to_ptr.hbm [resolvable:$true] %s383
          %s385 = sshll.u32 [#allocation7], 4
          %s386 = int_to_ptr.vmem [resolvable:$true] %s385
          %391 = dma.hbm_to_vmem [thread:$0]  %s384, 6144, %s386, [#allocation6], 128, 128, 8
        $region16: #{tpu_custom_call.1} parent=11 // pred_fallthru
          _
        // Predicated region
        $region17: #{tpu_custom_call.1} parent=11 // pred_check
          %p392 = pneg %p127
        $region18: #{tpu_custom_call.1} parent=11 // pred_check_branch
          %394 = sbr.rel (%p392) target = $region20
        $region19: #{tpu_custom_call.1} parent=11 // pred_region
          %396 = vsyncadd [#allocation9], 0
          %s397 = sshll.u32 %s3, 4
          %s398 = int_to_ptr.hbm [resolvable:$true] %s397
          %s399 = sshll.u32 [#allocation8], 4
          %s400 = int_to_ptr.vmem [resolvable:$true] %s399
          %405 = dma.hbm_to_vmem [thread:$0]  %s398, 48, %s400, [#allocation9], 16, 16, 1
        $region20: #{tpu_custom_call.1} parent=11 // pred_fallthru
          _
        // Predicated region
        $region21: #{tpu_custom_call.1} parent=11 // pred_check
          %p406 = pneg %p148
        $region22: #{tpu_custom_call.1} parent=11 // pred_check_branch
          %408 = sbr.rel (%p406) target = $region24
        $region23: #{tpu_custom_call.1} parent=11 // pred_region
          %410 = vsyncadd [#allocation9], 0
          %s411 = sshll.u32 %s4, 4
          %s412 = int_to_ptr.hbm [resolvable:$true] %s411
          %s413 = sshll.u32 [#allocation10], 4
          %s414 = int_to_ptr.vmem [resolvable:$true] %s413
          %419 = dma.hbm_to_vmem [thread:$0]  %s412, 6144, %s414, [#allocation9], 128, 128, 8
        $region24: #{tpu_custom_call.1} parent=11 // pred_fallthru
          _
        // Predicated region
        $region25: #{tpu_custom_call.1} parent=11 // pred_check
          %p420 = pneg %p169
        $region26: #{tpu_custom_call.1} parent=11 // pred_check_branch
          %422 = sbr.rel (%p420) target = $region28
        $region27: #{tpu_custom_call.1} parent=11 // pred_region
          %424 = vsyncadd [#allocation12], 0
          %s425 = sshll.u32 %s5, 4
          %s426 = int_to_ptr.hbm [resolvable:$true] %s425
          %s427 = sshll.u32 [#allocation11], 4
          %s428 = int_to_ptr.vmem [resolvable:$true] %s427
          %433 = dma.hbm_to_vmem [thread:$0]  %s426, 48, %s428, [#allocation12], 16, 16, 1
        $region28: #{tpu_custom_call.1} parent=11 // pred_fallthru
          _
        // Predicated region
        $region29: #{tpu_custom_call.1} parent=11 // pred_check
          %p434 = pneg %p190
        $region30: #{tpu_custom_call.1} parent=11 // pred_check_branch
          %436 = sbr.rel (%p434) target = $region32
        $region31: #{tpu_custom_call.1} parent=11 // pred_region
          %438 = vsyncadd [#allocation12], 0
          %s439 = sshll.u32 %s6, 4
          %s440 = int_to_ptr.hbm [resolvable:$true] %s439
          %s441 = sshll.u32 [#allocation13], 4
          %s442 = int_to_ptr.vmem [resolvable:$true] %s441
          %447 = dma.hbm_to_vmem [thread:$0]  %s440, 48, %s442, [#allocation12], 16, 16, 1
        $region32: #{tpu_custom_call.1} parent=11 // pred_fallthru
          _
        // Predicated region
        $region33: #{tpu_custom_call.1} parent=11 // pred_check
          %p448 = pneg %p211
        $region34: #{tpu_custom_call.1} parent=11 // pred_check_branch
          %450 = sbr.rel (%p448) target = $region36
        $region35: #{tpu_custom_call.1} parent=11 // pred_region
          %452 = vsyncadd [#allocation15], 0
          %s453 = sshll.u32 %s7, 4
          %s454 = int_to_ptr.hbm [resolvable:$true] %s453
          %s455 = sshll.u32 [#allocation14], 4
          %s456 = int_to_ptr.vmem [resolvable:$true] %s455
          %461 = dma.hbm_to_vmem [thread:$0]  %s454, 48, %s456, [#allocation15], 16, 16, 1
        $region36: #{tpu_custom_call.1} parent=11 // pred_fallthru
          _
        // Predicated region
        $region37: #{tpu_custom_call.1} parent=11 // pred_check
          %p462 = pneg %p232
        $region38: #{tpu_custom_call.1} parent=11 // pred_check_branch
          %464 = sbr.rel (%p462) target = $region40
        $region39: #{tpu_custom_call.1} parent=11 // pred_region
          %466 = vsyncadd [#allocation15], 0
          %s467 = sshll.u32 %s8, 4
          %s468 = int_to_ptr.hbm [resolvable:$true] %s467
          %s469 = sshll.u32 [#allocation16], 4
          %s470 = int_to_ptr.vmem [resolvable:$true] %s469
          %475 = dma.hbm_to_vmem [thread:$0]  %s468, 12288, %s470, [#allocation15], 256, 256, 16
        $region40: #{tpu_custom_call.1} parent=11 // pred_fallthru
          _
        // Predicated region
        $region41: #{tpu_custom_call.1} parent=11 // pred_check
          %p476 = pneg %p253
        $region42: #{tpu_custom_call.1} parent=11 // pred_check_branch
          %478 = sbr.rel (%p476) target = $region44
        $region43: #{tpu_custom_call.1} parent=11 // pred_region
          _
        $region44: #{tpu_custom_call.1} parent=11 // pred_fallthru
          _
        // Predicated region
        $region45: #{tpu_custom_call.1} parent=11 // pred_check
          %p479 = pneg %p274
        $region46: #{tpu_custom_call.1} parent=11 // pred_check_branch
          %481 = sbr.rel (%p479) target = $region48
        $region47: #{tpu_custom_call.1} parent=11 // pred_region
          %483 = vsyncadd [#allocation18], 0
          %s484 = sshll.u32 %s10, 4
          %s485 = int_to_ptr.hbm [resolvable:$true] %s484
          %s486 = sshll.u32 [#allocation17], 4
          %s487 = int_to_ptr.vmem [resolvable:$true] %s486
          %492 = dma.hbm_to_vmem [thread:$0]  %s485, 12288, %s487, [#allocation18], 128, 128, 8
        $region48: #{tpu_custom_call.1} parent=11 // pred_fallthru
          _
        // Predicated region
        $region49: #{tpu_custom_call.1} parent=11 // pred_check
          %p493 = pneg %p295
        $region50: #{tpu_custom_call.1} parent=11 // pred_check_branch
          %495 = sbr.rel (%p493) target = $region52
        $region51: #{tpu_custom_call.1} parent=11 // pred_region
          _
        $region52: #{tpu_custom_call.1} parent=11 // pred_fallthru
          _
        // Predicated region
        $region53: #{tpu_custom_call.1} parent=11 // pred_check
          %p496 = pneg %p316
        $region54: #{tpu_custom_call.1} parent=11 // pred_check_branch
          %498 = sbr.rel (%p496) target = $region56
        $region55: #{tpu_custom_call.1} parent=11 // pred_region
          %500 = vsyncadd [#allocation18], 0
          %s501 = sshll.u32 %s12, 4
          %s502 = int_to_ptr.hbm [resolvable:$true] %s501
          %s503 = sshll.u32 [#allocation19], 4
          %s504 = int_to_ptr.vmem [resolvable:$true] %s503
          %509 = dma.hbm_to_vmem [thread:$0]  %s502, 48, %s504, [#allocation18], 16, 16, 1
        $region56: #{tpu_custom_call.1} parent=11 // pred_fallthru
          _
        // Predicated region
        $region57: #{tpu_custom_call.1} parent=11 // pred_check
          %p510 = pneg %p337
        $region58: #{tpu_custom_call.1} parent=11 // pred_check_branch
          %512 = sbr.rel (%p510) target = $region60
        $region59: #{tpu_custom_call.1} parent=11 // pred_region
          _
        $region60: #{tpu_custom_call.1} parent=11 // pred_fallthru
          _
      $region12: #{tpu_custom_call.1} parent=5 // pred_fallthru
        _
      %p513 = scmp.lt.s32.totalorder %s33, 4
      // Predicated region
      $region61: #{tpu_custom_call.1} parent=5 // pred_check
        %p514 = pneg %p513
      $region62: #{tpu_custom_call.1} parent=5 // pred_check_branch
        %516 = sbr.rel (%p514) target = $region64
      $region63: #{tpu_custom_call.1} parent=5 // pred_region
        // Predicated region
        $region65: #{tpu_custom_call.1} parent=63 // pred_check
          %p517 = pneg %p53
        $region66: #{tpu_custom_call.1} parent=63 // pred_check_branch
          %519 = sbr.rel (%p517) target = $region68
        $region67: #{tpu_custom_call.1} parent=63 // pred_region
          %s520 = sand.u32 %s43, 1
          %s521 = scalar_lea.sflag [#allocation3], %s520
          %s522 = sand.u32 %s43, 1
          %s523 = smul.addr %s522, 64
          %s524 = scalar_lea.vmem [#allocation2], %s523
          %s525 = smul.u32 8, %s33
          %527 = vsyncadd %s521, 0
          %s528 = smul.addr %s525, 8
          %s529 = scalar_lea.hbm %s0, %s528
          %s530 = sshll.u32 %s529, 4
          %s531 = int_to_ptr.hbm [resolvable:$true] %s530
          %s532 = sshll.u32 %s524, 4
          %s533 = int_to_ptr.vmem [resolvable:$true] %s532
          %538 = dma.hbm_to_vmem [thread:$0]  %s531, 1024, %s533, %s521, 128, 128, 8
        $region68: #{tpu_custom_call.1} parent=63 // pred_fallthru
          _
        // Predicated region
        $region69: #{tpu_custom_call.1} parent=63 // pred_check
          %p539 = pneg %p79
        $region70: #{tpu_custom_call.1} parent=63 // pred_check_branch
          %541 = sbr.rel (%p539) target = $region72
        $region71: #{tpu_custom_call.1} parent=63 // pred_region
          %s542 = sand.u32 %s33, 1
          %s543 = scalar_lea.sflag [#allocation6], %s542
          %s544 = sand.u32 %s69, 1
          %s545 = smul.addr %s544, 64
          %s546 = scalar_lea.vmem [#allocation5], %s545
          %s547 = smul.u32 8, %s33
          %549 = vsyncadd %s543, 0
          %s550 = smul.addr %s547, 8
          %s551 = scalar_lea.hbm %s1, %s550
          %s552 = sshll.u32 %s551, 4
          %s553 = int_to_ptr.hbm [resolvable:$true] %s552
          %s554 = sshll.u32 %s546, 4
          %s555 = int_to_ptr.vmem [resolvable:$true] %s554
          %560 = dma.hbm_to_vmem [thread:$0]  %s553, 1024, %s555, %s543, 128, 128, 8
        $region72: #{tpu_custom_call.1} parent=63 // pred_fallthru
          _
      $region64: #{tpu_custom_call.1} parent=5 // pred_fallthru
        _
      %p561 = scmp.le.s32.totalorder 1, %s33
      %p562 = scmp.lt.s32.totalorder %s33, 5
      %p563 = pnand %p561, %p562
      %p564 = pneg %p563
      // Predicated region
      $region73: #{tpu_custom_call.1} parent=5 // pred_check
        _
      $region74: #{tpu_custom_call.1} parent=5 // pred_check_branch
        %566 = sbr.rel (%p563) target = $region76
      $region75: #{tpu_custom_call.1} parent=5 // pred_region
        %s567 = ssub.s32 %s33, 1
        %s568 = sand.u32 %s46, 1
        %s569 = scalar_lea.sflag [#allocation3], %s568
        %s570 = sand.u32 %s46, 1
        %s571 = smul.addr %s570, 64
        %s572 = scalar_lea.vmem [#allocation2], %s571
        // Predicated region
        $region77: #{tpu_custom_call.1} parent=75 // pred_check
          %p573 = pneg %p59
        $region78: #{tpu_custom_call.1} parent=75 // pred_check_branch
          %575 = sbr.rel (%p573) target = $region80
        $region79: #{tpu_custom_call.1} parent=75 // pred_region
          %577 = dma.done %s569, 1024
        $region80: #{tpu_custom_call.1} parent=75 // pred_fallthru
          _
        %s578 = sand.u32 %s38, 1
        %s579 = scalar_lea.sflag [#allocation6], %s578
        %s580 = sand.u32 %s72, 1
        %s581 = smul.addr %s580, 64
        %s582 = scalar_lea.vmem [#allocation5], %s581
        // Predicated region
        $region81: #{tpu_custom_call.1} parent=75 // pred_check
          %p583 = pneg %p85
        $region82: #{tpu_custom_call.1} parent=75 // pred_check_branch
          %585 = sbr.rel (%p583) target = $region84
        $region83: #{tpu_custom_call.1} parent=75 // pred_region
          %587 = dma.done %s579, 1024
        $region84: #{tpu_custom_call.1} parent=75 // pred_fallthru
          _
        // Predicated region
        $region85: #{tpu_custom_call.1} parent=75 // pred_check
          %p588 = pneg %p106
        $region86: #{tpu_custom_call.1} parent=75 // pred_check_branch
          %590 = sbr.rel (%p588) target = $region88
        $region87: #{tpu_custom_call.1} parent=75 // pred_region
          %592 = dma.done [#allocation6], 6144
        $region88: #{tpu_custom_call.1} parent=75 // pred_fallthru
          _
        // Predicated region
        $region89: #{tpu_custom_call.1} parent=75 // pred_check
          %p593 = pneg %p127
        $region90: #{tpu_custom_call.1} parent=75 // pred_check_branch
          %595 = sbr.rel (%p593) target = $region92
        $region91: #{tpu_custom_call.1} parent=75 // pred_region
          %597 = dma.done [#allocation9], 48
        $region92: #{tpu_custom_call.1} parent=75 // pred_fallthru
          _
        // Predicated region
        $region93: #{tpu_custom_call.1} parent=75 // pred_check
          %p598 = pneg %p148
        $region94: #{tpu_custom_call.1} parent=75 // pred_check_branch
          %600 = sbr.rel (%p598) target = $region96
        $region95: #{tpu_custom_call.1} parent=75 // pred_region
          %602 = dma.done [#allocation9], 6144
        $region96: #{tpu_custom_call.1} parent=75 // pred_fallthru
          _
        // Predicated region
        $region97: #{tpu_custom_call.1} parent=75 // pred_check
          %p603 = pneg %p169
        $region98: #{tpu_custom_call.1} parent=75 // pred_check_branch
          %605 = sbr.rel (%p603) target = $region100
        $region99: #{tpu_custom_call.1} parent=75 // pred_region
          %607 = dma.done [#allocation12], 48
        $region100: #{tpu_custom_call.1} parent=75 // pred_fallthru
          _
        // Predicated region
        $region101: #{tpu_custom_call.1} parent=75 // pred_check
          %p608 = pneg %p190
        $region102: #{tpu_custom_call.1} parent=75 // pred_check_branch
          %610 = sbr.rel (%p608) target = $region104
        $region103: #{tpu_custom_call.1} parent=75 // pred_region
          %612 = dma.done [#allocation12], 48
        $region104: #{tpu_custom_call.1} parent=75 // pred_fallthru
          _
        // Predicated region
        $region105: #{tpu_custom_call.1} parent=75 // pred_check
          %p613 = pneg %p211
        $region106: #{tpu_custom_call.1} parent=75 // pred_check_branch
          %615 = sbr.rel (%p613) target = $region108
        $region107: #{tpu_custom_call.1} parent=75 // pred_region
          %617 = dma.done [#allocation15], 48
        $region108: #{tpu_custom_call.1} parent=75 // pred_fallthru
          _
        // Predicated region
        $region109: #{tpu_custom_call.1} parent=75 // pred_check
          %p618 = pneg %p232
        $region110: #{tpu_custom_call.1} parent=75 // pred_check_branch
          %620 = sbr.rel (%p618) target = $region112
        $region111: #{tpu_custom_call.1} parent=75 // pred_region
          %622 = dma.done [#allocation15], 12288
        $region112: #{tpu_custom_call.1} parent=75 // pred_fallthru
          _
        // Predicated region
        $region113: #{tpu_custom_call.1} parent=75 // pred_check
          %p623 = pneg %p274
        $region114: #{tpu_custom_call.1} parent=75 // pred_check_branch
          %625 = sbr.rel (%p623) target = $region116
        $region115: #{tpu_custom_call.1} parent=75 // pred_region
          %627 = dma.done [#allocation18], 12288
        $region116: #{tpu_custom_call.1} parent=75 // pred_fallthru
          _
        // Predicated region
        $region117: #{tpu_custom_call.1} parent=75 // pred_check
          %p628 = pneg %p316
        $region118: #{tpu_custom_call.1} parent=75 // pred_check_branch
          %630 = sbr.rel (%p628) target = $region120
        $region119: #{tpu_custom_call.1} parent=75 // pred_region
          %632 = dma.done [#allocation18], 48
        $region120: #{tpu_custom_call.1} parent=75 // pred_fallthru
          _
        %s633 = sand.u32 %s46, 1
        %s634 = scalar_lea.sflag [#allocation3], %s633
        %s635 = sand.u32 %s46, 1
        %s636 = smul.addr %s635, 64
        %s637 = scalar_lea.vmem [#allocation2], %s636
        %p638 = pneg %p59
        %p639 = pneg %p56
        %s640 = sand.u32 %s38, 1
        %s641 = scalar_lea.sflag [#allocation6], %s640
        %s642 = sand.u32 %s72, 1
        %s643 = smul.addr %s642, 64
        %s644 = scalar_lea.vmem [#allocation5], %s643
        %p645 = pneg %p85
        %p646 = pneg %p82
        %p647 = pneg %p106
        %p648 = pneg %p103
        %p649 = pneg %p127
        %p650 = pneg %p124
        %p651 = pneg %p148
        %p652 = pneg %p145
        %p653 = pneg %p169
        %p654 = pneg %p166
        %p655 = pneg %p190
        %p656 = pneg %p187
        %p657 = pneg %p211
        %p658 = pneg %p208
        %p659 = pneg %p232
        %p660 = pneg %p229
        %p661 = pneg %p253
        %p662 = pneg %p250
        %p663 = pneg %p274
        %p664 = pneg %p271
        %p665 = pneg %p295
        %p666 = pneg %p292
        %p667 = pneg %p316
        %p668 = pneg %p313
        %p669 = pneg %p337
        %p670 = pneg %p334
        %p671 = pneg %p363
        %p672 = pneg %p360
        %s673 = sand.u32 %s350, 1
        %s674 = scalar_lea.sflag [#allocation4], %s673
        %s675 = sand.u32 %s350, 1
        %s676 = smul.addr %s675, 64
        %s677 = scalar_lea.vmem [#allocation20], %s676
        %s678 = smul.u32 8, %s38
        %s679 = smul.u32 8, %s38
        %s680 = smul.u32 8, %s38
        %v681 = vld [vmem:[%s572] sm:$0xff]
        %v682 = vld [vmem:[%s572 + $0x8] sm:$0xff]
        %v683 = vld [vmem:[%s572 + $0x10] sm:$0xff]
        %v684 = vld [vmem:[%s572 + $0x18] sm:$0xff]
        %v685 = vld [vmem:[%s572 + $0x20] sm:$0xff]
        %v686 = vld [vmem:[%s572 + $0x28] sm:$0xff]
        %v687 = vld [vmem:[%s572 + $0x30] sm:$0xff]
        %v688 = vld [vmem:[%s572 + $0x38] sm:$0xff]
        %v689 = vld [vmem:[%s582] sm:$0xff]
        %v690 = vld [vmem:[%s582 + $0x8] sm:$0xff]
        %v691 = vld [vmem:[%s582 + $0x10] sm:$0xff]
        %v692 = vld [vmem:[%s582 + $0x18] sm:$0xff]
        %v693 = vld [vmem:[%s582 + $0x20] sm:$0xff]
        %v694 = vld [vmem:[%s582 + $0x28] sm:$0xff]
        %v695 = vld [vmem:[%s582 + $0x30] sm:$0xff]
        %v696 = vld [vmem:[%s582 + $0x38] sm:$0xff]
        %v697 = vld [vmem:[#allocation7] sm:$0xff]
        %v698 = vld [vmem:[#allocation7 + $0x8] sm:$0xff]
        %v699 = vld [vmem:[#allocation7 + $0x10] sm:$0xff]
        %v700 = vld [vmem:[#allocation7 + $0x18] sm:$0xff]
        %v701 = vld [vmem:[#allocation7 + $0x20] sm:$0xff]
        %v702 = vld [vmem:[#allocation7 + $0x28] sm:$0xff]
        %v703 = vld [vmem:[#allocation7 + $0x30] sm:$0xff]
        %v704 = vld [vmem:[#allocation7 + $0x38] sm:$0xff]
        %v705 = vld [vmem:[#allocation7 + $0x40] sm:$0xff]
        %v706 = vld [vmem:[#allocation7 + $0x48] sm:$0xff]
        %v707 = vld [vmem:[#allocation7 + $0x50] sm:$0xff]
        %v708 = vld [vmem:[#allocation7 + $0x58] sm:$0xff]
        %v709 = vld [vmem:[#allocation7 + $0x60] sm:$0xff]
        %v710 = vld [vmem:[#allocation7 + $0x68] sm:$0xff]
        %v711 = vld [vmem:[#allocation7 + $0x70] sm:$0xff]
        %v712 = vld [vmem:[#allocation7 + $0x78] sm:$0xff]
        %v713 = vld [vmem:[#allocation8] sm:$0x1]
        %v715 = vperm.slane %v713, 0
        %717 = vmatpush.msra.mxu0 %v712
        %718 = vmatpush.msra.mxu0 %v711
        %719 = vmatpush.msra.mxu0 %v710
        %720 = vmatpush.msra.mxu0 %v709
        %721 = vmatpush.msra.mxu0 %v708
        %722 = vmatpush.msra.mxu0 %v707
        %723 = vmatpush.msra.mxu0 %v706
        %724 = vmatpush.msra.mxu0 %v705
        %725 = vmatpush.msra.mxu0 %v704
        %726 = vmatpush.msra.mxu0 %v703
        %727 = vmatpush.msra.mxu0 %v702
        %728 = vmatpush.msra.mxu0 %v701
        %729 = vmatpush.msra.mxu0 %v700
        %730 = vmatpush.msra.mxu0 %v699
        %731 = vmatpush.msra.mxu0 %v698
        %732 = vmatpush.msra.mxu0 %v697
        %733 = vmatmul.f32.gmra.mxu0 %v689
        %v734 = vpop.f32.mrf.mxu0
        %v735 = vadd.f32 %v715, %v734
        %736 = vmatmul.f32.gmra.mxu0 %v690
        %v737 = vpop.f32.mrf.mxu0
        %v738 = vadd.f32 %v715, %v737
        %739 = vmatmul.f32.gmra.mxu0 %v691
        %v740 = vpop.f32.mrf.mxu0
        %v741 = vadd.f32 %v715, %v740
        %742 = vmatmul.f32.gmra.mxu0 %v692
        %v743 = vpop.f32.mrf.mxu0
        %v744 = vadd.f32 %v715, %v743
        %745 = vmatmul.f32.gmra.mxu0 %v693
        %v746 = vpop.f32.mrf.mxu0
        %v747 = vadd.f32 %v715, %v746
        %748 = vmatmul.f32.gmra.mxu0 %v694
        %v749 = vpop.f32.mrf.mxu0
        %v750 = vadd.f32 %v715, %v749
        %751 = vmatmul.f32.gmra.mxu0 %v695
        %v752 = vpop.f32.mrf.mxu0
        %v753 = vadd.f32 %v715, %v752
        %754 = vmatmul.f32.gmra.mxu0 %v696
        %v755 = vpop.f32.mrf.mxu0
        %v756 = vadd.f32 %v715, %v755
        %757 = vdwg.mxu0
        %v758 = vld [vmem:[#allocation10] sm:$0xff]
        %v759 = vld [vmem:[#allocation10 + $0x8] sm:$0xff]
        %v760 = vld [vmem:[#allocation10 + $0x10] sm:$0xff]
        %v761 = vld [vmem:[#allocation10 + $0x18] sm:$0xff]
        %v762 = vld [vmem:[#allocation10 + $0x20] sm:$0xff]
        %v763 = vld [vmem:[#allocation10 + $0x28] sm:$0xff]
        %v764 = vld [vmem:[#allocation10 + $0x30] sm:$0xff]
        %v765 = vld [vmem:[#allocation10 + $0x38] sm:$0xff]
        %v766 = vld [vmem:[#allocation10 + $0x40] sm:$0xff]
        %v767 = vld [vmem:[#allocation10 + $0x48] sm:$0xff]
        %v768 = vld [vmem:[#allocation10 + $0x50] sm:$0xff]
        %v769 = vld [vmem:[#allocation10 + $0x58] sm:$0xff]
        %v770 = vld [vmem:[#allocation10 + $0x60] sm:$0xff]
        %v771 = vld [vmem:[#allocation10 + $0x68] sm:$0xff]
        %v772 = vld [vmem:[#allocation10 + $0x70] sm:$0xff]
        %v773 = vld [vmem:[#allocation10 + $0x78] sm:$0xff]
        %v774 = vld [vmem:[#allocation11] sm:$0x1]
        %v776 = vperm.slane %v774, 0
        %778 = vmatpush.msra.mxu0 %v773
        %779 = vmatpush.msra.mxu0 %v772
        %780 = vmatpush.msra.mxu0 %v771
        %781 = vmatpush.msra.mxu0 %v770
        %782 = vmatpush.msra.mxu0 %v769
        %783 = vmatpush.msra.mxu0 %v768
        %784 = vmatpush.msra.mxu0 %v767
        %785 = vmatpush.msra.mxu0 %v766
        %786 = vmatpush.msra.mxu0 %v765
        %787 = vmatpush.msra.mxu0 %v764
        %788 = vmatpush.msra.mxu0 %v763
        %789 = vmatpush.msra.mxu0 %v762
        %790 = vmatpush.msra.mxu0 %v761
        %791 = vmatpush.msra.mxu0 %v760
        %792 = vmatpush.msra.mxu0 %v759
        %793 = vmatpush.msra.mxu0 %v758
        %794 = vmatmul.f32.gmra.mxu0 %v735
        %v795 = vpop.f32.mrf.mxu0
        %v796 = vadd.f32 %v776, %v795
        %797 = vmatmul.f32.gmra.mxu0 %v738
        %v798 = vpop.f32.mrf.mxu0
        %v799 = vadd.f32 %v776, %v798
        %800 = vmatmul.f32.gmra.mxu0 %v741
        %v801 = vpop.f32.mrf.mxu0
        %v802 = vadd.f32 %v776, %v801
        %803 = vmatmul.f32.gmra.mxu0 %v744
        %v804 = vpop.f32.mrf.mxu0
        %v805 = vadd.f32 %v776, %v804
        %806 = vmatmul.f32.gmra.mxu0 %v747
        %v807 = vpop.f32.mrf.mxu0
        %v808 = vadd.f32 %v776, %v807
        %809 = vmatmul.f32.gmra.mxu0 %v750
        %v810 = vpop.f32.mrf.mxu0
        %v811 = vadd.f32 %v776, %v810
        %812 = vmatmul.f32.gmra.mxu0 %v753
        %v813 = vpop.f32.mrf.mxu0
        %v814 = vadd.f32 %v776, %v813
        %815 = vmatmul.f32.gmra.mxu0 %v756
        %v816 = vpop.f32.mrf.mxu0
        %v817 = vadd.f32 %v776, %v816
        %818 = vdwg.mxu0
        %v819 = vadd.f32 %v796, %v681
        %v820 = vadd.f32 %v799, %v682
        %v821 = vadd.f32 %v802, %v683
        %v822 = vadd.f32 %v805, %v684
        %v823 = vadd.f32 %v808, %v685
        %v824 = vadd.f32 %v811, %v686
        %v825 = vadd.f32 %v814, %v687
        %v826 = vadd.f32 %v817, %v688
        %v827 = vld [vmem:[#allocation13] sm:$0x1]
        %v828 = vld [vmem:[#allocation14] sm:$0x1]
        %829 = vadd.xlane.f32.xlu0 %v819
        %v830 = vpop.xlane.xlu0 %829
        %831 = vadd.xlane.f32.xlu0 %v820
        %v832 = vpop.xlane.xlu0 %831
        %833 = vadd.xlane.f32.xlu0 %v821
        %v834 = vpop.xlane.xlu0 %833
        %835 = vadd.xlane.f32.xlu0 %v822
        %v836 = vpop.xlane.xlu0 %835
        %837 = vadd.xlane.f32.xlu0 %v823
        %v838 = vpop.xlane.xlu0 %837
        %839 = vadd.xlane.f32.xlu0 %v824
        %v840 = vpop.xlane.xlu0 %839
        %841 = vadd.xlane.f32.xlu0 %v825
        %v842 = vpop.xlane.xlu0 %841
        %843 = vadd.xlane.f32.xlu0 %v826
        %v844 = vpop.xlane.xlu0 %843
        %v845 = vrcp.pop 128.0
        %v846 = vmul.f32 128.0, %v845
        %v847 = vsub.f32 1.0, %v846
        %v848 = vmul.f32 %v845, %v847
        %v849 = vadd.f32 %v845, %v848
        %vm850 = vweird.f32 %v845
        %v851 = vsel %vm850, %v845, %v849
        %v852 = vmul.f32 %v830, %v851
        %v853 = vmul.f32 %v832, %v851
        %v854 = vmul.f32 %v834, %v851
        %v855 = vmul.f32 %v836, %v851
        %v856 = vmul.f32 %v838, %v851
        %v857 = vmul.f32 %v840, %v851
        %v858 = vmul.f32 %v842, %v851
        %v859 = vmul.f32 %v844, %v851
        %v860 = vsub.f32 %v819, %v852
        %v861 = vsub.f32 %v820, %v853
        %v862 = vsub.f32 %v821, %v854
        %v863 = vsub.f32 %v822, %v855
        %v864 = vsub.f32 %v823, %v856
        %v865 = vsub.f32 %v824, %v857
        %v866 = vsub.f32 %v825, %v858
        %v867 = vsub.f32 %v826, %v859
        %v868 = vmul.f32 %v860, %v860
        %v869 = vmul.f32 %v861, %v861
        %v870 = vmul.f32 %v862, %v862
        %v871 = vmul.f32 %v863, %v863
        %v872 = vmul.f32 %v864, %v864
        %v873 = vmul.f32 %v865, %v865
        %v874 = vmul.f32 %v866, %v866
        %v875 = vmul.f32 %v867, %v867
        %876 = vadd.xlane.f32.xlu0 %v868
        %v877 = vpop.xlane.xlu0 %876
        %878 = vadd.xlane.f32.xlu0 %v869
        %v879 = vpop.xlane.xlu0 %878
        %880 = vadd.xlane.f32.xlu0 %v870
        %v881 = vpop.xlane.xlu0 %880
        %882 = vadd.xlane.f32.xlu0 %v871
        %v883 = vpop.xlane.xlu0 %882
        %884 = vadd.xlane.f32.xlu0 %v872
        %v885 = vpop.xlane.xlu0 %884
        %886 = vadd.xlane.f32.xlu0 %v873
        %v887 = vpop.xlane.xlu0 %886
        %888 = vadd.xlane.f32.xlu0 %v874
        %v889 = vpop.xlane.xlu0 %888
        %890 = vadd.xlane.f32.xlu0 %v875
        %v891 = vpop.xlane.xlu0 %890
        %v892 = vmul.f32 %v877, %v851
        %v893 = vmul.f32 %v879, %v851
        %v894 = vmul.f32 %v881, %v851
        %v895 = vmul.f32 %v883, %v851
        %v896 = vmul.f32 %v885, %v851
        %v897 = vmul.f32 %v887, %v851
        %v898 = vmul.f32 %v889, %v851
        %v899 = vmul.f32 %v891, %v851
        %v900 = vadd.f32 %v892, 1e-05
        %v901 = vadd.f32 %v893, 1e-05
        %v902 = vadd.f32 %v894, 1e-05
        %v903 = vadd.f32 %v895, 1e-05
        %v904 = vadd.f32 %v896, 1e-05
        %v905 = vadd.f32 %v897, 1e-05
        %v906 = vadd.f32 %v898, 1e-05
        %v907 = vadd.f32 %v899, 1e-05
        %v908 = vrsqrt.pop %v900
        %v909 = vmul.f32 %v908, %v900
        %v910 = vmul.f32 %v909, %v908
        %v911 = vmul.f32 0.5, %v910
        %v912 = vsub.f32 1.5, %v911
        %v913 = vmul.f32 %v908, %v912
        %vm914 = vweird.f32 %v900
        %vm915 = vweird.f32 %v908
        %vm916 = vmor %vm914, %vm915
        %v917 = vsel %vm916, %v908, %v913
        %v918 = vrsqrt.pop %v901
        %v919 = vmul.f32 %v918, %v901
        %v920 = vmul.f32 %v919, %v918
        %v921 = vmul.f32 0.5, %v920
        %v922 = vsub.f32 1.5, %v921
        %v923 = vmul.f32 %v918, %v922
        %vm924 = vweird.f32 %v901
        %vm925 = vweird.f32 %v918
        %vm926 = vmor %vm924, %vm925
        %v927 = vsel %vm926, %v918, %v923
        %v928 = vrsqrt.pop %v902
        %v929 = vmul.f32 %v928, %v902
        %v930 = vmul.f32 %v929, %v928
        %v931 = vmul.f32 0.5, %v930
        %v932 = vsub.f32 1.5, %v931
        %v933 = vmul.f32 %v928, %v932
        %vm934 = vweird.f32 %v902
        %vm935 = vweird.f32 %v928
        %vm936 = vmor %vm934, %vm935
        %v937 = vsel %vm936, %v928, %v933
        %v938 = vrsqrt.pop %v903
        %v939 = vmul.f32 %v938, %v903
        %v940 = vmul.f32 %v939, %v938
        %v941 = vmul.f32 0.5, %v940
        %v942 = vsub.f32 1.5, %v941
        %v943 = vmul.f32 %v938, %v942
        %vm944 = vweird.f32 %v903
        %vm945 = vweird.f32 %v938
        %vm946 = vmor %vm944, %vm945
        %v947 = vsel %vm946, %v938, %v943
        %v948 = vrsqrt.pop %v904
        %v949 = vmul.f32 %v948, %v904
        %v950 = vmul.f32 %v949, %v948
        %v951 = vmul.f32 0.5, %v950
        %v952 = vsub.f32 1.5, %v951
        %v953 = vmul.f32 %v948, %v952
        %vm954 = vweird.f32 %v904
        %vm955 = vweird.f32 %v948
        %vm956 = vmor %vm954, %vm955
        %v957 = vsel %vm956, %v948, %v953
        %v958 = vrsqrt.pop %v905
        %v959 = vmul.f32 %v958, %v905
        %v960 = vmul.f32 %v959, %v958
        %v961 = vmul.f32 0.5, %v960
        %v962 = vsub.f32 1.5, %v961
        %v963 = vmul.f32 %v958, %v962
        %vm964 = vweird.f32 %v905
        %vm965 = vweird.f32 %v958
        %vm966 = vmor %vm964, %vm965
        %v967 = vsel %vm966, %v958, %v963
        %v968 = vrsqrt.pop %v906
        %v969 = vmul.f32 %v968, %v906
        %v970 = vmul.f32 %v969, %v968
        %v971 = vmul.f32 0.5, %v970
        %v972 = vsub.f32 1.5, %v971
        %v973 = vmul.f32 %v968, %v972
        %vm974 = vweird.f32 %v906
        %vm975 = vweird.f32 %v968
        %vm976 = vmor %vm974, %vm975
        %v977 = vsel %vm976, %v968, %v973
        %v978 = vrsqrt.pop %v907
        %v979 = vmul.f32 %v978, %v907
        %v980 = vmul.f32 %v979, %v978
        %v981 = vmul.f32 0.5, %v980
        %v982 = vsub.f32 1.5, %v981
        %v983 = vmul.f32 %v978, %v982
        %vm984 = vweird.f32 %v907
        %vm985 = vweird.f32 %v978
        %vm986 = vmor %vm984, %vm985
        %v987 = vsel %vm986, %v978, %v983
        %v988 = vmul.f32 %v860, %v917
        %v989 = vmul.f32 %v861, %v927
        %v990 = vmul.f32 %v862, %v937
        %v991 = vmul.f32 %v863, %v947
        %v992 = vmul.f32 %v864, %v957
        %v993 = vmul.f32 %v865, %v967
        %v994 = vmul.f32 %v866, %v977
        %v995 = vmul.f32 %v867, %v987
        %v997 = vperm.slane %v827, 0
        %v999 = vmul.f32 %v988, %v997
        %v1000 = vmul.f32 %v989, %v997
        %v1001 = vmul.f32 %v990, %v997
        %v1002 = vmul.f32 %v991, %v997
        %v1003 = vmul.f32 %v992, %v997
        %v1004 = vmul.f32 %v993, %v997
        %v1005 = vmul.f32 %v994, %v997
        %v1006 = vmul.f32 %v995, %v997
        %v1008 = vperm.slane %v828, 0
        %v1010 = vadd.f32 %v999, %v1008
        %v1011 = vadd.f32 %v1000, %v1008
        %v1012 = vadd.f32 %v1001, %v1008
        %v1013 = vadd.f32 %v1002, %v1008
        %v1014 = vadd.f32 %v1003, %v1008
        %v1015 = vadd.f32 %v1004, %v1008
        %v1016 = vadd.f32 %v1005, %v1008
        %v1017 = vadd.f32 %v1006, %v1008
        %v1018 = vld [vmem:[#allocation16] sm:$0xff]
        %v1019 = vld [vmem:[#allocation16 + $0x8] sm:$0xff]
        %v1020 = vld [vmem:[#allocation16 + $0x10] sm:$0xff]
        %v1021 = vld [vmem:[#allocation16 + $0x18] sm:$0xff]
        %v1022 = vld [vmem:[#allocation16 + $0x20] sm:$0xff]
        %v1023 = vld [vmem:[#allocation16 + $0x28] sm:$0xff]
        %v1024 = vld [vmem:[#allocation16 + $0x30] sm:$0xff]
        %v1025 = vld [vmem:[#allocation16 + $0x38] sm:$0xff]
        %v1026 = vld [vmem:[#allocation16 + $0x40] sm:$0xff]
        %v1027 = vld [vmem:[#allocation16 + $0x48] sm:$0xff]
        %v1028 = vld [vmem:[#allocation16 + $0x50] sm:$0xff]
        %v1029 = vld [vmem:[#allocation16 + $0x58] sm:$0xff]
        %v1030 = vld [vmem:[#allocation16 + $0x60] sm:$0xff]
        %v1031 = vld [vmem:[#allocation16 + $0x68] sm:$0xff]
        %v1032 = vld [vmem:[#allocation16 + $0x70] sm:$0xff]
        %v1033 = vld [vmem:[#allocation16 + $0x78] sm:$0xff]
        %v1034 = vld [vmem:[#allocation16 + $0x80] sm:$0xff]
        %v1035 = vld [vmem:[#allocation16 + $0x88] sm:$0xff]
        %v1036 = vld [vmem:[#allocation16 + $0x90] sm:$0xff]
        %v1037 = vld [vmem:[#allocation16 + $0x98] sm:$0xff]
        %v1038 = vld [vmem:[#allocation16 + $0xa0] sm:$0xff]
        %v1039 = vld [vmem:[#allocation16 + $0xa8] sm:$0xff]
        %v1040 = vld [vmem:[#allocation16 + $0xb0] sm:$0xff]
        %v1041 = vld [vmem:[#allocation16 + $0xb8] sm:$0xff]
        %v1042 = vld [vmem:[#allocation16 + $0xc0] sm:$0xff]
        %v1043 = vld [vmem:[#allocation16 + $0xc8] sm:$0xff]
        %v1044 = vld [vmem:[#allocation16 + $0xd0] sm:$0xff]
        %v1045 = vld [vmem:[#allocation16 + $0xd8] sm:$0xff]
        %v1046 = vld [vmem:[#allocation16 + $0xe0] sm:$0xff]
        %v1047 = vld [vmem:[#allocation16 + $0xe8] sm:$0xff]
        %v1048 = vld [vmem:[#allocation16 + $0xf0] sm:$0xff]
        %v1049 = vld [vmem:[#allocation16 + $0xf8] sm:$0xff]
        %v1050 = vld [vmem:[%s9] sm:$0x3]
        %v1052 = vperm.slane %v1050, 0
        %v1053 = vperm.slane %v1050, 1
        %1056 = vmatpush.msra.mxu0 %v1048
        %1057 = vmatpush.msra.mxu0 %v1046
        %1058 = vmatpush.msra.mxu0 %v1044
        %1059 = vmatpush.msra.mxu0 %v1042
        %1060 = vmatpush.msra.mxu0 %v1040
        %1061 = vmatpush.msra.mxu0 %v1038
        %1062 = vmatpush.msra.mxu0 %v1036
        %1063 = vmatpush.msra.mxu0 %v1034
        %1064 = vmatpush.msra.mxu0 %v1032
        %1065 = vmatpush.msra.mxu0 %v1030
        %1066 = vmatpush.msra.mxu0 %v1028
        %1067 = vmatpush.msra.mxu0 %v1026
        %1068 = vmatpush.msra.mxu0 %v1024
        %1069 = vmatpush.msra.mxu0 %v1022
        %1070 = vmatpush.msra.mxu0 %v1020
        %1071 = vmatpush.msra.mxu0 %v1018
        %1072 = vmatmul.f32.gmra.mxu0 %v1010
        %v1073 = vpop.f32.mrf.mxu0
        %v1074 = vadd.f32 %v1052, %v1073
        %1075 = vmatmul.f32.gmra.mxu0 %v1011
        %v1076 = vpop.f32.mrf.mxu0
        %v1077 = vadd.f32 %v1052, %v1076
        %1078 = vmatmul.f32.gmra.mxu0 %v1012
        %v1079 = vpop.f32.mrf.mxu0
        %v1080 = vadd.f32 %v1052, %v1079
        %1081 = vmatmul.f32.gmra.mxu0 %v1013
        %v1082 = vpop.f32.mrf.mxu0
        %v1083 = vadd.f32 %v1052, %v1082
        %1084 = vmatmul.f32.gmra.mxu0 %v1014
        %v1085 = vpop.f32.mrf.mxu0
        %v1086 = vadd.f32 %v1052, %v1085
        %1087 = vmatmul.f32.gmra.mxu0 %v1015
        %v1088 = vpop.f32.mrf.mxu0
        %v1089 = vadd.f32 %v1052, %v1088
        %1090 = vmatmul.f32.gmra.mxu0 %v1016
        %v1091 = vpop.f32.mrf.mxu0
        %v1092 = vadd.f32 %v1052, %v1091
        %1093 = vmatmul.f32.gmra.mxu0 %v1017
        %v1094 = vpop.f32.mrf.mxu0
        %v1095 = vadd.f32 %v1052, %v1094
        %1096 = vdwg.mxu0
        %1097 = vmatpush.msra.mxu0 %v1049
        %1098 = vmatpush.msra.mxu0 %v1047
        %1099 = vmatpush.msra.mxu0 %v1045
        %1100 = vmatpush.msra.mxu0 %v1043
        %1101 = vmatpush.msra.mxu0 %v1041
        %1102 = vmatpush.msra.mxu0 %v1039
        %1103 = vmatpush.msra.mxu0 %v1037
        %1104 = vmatpush.msra.mxu0 %v1035
        %1105 = vmatpush.msra.mxu0 %v1033
        %1106 = vmatpush.msra.mxu0 %v1031
        %1107 = vmatpush.msra.mxu0 %v1029
        %1108 = vmatpush.msra.mxu0 %v1027
        %1109 = vmatpush.msra.mxu0 %v1025
        %1110 = vmatpush.msra.mxu0 %v1023
        %1111 = vmatpush.msra.mxu0 %v1021
        %1112 = vmatpush.msra.mxu0 %v1019
        %1113 = vmatmul.f32.gmra.mxu0 %v1010
        %v1114 = vpop.f32.mrf.mxu0
        %v1115 = vadd.f32 %v1053, %v1114
        %1116 = vmatmul.f32.gmra.mxu0 %v1011
        %v1117 = vpop.f32.mrf.mxu0
        %v1118 = vadd.f32 %v1053, %v1117
        %1119 = vmatmul.f32.gmra.mxu0 %v1012
        %v1120 = vpop.f32.mrf.mxu0
        %v1121 = vadd.f32 %v1053, %v1120
        %1122 = vmatmul.f32.gmra.mxu0 %v1013
        %v1123 = vpop.f32.mrf.mxu0
        %v1124 = vadd.f32 %v1053, %v1123
        %1125 = vmatmul.f32.gmra.mxu0 %v1014
        %v1126 = vpop.f32.mrf.mxu0
        %v1127 = vadd.f32 %v1053, %v1126
        %1128 = vmatmul.f32.gmra.mxu0 %v1015
        %v1129 = vpop.f32.mrf.mxu0
        %v1130 = vadd.f32 %v1053, %v1129
        %1131 = vmatmul.f32.gmra.mxu0 %v1016
        %v1132 = vpop.f32.mrf.mxu0
        %v1133 = vadd.f32 %v1053, %v1132
        %1134 = vmatmul.f32.gmra.mxu0 %v1017
        %v1135 = vpop.f32.mrf.mxu0
        %v1136 = vadd.f32 %v1053, %v1135
        %1137 = vdwg.mxu0
        %v1138 = vmax.f32 %v1074, 0.0
        %v1139 = vmax.f32 %v1115, 0.0
        %v1140 = vmax.f32 %v1077, 0.0
        %v1141 = vmax.f32 %v1118, 0.0
        %v1142 = vmax.f32 %v1080, 0.0
        %v1143 = vmax.f32 %v1121, 0.0
        %v1144 = vmax.f32 %v1083, 0.0
        %v1145 = vmax.f32 %v1124, 0.0
        %v1146 = vmax.f32 %v1086, 0.0
        %v1147 = vmax.f32 %v1127, 0.0
        %v1148 = vmax.f32 %v1089, 0.0
        %v1149 = vmax.f32 %v1130, 0.0
        %v1150 = vmax.f32 %v1092, 0.0
        %v1151 = vmax.f32 %v1133, 0.0
        %v1152 = vmax.f32 %v1095, 0.0
        %v1153 = vmax.f32 %v1136, 0.0
        %v1154 = vld [vmem:[#allocation17] sm:$0xff]
        %v1155 = vld [vmem:[#allocation17 + $0x8] sm:$0xff]
        %v1156 = vld [vmem:[#allocation17 + $0x10] sm:$0xff]
        %v1157 = vld [vmem:[#allocation17 + $0x18] sm:$0xff]
        %v1158 = vld [vmem:[#allocation17 + $0x20] sm:$0xff]
        %v1159 = vld [vmem:[#allocation17 + $0x28] sm:$0xff]
        %v1160 = vld [vmem:[#allocation17 + $0x30] sm:$0xff]
        %v1161 = vld [vmem:[#allocation17 + $0x38] sm:$0xff]
        %v1162 = vld [vmem:[#allocation17 + $0x40] sm:$0xff]
        %v1163 = vld [vmem:[#allocation17 + $0x48] sm:$0xff]
        %v1164 = vld [vmem:[#allocation17 + $0x50] sm:$0xff]
        %v1165 = vld [vmem:[#allocation17 + $0x58] sm:$0xff]
        %v1166 = vld [vmem:[#allocation17 + $0x60] sm:$0xff]
        %v1167 = vld [vmem:[#allocation17 + $0x68] sm:$0xff]
        %v1168 = vld [vmem:[#allocation17 + $0x70] sm:$0xff]
        %v1169 = vld [vmem:[#allocation17 + $0x78] sm:$0xff]
        %v1170 = vld [vmem:[#allocation17 + $0x80] sm:$0xff]
        %v1171 = vld [vmem:[#allocation17 + $0x88] sm:$0xff]
        %v1172 = vld [vmem:[#allocation17 + $0x90] sm:$0xff]
        %v1173 = vld [vmem:[#allocation17 + $0x98] sm:$0xff]
        %v1174 = vld [vmem:[#allocation17 + $0xa0] sm:$0xff]
        %v1175 = vld [vmem:[#allocation17 + $0xa8] sm:$0xff]
        %v1176 = vld [vmem:[#allocation17 + $0xb0] sm:$0xff]
        %v1177 = vld [vmem:[#allocation17 + $0xb8] sm:$0xff]
        %v1178 = vld [vmem:[#allocation17 + $0xc0] sm:$0xff]
        %v1179 = vld [vmem:[#allocation17 + $0xc8] sm:$0xff]
        %v1180 = vld [vmem:[#allocation17 + $0xd0] sm:$0xff]
        %v1181 = vld [vmem:[#allocation17 + $0xd8] sm:$0xff]
        %v1182 = vld [vmem:[#allocation17 + $0xe0] sm:$0xff]
        %v1183 = vld [vmem:[#allocation17 + $0xe8] sm:$0xff]
        %v1184 = vld [vmem:[#allocation17 + $0xf0] sm:$0xff]
        %v1185 = vld [vmem:[#allocation17 + $0xf8] sm:$0xff]
        %v1186 = vld [vmem:[%s11] sm:$0x1]
        %v1188 = vperm.slane %v1186, 0
        %1190 = vmatpush.msra.mxu0 %v1169
        %1191 = vmatpush.msra.mxu0 %v1168
        %1192 = vmatpush.msra.mxu0 %v1167
        %1193 = vmatpush.msra.mxu0 %v1166
        %1194 = vmatpush.msra.mxu0 %v1165
        %1195 = vmatpush.msra.mxu0 %v1164
        %1196 = vmatpush.msra.mxu0 %v1163
        %1197 = vmatpush.msra.mxu0 %v1162
        %1198 = vmatpush.msra.mxu0 %v1161
        %1199 = vmatpush.msra.mxu0 %v1160
        %1200 = vmatpush.msra.mxu0 %v1159
        %1201 = vmatpush.msra.mxu0 %v1158
        %1202 = vmatpush.msra.mxu0 %v1157
        %1203 = vmatpush.msra.mxu0 %v1156
        %1204 = vmatpush.msra.mxu0 %v1155
        %1205 = vmatpush.msra.mxu0 %v1154
        %1206 = vmatmul.f32.gmra.mxu0 %v1138
        %v1207 = vpop.f32.mrf.mxu0
        %v1208 = vadd.f32 %v1188, %v1207
        %1209 = vmatmul.f32.gmra.mxu0 %v1140
        %v1210 = vpop.f32.mrf.mxu0
        %v1211 = vadd.f32 %v1188, %v1210
        %1212 = vmatmul.f32.gmra.mxu0 %v1142
        %v1213 = vpop.f32.mrf.mxu0
        %v1214 = vadd.f32 %v1188, %v1213
        %1215 = vmatmul.f32.gmra.mxu0 %v1144
        %v1216 = vpop.f32.mrf.mxu0
        %v1217 = vadd.f32 %v1188, %v1216
        %1218 = vmatmul.f32.gmra.mxu0 %v1146
        %v1219 = vpop.f32.mrf.mxu0
        %v1220 = vadd.f32 %v1188, %v1219
        %1221 = vmatmul.f32.gmra.mxu0 %v1148
        %v1222 = vpop.f32.mrf.mxu0
        %v1223 = vadd.f32 %v1188, %v1222
        %1224 = vmatmul.f32.gmra.mxu0 %v1150
        %v1225 = vpop.f32.mrf.mxu0
        %v1226 = vadd.f32 %v1188, %v1225
        %1227 = vmatmul.f32.gmra.mxu0 %v1152
        %v1228 = vpop.f32.mrf.mxu0
        %v1229 = vadd.f32 %v1188, %v1228
        %1230 = vdwg.mxu0
        %1231 = vmatpush.msra.mxu0 %v1185
        %1232 = vmatpush.msra.mxu0 %v1184
        %1233 = vmatpush.msra.mxu0 %v1183
        %1234 = vmatpush.msra.mxu0 %v1182
        %1235 = vmatpush.msra.mxu0 %v1181
        %1236 = vmatpush.msra.mxu0 %v1180
        %1237 = vmatpush.msra.mxu0 %v1179
        %1238 = vmatpush.msra.mxu0 %v1178
        %1239 = vmatpush.msra.mxu0 %v1177
        %1240 = vmatpush.msra.mxu0 %v1176
        %1241 = vmatpush.msra.mxu0 %v1175
        %1242 = vmatpush.msra.mxu0 %v1174
        %1243 = vmatpush.msra.mxu0 %v1173
        %1244 = vmatpush.msra.mxu0 %v1172
        %1245 = vmatpush.msra.mxu0 %v1171
        %1246 = vmatpush.msra.mxu0 %v1170
        %1247 = vmatmul.f32.gmra.mxu0 %v1139
        %v1248 = vpop.f32.mrf.mxu0
        %v1249 = vadd.f32 %v1208, %v1248
        %1250 = vmatmul.f32.gmra.mxu0 %v1141
        %v1251 = vpop.f32.mrf.mxu0
        %v1252 = vadd.f32 %v1211, %v1251
        %1253 = vmatmul.f32.gmra.mxu0 %v1143
        %v1254 = vpop.f32.mrf.mxu0
        %v1255 = vadd.f32 %v1214, %v1254
        %1256 = vmatmul.f32.gmra.mxu0 %v1145
        %v1257 = vpop.f32.mrf.mxu0
        %v1258 = vadd.f32 %v1217, %v1257
        %1259 = vmatmul.f32.gmra.mxu0 %v1147
        %v1260 = vpop.f32.mrf.mxu0
        %v1261 = vadd.f32 %v1220, %v1260
        %1262 = vmatmul.f32.gmra.mxu0 %v1149
        %v1263 = vpop.f32.mrf.mxu0
        %v1264 = vadd.f32 %v1223, %v1263
        %1265 = vmatmul.f32.gmra.mxu0 %v1151
        %v1266 = vpop.f32.mrf.mxu0
        %v1267 = vadd.f32 %v1226, %v1266
        %1268 = vmatmul.f32.gmra.mxu0 %v1153
        %v1269 = vpop.f32.mrf.mxu0
        %v1270 = vadd.f32 %v1229, %v1269
        %1271 = vdwg.mxu0
        %v1272 = vadd.f32 %v1010, %v1249
        %v1273 = vadd.f32 %v1011, %v1252
        %v1274 = vadd.f32 %v1012, %v1255
        %v1275 = vadd.f32 %v1013, %v1258
        %v1276 = vadd.f32 %v1014, %v1261
        %v1277 = vadd.f32 %v1015, %v1264
        %v1278 = vadd.f32 %v1016, %v1267
        %v1279 = vadd.f32 %v1017, %v1270
        %v1280 = vld [vmem:[#allocation19] sm:$0x1]
        %v1281 = vld [vmem:[%s13] sm:$0x1]
        %1282 = vadd.xlane.f32.xlu0 %v1272
        %v1283 = vpop.xlane.xlu0 %1282
        %1284 = vadd.xlane.f32.xlu0 %v1273
        %v1285 = vpop.xlane.xlu0 %1284
        %1286 = vadd.xlane.f32.xlu0 %v1274
        %v1287 = vpop.xlane.xlu0 %1286
        %1288 = vadd.xlane.f32.xlu0 %v1275
        %v1289 = vpop.xlane.xlu0 %1288
        %1290 = vadd.xlane.f32.xlu0 %v1276
        %v1291 = vpop.xlane.xlu0 %1290
        %1292 = vadd.xlane.f32.xlu0 %v1277
        %v1293 = vpop.xlane.xlu0 %1292
        %1294 = vadd.xlane.f32.xlu0 %v1278
        %v1295 = vpop.xlane.xlu0 %1294
        %1296 = vadd.xlane.f32.xlu0 %v1279
        %v1297 = vpop.xlane.xlu0 %1296
        %v1298 = vmul.f32 %v1283, %v851
        %v1299 = vmul.f32 %v1285, %v851
        %v1300 = vmul.f32 %v1287, %v851
        %v1301 = vmul.f32 %v1289, %v851
        %v1302 = vmul.f32 %v1291, %v851
        %v1303 = vmul.f32 %v1293, %v851
        %v1304 = vmul.f32 %v1295, %v851
        %v1305 = vmul.f32 %v1297, %v851
        %v1306 = vsub.f32 %v1272, %v1298
        %v1307 = vsub.f32 %v1273, %v1299
        %v1308 = vsub.f32 %v1274, %v1300
        %v1309 = vsub.f32 %v1275, %v1301
        %v1310 = vsub.f32 %v1276, %v1302
        %v1311 = vsub.f32 %v1277, %v1303
        %v1312 = vsub.f32 %v1278, %v1304
        %v1313 = vsub.f32 %v1279, %v1305
        %v1314 = vmul.f32 %v1306, %v1306
        %v1315 = vmul.f32 %v1307, %v1307
        %v1316 = vmul.f32 %v1308, %v1308
        %v1317 = vmul.f32 %v1309, %v1309
        %v1318 = vmul.f32 %v1310, %v1310
        %v1319 = vmul.f32 %v1311, %v1311
        %v1320 = vmul.f32 %v1312, %v1312
        %v1321 = vmul.f32 %v1313, %v1313
        %1322 = vadd.xlane.f32.xlu0 %v1314
        %v1323 = vpop.xlane.xlu0 %1322
        %1324 = vadd.xlane.f32.xlu0 %v1315
        %v1325 = vpop.xlane.xlu0 %1324
        %1326 = vadd.xlane.f32.xlu0 %v1316
        %v1327 = vpop.xlane.xlu0 %1326
        %1328 = vadd.xlane.f32.xlu0 %v1317
        %v1329 = vpop.xlane.xlu0 %1328
        %1330 = vadd.xlane.f32.xlu0 %v1318
        %v1331 = vpop.xlane.xlu0 %1330
        %1332 = vadd.xlane.f32.xlu0 %v1319
        %v1333 = vpop.xlane.xlu0 %1332
        %1334 = vadd.xlane.f32.xlu0 %v1320
        %v1335 = vpop.xlane.xlu0 %1334
        %1336 = vadd.xlane.f32.xlu0 %v1321
        %v1337 = vpop.xlane.xlu0 %1336
        %v1338 = vmul.f32 %v1323, %v851
        %v1339 = vmul.f32 %v1325, %v851
        %v1340 = vmul.f32 %v1327, %v851
        %v1341 = vmul.f32 %v1329, %v851
        %v1342 = vmul.f32 %v1331, %v851
        %v1343 = vmul.f32 %v1333, %v851
        %v1344 = vmul.f32 %v1335, %v851
        %v1345 = vmul.f32 %v1337, %v851
        %v1346 = vadd.f32 %v1338, 1e-05
        %v1347 = vadd.f32 %v1339, 1e-05
        %v1348 = vadd.f32 %v1340, 1e-05
        %v1349 = vadd.f32 %v1341, 1e-05
        %v1350 = vadd.f32 %v1342, 1e-05
        %v1351 = vadd.f32 %v1343, 1e-05
        %v1352 = vadd.f32 %v1344, 1e-05
        %v1353 = vadd.f32 %v1345, 1e-05
        %v1354 = vrsqrt.pop %v1346
        %v1355 = vmul.f32 %v1354, %v1346
        %v1356 = vmul.f32 %v1355, %v1354
        %v1357 = vmul.f32 0.5, %v1356
        %v1358 = vsub.f32 1.5, %v1357
        %v1359 = vmul.f32 %v1354, %v1358
        %vm1360 = vweird.f32 %v1346
        %vm1361 = vweird.f32 %v1354
        %vm1362 = vmor %vm1360, %vm1361
        %v1363 = vsel %vm1362, %v1354, %v1359
        %v1364 = vrsqrt.pop %v1347
        %v1365 = vmul.f32 %v1364, %v1347
        %v1366 = vmul.f32 %v1365, %v1364
        %v1367 = vmul.f32 0.5, %v1366
        %v1368 = vsub.f32 1.5, %v1367
        %v1369 = vmul.f32 %v1364, %v1368
        %vm1370 = vweird.f32 %v1347
        %vm1371 = vweird.f32 %v1364
        %vm1372 = vmor %vm1370, %vm1371
        %v1373 = vsel %vm1372, %v1364, %v1369
        %v1374 = vrsqrt.pop %v1348
        %v1375 = vmul.f32 %v1374, %v1348
        %v1376 = vmul.f32 %v1375, %v1374
        %v1377 = vmul.f32 0.5, %v1376
        %v1378 = vsub.f32 1.5, %v1377
        %v1379 = vmul.f32 %v1374, %v1378
        %vm1380 = vweird.f32 %v1348
        %vm1381 = vweird.f32 %v1374
        %vm1382 = vmor %vm1380, %vm1381
        %v1383 = vsel %vm1382, %v1374, %v1379
        %v1384 = vrsqrt.pop %v1349
        %v1385 = vmul.f32 %v1384, %v1349
        %v1386 = vmul.f32 %v1385, %v1384
        %v1387 = vmul.f32 0.5, %v1386
        %v1388 = vsub.f32 1.5, %v1387
        %v1389 = vmul.f32 %v1384, %v1388
        %vm1390 = vweird.f32 %v1349
        %vm1391 = vweird.f32 %v1384
        %vm1392 = vmor %vm1390, %vm1391
        %v1393 = vsel %vm1392, %v1384, %v1389
        %v1394 = vrsqrt.pop %v1350
        %v1395 = vmul.f32 %v1394, %v1350
        %v1396 = vmul.f32 %v1395, %v1394
        %v1397 = vmul.f32 0.5, %v1396
        %v1398 = vsub.f32 1.5, %v1397
        %v1399 = vmul.f32 %v1394, %v1398
        %vm1400 = vweird.f32 %v1350
        %vm1401 = vweird.f32 %v1394
        %vm1402 = vmor %vm1400, %vm1401
        %v1403 = vsel %vm1402, %v1394, %v1399
        %v1404 = vrsqrt.pop %v1351
        %v1405 = vmul.f32 %v1404, %v1351
        %v1406 = vmul.f32 %v1405, %v1404
        %v1407 = vmul.f32 0.5, %v1406
        %v1408 = vsub.f32 1.5, %v1407
        %v1409 = vmul.f32 %v1404, %v1408
        %vm1410 = vweird.f32 %v1351
        %vm1411 = vweird.f32 %v1404
        %vm1412 = vmor %vm1410, %vm1411
        %v1413 = vsel %vm1412, %v1404, %v1409
        %v1414 = vrsqrt.pop %v1352
        %v1415 = vmul.f32 %v1414, %v1352
        %v1416 = vmul.f32 %v1415, %v1414
        %v1417 = vmul.f32 0.5, %v1416
        %v1418 = vsub.f32 1.5, %v1417
        %v1419 = vmul.f32 %v1414, %v1418
        %vm1420 = vweird.f32 %v1352
        %vm1421 = vweird.f32 %v1414
        %vm1422 = vmor %vm1420, %vm1421
        %v1423 = vsel %vm1422, %v1414, %v1419
        %v1424 = vrsqrt.pop %v1353
        %v1425 = vmul.f32 %v1424, %v1353
        %v1426 = vmul.f32 %v1425, %v1424
        %v1427 = vmul.f32 0.5, %v1426
        %v1428 = vsub.f32 1.5, %v1427
        %v1429 = vmul.f32 %v1424, %v1428
        %vm1430 = vweird.f32 %v1353
        %vm1431 = vweird.f32 %v1424
        %vm1432 = vmor %vm1430, %vm1431
        %v1433 = vsel %vm1432, %v1424, %v1429
        %v1434 = vmul.f32 %v1306, %v1363
        %v1435 = vmul.f32 %v1307, %v1373
        %v1436 = vmul.f32 %v1308, %v1383
        %v1437 = vmul.f32 %v1309, %v1393
        %v1438 = vmul.f32 %v1310, %v1403
        %v1439 = vmul.f32 %v1311, %v1413
        %v1440 = vmul.f32 %v1312, %v1423
        %v1441 = vmul.f32 %v1313, %v1433
        %v1443 = vperm.slane %v1280, 0
        %v1445 = vmul.f32 %v1434, %v1443
        %v1446 = vmul.f32 %v1435, %v1443
        %v1447 = vmul.f32 %v1436, %v1443
        %v1448 = vmul.f32 %v1437, %v1443
        %v1449 = vmul.f32 %v1438, %v1443
        %v1450 = vmul.f32 %v1439, %v1443
        %v1451 = vmul.f32 %v1440, %v1443
        %v1452 = vmul.f32 %v1441, %v1443
        %v1454 = vperm.slane %v1281, 0
        %v1456 = vadd.f32 %v1445, %v1454
        %v1457 = vadd.f32 %v1446, %v1454
        %v1458 = vadd.f32 %v1447, %v1454
        %v1459 = vadd.f32 %v1448, %v1454
        %v1460 = vadd.f32 %v1449, %v1454
        %v1461 = vadd.f32 %v1450, %v1454
        %v1462 = vadd.f32 %v1451, %v1454
        %v1463 = vadd.f32 %v1452, %v1454
        %s1464 = scalar_lea.vmem [#allocation7], 128
        %v1465 = vld [vmem:[%s1464] sm:$0xff]
        %v1466 = vld [vmem:[%s1464 + $0x8] sm:$0xff]
        %v1467 = vld [vmem:[%s1464 + $0x10] sm:$0xff]
        %v1468 = vld [vmem:[%s1464 + $0x18] sm:$0xff]
        %v1469 = vld [vmem:[%s1464 + $0x20] sm:$0xff]
        %v1470 = vld [vmem:[%s1464 + $0x28] sm:$0xff]
        %v1471 = vld [vmem:[%s1464 + $0x30] sm:$0xff]
        %v1472 = vld [vmem:[%s1464 + $0x38] sm:$0xff]
        %v1473 = vld [vmem:[%s1464 + $0x40] sm:$0xff]
        %v1474 = vld [vmem:[%s1464 + $0x48] sm:$0xff]
        %v1475 = vld [vmem:[%s1464 + $0x50] sm:$0xff]
        %v1476 = vld [vmem:[%s1464 + $0x58] sm:$0xff]
        %v1477 = vld [vmem:[%s1464 + $0x60] sm:$0xff]
        %v1478 = vld [vmem:[%s1464 + $0x68] sm:$0xff]
        %v1479 = vld [vmem:[%s1464 + $0x70] sm:$0xff]
        %v1480 = vld [vmem:[%s1464 + $0x78] sm:$0xff]
        %s1481 = scalar_lea.vmem [#allocation8], 1
        %v1482 = vld [vmem:[%s1481] sm:$0x1]
        %v1484 = vperm.slane %v1482, 0
        %1486 = vmatpush.msra.mxu0 %v1480
        %1487 = vmatpush.msra.mxu0 %v1479
        %1488 = vmatpush.msra.mxu0 %v1478
        %1489 = vmatpush.msra.mxu0 %v1477
        %1490 = vmatpush.msra.mxu0 %v1476
        %1491 = vmatpush.msra.mxu0 %v1475
        %1492 = vmatpush.msra.mxu0 %v1474
        %1493 = vmatpush.msra.mxu0 %v1473
        %1494 = vmatpush.msra.mxu0 %v1472
        %1495 = vmatpush.msra.mxu0 %v1471
        %1496 = vmatpush.msra.mxu0 %v1470
        %1497 = vmatpush.msra.mxu0 %v1469
        %1498 = vmatpush.msra.mxu0 %v1468
        %1499 = vmatpush.msra.mxu0 %v1467
        %1500 = vmatpush.msra.mxu0 %v1466
        %1501 = vmatpush.msra.mxu0 %v1465
        %1502 = vmatmul.f32.gmra.mxu0 %v689
        %v1503 = vpop.f32.mrf.mxu0
        %v1504 = vadd.f32 %v1484, %v1503
        %1505 = vmatmul.f32.gmra.mxu0 %v690
        %v1506 = vpop.f32.mrf.mxu0
        %v1507 = vadd.f32 %v1484, %v1506
        %1508 = vmatmul.f32.gmra.mxu0 %v691
        %v1509 = vpop.f32.mrf.mxu0
        %v1510 = vadd.f32 %v1484, %v1509
        %1511 = vmatmul.f32.gmra.mxu0 %v692
        %v1512 = vpop.f32.mrf.mxu0
        %v1513 = vadd.f32 %v1484, %v1512
        %1514 = vmatmul.f32.gmra.mxu0 %v693
        %v1515 = vpop.f32.mrf.mxu0
        %v1516 = vadd.f32 %v1484, %v1515
        %1517 = vmatmul.f32.gmra.mxu0 %v694
        %v1518 = vpop.f32.mrf.mxu0
        %v1519 = vadd.f32 %v1484, %v1518
        %1520 = vmatmul.f32.gmra.mxu0 %v695
        %v1521 = vpop.f32.mrf.mxu0
        %v1522 = vadd.f32 %v1484, %v1521
        %1523 = vmatmul.f32.gmra.mxu0 %v696
        %v1524 = vpop.f32.mrf.mxu0
        %v1525 = vadd.f32 %v1484, %v1524
        %1526 = vdwg.mxu0
        %s1527 = scalar_lea.vmem [#allocation10], 128
        %v1528 = vld [vmem:[%s1527] sm:$0xff]
        %v1529 = vld [vmem:[%s1527 + $0x8] sm:$0xff]
        %v1530 = vld [vmem:[%s1527 + $0x10] sm:$0xff]
        %v1531 = vld [vmem:[%s1527 + $0x18] sm:$0xff]
        %v1532 = vld [vmem:[%s1527 + $0x20] sm:$0xff]
        %v1533 = vld [vmem:[%s1527 + $0x28] sm:$0xff]
        %v1534 = vld [vmem:[%s1527 + $0x30] sm:$0xff]
        %v1535 = vld [vmem:[%s1527 + $0x38] sm:$0xff]
        %v1536 = vld [vmem:[%s1527 + $0x40] sm:$0xff]
        %v1537 = vld [vmem:[%s1527 + $0x48] sm:$0xff]
        %v1538 = vld [vmem:[%s1527 + $0x50] sm:$0xff]
        %v1539 = vld [vmem:[%s1527 + $0x58] sm:$0xff]
        %v1540 = vld [vmem:[%s1527 + $0x60] sm:$0xff]
        %v1541 = vld [vmem:[%s1527 + $0x68] sm:$0xff]
        %v1542 = vld [vmem:[%s1527 + $0x70] sm:$0xff]
        %v1543 = vld [vmem:[%s1527 + $0x78] sm:$0xff]
        %s1544 = scalar_lea.vmem [#allocation11], 1
        %v1545 = vld [vmem:[%s1544] sm:$0x1]
        %v1547 = vperm.slane %v1545, 0
        %1549 = vmatpush.msra.mxu0 %v1543
        %1550 = vmatpush.msra.mxu0 %v1542
        %1551 = vmatpush.msra.mxu0 %v1541
        %1552 = vmatpush.msra.mxu0 %v1540
        %1553 = vmatpush.msra.mxu0 %v1539
        %1554 = vmatpush.msra.mxu0 %v1538
        %1555 = vmatpush.msra.mxu0 %v1537
        %1556 = vmatpush.msra.mxu0 %v1536
        %1557 = vmatpush.msra.mxu0 %v1535
        %1558 = vmatpush.msra.mxu0 %v1534
        %1559 = vmatpush.msra.mxu0 %v1533
        %1560 = vmatpush.msra.mxu0 %v1532
        %1561 = vmatpush.msra.mxu0 %v1531
        %1562 = vmatpush.msra.mxu0 %v1530
        %1563 = vmatpush.msra.mxu0 %v1529
        %1564 = vmatpush.msra.mxu0 %v1528
        %1565 = vmatmul.f32.gmra.mxu0 %v1504
        %v1566 = vpop.f32.mrf.mxu0
        %v1567 = vadd.f32 %v1547, %v1566
        %1568 = vmatmul.f32.gmra.mxu0 %v1507
        %v1569 = vpop.f32.mrf.mxu0
        %v1570 = vadd.f32 %v1547, %v1569
        %1571 = vmatmul.f32.gmra.mxu0 %v1510
        %v1572 = vpop.f32.mrf.mxu0
        %v1573 = vadd.f32 %v1547, %v1572
        %1574 = vmatmul.f32.gmra.mxu0 %v1513
        %v1575 = vpop.f32.mrf.mxu0
        %v1576 = vadd.f32 %v1547, %v1575
        %1577 = vmatmul.f32.gmra.mxu0 %v1516
        %v1578 = vpop.f32.mrf.mxu0
        %v1579 = vadd.f32 %v1547, %v1578
        %1580 = vmatmul.f32.gmra.mxu0 %v1519
        %v1581 = vpop.f32.mrf.mxu0
        %v1582 = vadd.f32 %v1547, %v1581
        %1583 = vmatmul.f32.gmra.mxu0 %v1522
        %v1584 = vpop.f32.mrf.mxu0
        %v1585 = vadd.f32 %v1547, %v1584
        %1586 = vmatmul.f32.gmra.mxu0 %v1525
        %v1587 = vpop.f32.mrf.mxu0
        %v1588 = vadd.f32 %v1547, %v1587
        %1589 = vdwg.mxu0
        %v1590 = vadd.f32 %v1567, %v1456
        %v1591 = vadd.f32 %v1570, %v1457
        %v1592 = vadd.f32 %v1573, %v1458
        %v1593 = vadd.f32 %v1576, %v1459
        %v1594 = vadd.f32 %v1579, %v1460
        %v1595 = vadd.f32 %v1582, %v1461
        %v1596 = vadd.f32 %v1585, %v1462
        %v1597 = vadd.f32 %v1588, %v1463
        %s1598 = scalar_lea.vmem [#allocation13], 1
        %v1599 = vld [vmem:[%s1598] sm:$0x1]
        %s1600 = scalar_lea.vmem [#allocation14], 1
        %v1601 = vld [vmem:[%s1600] sm:$0x1]
        %1602 = vadd.xlane.f32.xlu0 %v1590
        %v1603 = vpop.xlane.xlu0 %1602
        %1604 = vadd.xlane.f32.xlu0 %v1591
        %v1605 = vpop.xlane.xlu0 %1604
        %1606 = vadd.xlane.f32.xlu0 %v1592
        %v1607 = vpop.xlane.xlu0 %1606
        %1608 = vadd.xlane.f32.xlu0 %v1593
        %v1609 = vpop.xlane.xlu0 %1608
        %1610 = vadd.xlane.f32.xlu0 %v1594
        %v1611 = vpop.xlane.xlu0 %1610
        %1612 = vadd.xlane.f32.xlu0 %v1595
        %v1613 = vpop.xlane.xlu0 %1612
        %1614 = vadd.xlane.f32.xlu0 %v1596
        %v1615 = vpop.xlane.xlu0 %1614
        %1616 = vadd.xlane.f32.xlu0 %v1597
        %v1617 = vpop.xlane.xlu0 %1616
        %v1618 = vmul.f32 %v1603, %v851
        %v1619 = vmul.f32 %v1605, %v851
        %v1620 = vmul.f32 %v1607, %v851
        %v1621 = vmul.f32 %v1609, %v851
        %v1622 = vmul.f32 %v1611, %v851
        %v1623 = vmul.f32 %v1613, %v851
        %v1624 = vmul.f32 %v1615, %v851
        %v1625 = vmul.f32 %v1617, %v851
        %v1626 = vsub.f32 %v1590, %v1618
        %v1627 = vsub.f32 %v1591, %v1619
        %v1628 = vsub.f32 %v1592, %v1620
        %v1629 = vsub.f32 %v1593, %v1621
        %v1630 = vsub.f32 %v1594, %v1622
        %v1631 = vsub.f32 %v1595, %v1623
        %v1632 = vsub.f32 %v1596, %v1624
        %v1633 = vsub.f32 %v1597, %v1625
        %v1634 = vmul.f32 %v1626, %v1626
        %v1635 = vmul.f32 %v1627, %v1627
        %v1636 = vmul.f32 %v1628, %v1628
        %v1637 = vmul.f32 %v1629, %v1629
        %v1638 = vmul.f32 %v1630, %v1630
        %v1639 = vmul.f32 %v1631, %v1631
        %v1640 = vmul.f32 %v1632, %v1632
        %v1641 = vmul.f32 %v1633, %v1633
        %1642 = vadd.xlane.f32.xlu0 %v1634
        %v1643 = vpop.xlane.xlu0 %1642
        %1644 = vadd.xlane.f32.xlu0 %v1635
        %v1645 = vpop.xlane.xlu0 %1644
        %1646 = vadd.xlane.f32.xlu0 %v1636
        %v1647 = vpop.xlane.xlu0 %1646
        %1648 = vadd.xlane.f32.xlu0 %v1637
        %v1649 = vpop.xlane.xlu0 %1648
        %1650 = vadd.xlane.f32.xlu0 %v1638
        %v1651 = vpop.xlane.xlu0 %1650
        %1652 = vadd.xlane.f32.xlu0 %v1639
        %v1653 = vpop.xlane.xlu0 %1652
        %1654 = vadd.xlane.f32.xlu0 %v1640
        %v1655 = vpop.xlane.xlu0 %1654
        %1656 = vadd.xlane.f32.xlu0 %v1641
        %v1657 = vpop.xlane.xlu0 %1656
        %v1658 = vmul.f32 %v1643, %v851
        %v1659 = vmul.f32 %v1645, %v851
        %v1660 = vmul.f32 %v1647, %v851
        %v1661 = vmul.f32 %v1649, %v851
        %v1662 = vmul.f32 %v1651, %v851
        %v1663 = vmul.f32 %v1653, %v851
        %v1664 = vmul.f32 %v1655, %v851
        %v1665 = vmul.f32 %v1657, %v851
        %v1666 = vadd.f32 %v1658, 1e-05
        %v1667 = vadd.f32 %v1659, 1e-05
        %v1668 = vadd.f32 %v1660, 1e-05
        %v1669 = vadd.f32 %v1661, 1e-05
        %v1670 = vadd.f32 %v1662, 1e-05
        %v1671 = vadd.f32 %v1663, 1e-05
        %v1672 = vadd.f32 %v1664, 1e-05
        %v1673 = vadd.f32 %v1665, 1e-05
        %v1674 = vrsqrt.pop %v1666
        %v1675 = vmul.f32 %v1674, %v1666
        %v1676 = vmul.f32 %v1675, %v1674
        %v1677 = vmul.f32 0.5, %v1676
        %v1678 = vsub.f32 1.5, %v1677
        %v1679 = vmul.f32 %v1674, %v1678
        %vm1680 = vweird.f32 %v1666
        %vm1681 = vweird.f32 %v1674
        %vm1682 = vmor %vm1680, %vm1681
        %v1683 = vsel %vm1682, %v1674, %v1679
        %v1684 = vrsqrt.pop %v1667
        %v1685 = vmul.f32 %v1684, %v1667
        %v1686 = vmul.f32 %v1685, %v1684
        %v1687 = vmul.f32 0.5, %v1686
        %v1688 = vsub.f32 1.5, %v1687
        %v1689 = vmul.f32 %v1684, %v1688
        %vm1690 = vweird.f32 %v1667
        %vm1691 = vweird.f32 %v1684
        %vm1692 = vmor %vm1690, %vm1691
        %v1693 = vsel %vm1692, %v1684, %v1689
        %v1694 = vrsqrt.pop %v1668
        %v1695 = vmul.f32 %v1694, %v1668
        %v1696 = vmul.f32 %v1695, %v1694
        %v1697 = vmul.f32 0.5, %v1696
        %v1698 = vsub.f32 1.5, %v1697
        %v1699 = vmul.f32 %v1694, %v1698
        %vm1700 = vweird.f32 %v1668
        %vm1701 = vweird.f32 %v1694
        %vm1702 = vmor %vm1700, %vm1701
        %v1703 = vsel %vm1702, %v1694, %v1699
        %v1704 = vrsqrt.pop %v1669
        %v1705 = vmul.f32 %v1704, %v1669
        %v1706 = vmul.f32 %v1705, %v1704
        %v1707 = vmul.f32 0.5, %v1706
        %v1708 = vsub.f32 1.5, %v1707
        %v1709 = vmul.f32 %v1704, %v1708
        %vm1710 = vweird.f32 %v1669
        %vm1711 = vweird.f32 %v1704
        %vm1712 = vmor %vm1710, %vm1711
        %v1713 = vsel %vm1712, %v1704, %v1709
        %v1714 = vrsqrt.pop %v1670
        %v1715 = vmul.f32 %v1714, %v1670
        %v1716 = vmul.f32 %v1715, %v1714
        %v1717 = vmul.f32 0.5, %v1716
        %v1718 = vsub.f32 1.5, %v1717
        %v1719 = vmul.f32 %v1714, %v1718
        %vm1720 = vweird.f32 %v1670
        %vm1721 = vweird.f32 %v1714
        %vm1722 = vmor %vm1720, %vm1721
        %v1723 = vsel %vm1722, %v1714, %v1719
        %v1724 = vrsqrt.pop %v1671
        %v1725 = vmul.f32 %v1724, %v1671
        %v1726 = vmul.f32 %v1725, %v1724
        %v1727 = vmul.f32 0.5, %v1726
        %v1728 = vsub.f32 1.5, %v1727
        %v1729 = vmul.f32 %v1724, %v1728
        %vm1730 = vweird.f32 %v1671
        %vm1731 = vweird.f32 %v1724
        %vm1732 = vmor %vm1730, %vm1731
        %v1733 = vsel %vm1732, %v1724, %v1729
        %v1734 = vrsqrt.pop %v1672
        %v1735 = vmul.f32 %v1734, %v1672
        %v1736 = vmul.f32 %v1735, %v1734
        %v1737 = vmul.f32 0.5, %v1736
        %v1738 = vsub.f32 1.5, %v1737
        %v1739 = vmul.f32 %v1734, %v1738
        %vm1740 = vweird.f32 %v1672
        %vm1741 = vweird.f32 %v1734
        %vm1742 = vmor %vm1740, %vm1741
        %v1743 = vsel %vm1742, %v1734, %v1739
        %v1744 = vrsqrt.pop %v1673
        %v1745 = vmul.f32 %v1744, %v1673
        %v1746 = vmul.f32 %v1745, %v1744
        %v1747 = vmul.f32 0.5, %v1746
        %v1748 = vsub.f32 1.5, %v1747
        %v1749 = vmul.f32 %v1744, %v1748
        %vm1750 = vweird.f32 %v1673
        %vm1751 = vweird.f32 %v1744
        %vm1752 = vmor %vm1750, %vm1751
        %v1753 = vsel %vm1752, %v1744, %v1749
        %v1754 = vmul.f32 %v1626, %v1683
        %v1755 = vmul.f32 %v1627, %v1693
        %v1756 = vmul.f32 %v1628, %v1703
        %v1757 = vmul.f32 %v1629, %v1713
        %v1758 = vmul.f32 %v1630, %v1723
        %v1759 = vmul.f32 %v1631, %v1733
        %v1760 = vmul.f32 %v1632, %v1743
        %v1761 = vmul.f32 %v1633, %v1753
        %v1763 = vperm.slane %v1599, 0
        %v1765 = vmul.f32 %v1754, %v1763
        %v1766 = vmul.f32 %v1755, %v1763
        %v1767 = vmul.f32 %v1756, %v1763
        %v1768 = vmul.f32 %v1757, %v1763
        %v1769 = vmul.f32 %v1758, %v1763
        %v1770 = vmul.f32 %v1759, %v1763
        %v1771 = vmul.f32 %v1760, %v1763
        %v1772 = vmul.f32 %v1761, %v1763
        %v1774 = vperm.slane %v1601, 0
        %v1776 = vadd.f32 %v1765, %v1774
        %v1777 = vadd.f32 %v1766, %v1774
        %v1778 = vadd.f32 %v1767, %v1774
        %v1779 = vadd.f32 %v1768, %v1774
        %v1780 = vadd.f32 %v1769, %v1774
        %v1781 = vadd.f32 %v1770, %v1774
        %v1782 = vadd.f32 %v1771, %v1774
        %v1783 = vadd.f32 %v1772, %v1774
        %s1784 = scalar_lea.vmem [#allocation16], 256
        %v1785 = vld [vmem:[%s1784] sm:$0xff]
        %v1786 = vld [vmem:[%s1784 + $0x8] sm:$0xff]
        %v1787 = vld [vmem:[%s1784 + $0x10] sm:$0xff]
        %v1788 = vld [vmem:[%s1784 + $0x18] sm:$0xff]
        %v1789 = vld [vmem:[%s1784 + $0x20] sm:$0xff]
        %v1790 = vld [vmem:[%s1784 + $0x28] sm:$0xff]
        %v1791 = vld [vmem:[%s1784 + $0x30] sm:$0xff]
        %v1792 = vld [vmem:[%s1784 + $0x38] sm:$0xff]
        %v1793 = vld [vmem:[%s1784 + $0x40] sm:$0xff]
        %v1794 = vld [vmem:[%s1784 + $0x48] sm:$0xff]
        %v1795 = vld [vmem:[%s1784 + $0x50] sm:$0xff]
        %v1796 = vld [vmem:[%s1784 + $0x58] sm:$0xff]
        %v1797 = vld [vmem:[%s1784 + $0x60] sm:$0xff]
        %v1798 = vld [vmem:[%s1784 + $0x68] sm:$0xff]
        %v1799 = vld [vmem:[%s1784 + $0x70] sm:$0xff]
        %v1800 = vld [vmem:[%s1784 + $0x78] sm:$0xff]
        %v1801 = vld [vmem:[%s1784 + $0x80] sm:$0xff]
        %v1802 = vld [vmem:[%s1784 + $0x88] sm:$0xff]
        %v1803 = vld [vmem:[%s1784 + $0x90] sm:$0xff]
        %v1804 = vld [vmem:[%s1784 + $0x98] sm:$0xff]
        %v1805 = vld [vmem:[%s1784 + $0xa0] sm:$0xff]
        %v1806 = vld [vmem:[%s1784 + $0xa8] sm:$0xff]
        %v1807 = vld [vmem:[%s1784 + $0xb0] sm:$0xff]
        %v1808 = vld [vmem:[%s1784 + $0xb8] sm:$0xff]
        %v1809 = vld [vmem:[%s1784 + $0xc0] sm:$0xff]
        %v1810 = vld [vmem:[%s1784 + $0xc8] sm:$0xff]
        %v1811 = vld [vmem:[%s1784 + $0xd0] sm:$0xff]
        %v1812 = vld [vmem:[%s1784 + $0xd8] sm:$0xff]
        %v1813 = vld [vmem:[%s1784 + $0xe0] sm:$0xff]
        %v1814 = vld [vmem:[%s1784 + $0xe8] sm:$0xff]
        %v1815 = vld [vmem:[%s1784 + $0xf0] sm:$0xff]
        %v1816 = vld [vmem:[%s1784 + $0xf8] sm:$0xff]
        %s1817 = scalar_lea.vmem %s9, 2
        %v1818 = vld [vmem:[%s1817] sm:$0x3]
        %v1820 = vperm.slane %v1818, 0
        %v1821 = vperm.slane %v1818, 1
        %1824 = vmatpush.msra.mxu0 %v1815
        %1825 = vmatpush.msra.mxu0 %v1813
        %1826 = vmatpush.msra.mxu0 %v1811
        %1827 = vmatpush.msra.mxu0 %v1809
        %1828 = vmatpush.msra.mxu0 %v1807
        %1829 = vmatpush.msra.mxu0 %v1805
        %1830 = vmatpush.msra.mxu0 %v1803
        %1831 = vmatpush.msra.mxu0 %v1801
        %1832 = vmatpush.msra.mxu0 %v1799
        %1833 = vmatpush.msra.mxu0 %v1797
        %1834 = vmatpush.msra.mxu0 %v1795
        %1835 = vmatpush.msra.mxu0 %v1793
        %1836 = vmatpush.msra.mxu0 %v1791
        %1837 = vmatpush.msra.mxu0 %v1789
        %1838 = vmatpush.msra.mxu0 %v1787
        %1839 = vmatpush.msra.mxu0 %v1785
        %1840 = vmatmul.f32.gmra.mxu0 %v1776
        %v1841 = vpop.f32.mrf.mxu0
        %v1842 = vadd.f32 %v1820, %v1841
        %1843 = vmatmul.f32.gmra.mxu0 %v1777
        %v1844 = vpop.f32.mrf.mxu0
        %v1845 = vadd.f32 %v1820, %v1844
        %1846 = vmatmul.f32.gmra.mxu0 %v1778
        %v1847 = vpop.f32.mrf.mxu0
        %v1848 = vadd.f32 %v1820, %v1847
        %1849 = vmatmul.f32.gmra.mxu0 %v1779
        %v1850 = vpop.f32.mrf.mxu0
        %v1851 = vadd.f32 %v1820, %v1850
        %1852 = vmatmul.f32.gmra.mxu0 %v1780
        %v1853 = vpop.f32.mrf.mxu0
        %v1854 = vadd.f32 %v1820, %v1853
        %1855 = vmatmul.f32.gmra.mxu0 %v1781
        %v1856 = vpop.f32.mrf.mxu0
        %v1857 = vadd.f32 %v1820, %v1856
        %1858 = vmatmul.f32.gmra.mxu0 %v1782
        %v1859 = vpop.f32.mrf.mxu0
        %v1860 = vadd.f32 %v1820, %v1859
        %1861 = vmatmul.f32.gmra.mxu0 %v1783
        %v1862 = vpop.f32.mrf.mxu0
        %v1863 = vadd.f32 %v1820, %v1862
        %1864 = vdwg.mxu0
        %1865 = vmatpush.msra.mxu0 %v1816
        %1866 = vmatpush.msra.mxu0 %v1814
        %1867 = vmatpush.msra.mxu0 %v1812
        %1868 = vmatpush.msra.mxu0 %v1810
        %1869 = vmatpush.msra.mxu0 %v1808
        %1870 = vmatpush.msra.mxu0 %v1806
        %1871 = vmatpush.msra.mxu0 %v1804
        %1872 = vmatpush.msra.mxu0 %v1802
        %1873 = vmatpush.msra.mxu0 %v1800
        %1874 = vmatpush.msra.mxu0 %v1798
        %1875 = vmatpush.msra.mxu0 %v1796
        %1876 = vmatpush.msra.mxu0 %v1794
        %1877 = vmatpush.msra.mxu0 %v1792
        %1878 = vmatpush.msra.mxu0 %v1790
        %1879 = vmatpush.msra.mxu0 %v1788
        %1880 = vmatpush.msra.mxu0 %v1786
        %1881 = vmatmul.f32.gmra.mxu0 %v1776
        %v1882 = vpop.f32.mrf.mxu0
        %v1883 = vadd.f32 %v1821, %v1882
        %1884 = vmatmul.f32.gmra.mxu0 %v1777
        %v1885 = vpop.f32.mrf.mxu0
        %v1886 = vadd.f32 %v1821, %v1885
        %1887 = vmatmul.f32.gmra.mxu0 %v1778
        %v1888 = vpop.f32.mrf.mxu0
        %v1889 = vadd.f32 %v1821, %v1888
        %1890 = vmatmul.f32.gmra.mxu0 %v1779
        %v1891 = vpop.f32.mrf.mxu0
        %v1892 = vadd.f32 %v1821, %v1891
        %1893 = vmatmul.f32.gmra.mxu0 %v1780
        %v1894 = vpop.f32.mrf.mxu0
        %v1895 = vadd.f32 %v1821, %v1894
        %1896 = vmatmul.f32.gmra.mxu0 %v1781
        %v1897 = vpop.f32.mrf.mxu0
        %v1898 = vadd.f32 %v1821, %v1897
        %1899 = vmatmul.f32.gmra.mxu0 %v1782
        %v1900 = vpop.f32.mrf.mxu0
        %v1901 = vadd.f32 %v1821, %v1900
        %1902 = vmatmul.f32.gmra.mxu0 %v1783
        %v1903 = vpop.f32.mrf.mxu0
        %v1904 = vadd.f32 %v1821, %v1903
        %1905 = vdwg.mxu0
        %v1906 = vmax.f32 %v1842, 0.0
        %v1907 = vmax.f32 %v1883, 0.0
        %v1908 = vmax.f32 %v1845, 0.0
        %v1909 = vmax.f32 %v1886, 0.0
        %v1910 = vmax.f32 %v1848, 0.0
        %v1911 = vmax.f32 %v1889, 0.0
        %v1912 = vmax.f32 %v1851, 0.0
        %v1913 = vmax.f32 %v1892, 0.0
        %v1914 = vmax.f32 %v1854, 0.0
        %v1915 = vmax.f32 %v1895, 0.0
        %v1916 = vmax.f32 %v1857, 0.0
        %v1917 = vmax.f32 %v1898, 0.0
        %v1918 = vmax.f32 %v1860, 0.0
        %v1919 = vmax.f32 %v1901, 0.0
        %v1920 = vmax.f32 %v1863, 0.0
        %v1921 = vmax.f32 %v1904, 0.0
        %s1922 = scalar_lea.vmem [#allocation17], 256
        %v1923 = vld [vmem:[%s1922] sm:$0xff]
        %v1924 = vld [vmem:[%s1922 + $0x8] sm:$0xff]
        %v1925 = vld [vmem:[%s1922 + $0x10] sm:$0xff]
        %v1926 = vld [vmem:[%s1922 + $0x18] sm:$0xff]
        %v1927 = vld [vmem:[%s1922 + $0x20] sm:$0xff]
        %v1928 = vld [vmem:[%s1922 + $0x28] sm:$0xff]
        %v1929 = vld [vmem:[%s1922 + $0x30] sm:$0xff]
        %v1930 = vld [vmem:[%s1922 + $0x38] sm:$0xff]
        %v1931 = vld [vmem:[%s1922 + $0x40] sm:$0xff]
        %v1932 = vld [vmem:[%s1922 + $0x48] sm:$0xff]
        %v1933 = vld [vmem:[%s1922 + $0x50] sm:$0xff]
        %v1934 = vld [vmem:[%s1922 + $0x58] sm:$0xff]
        %v1935 = vld [vmem:[%s1922 + $0x60] sm:$0xff]
        %v1936 = vld [vmem:[%s1922 + $0x68] sm:$0xff]
        %v1937 = vld [vmem:[%s1922 + $0x70] sm:$0xff]
        %v1938 = vld [vmem:[%s1922 + $0x78] sm:$0xff]
        %v1939 = vld [vmem:[%s1922 + $0x80] sm:$0xff]
        %v1940 = vld [vmem:[%s1922 + $0x88] sm:$0xff]
        %v1941 = vld [vmem:[%s1922 + $0x90] sm:$0xff]
        %v1942 = vld [vmem:[%s1922 + $0x98] sm:$0xff]
        %v1943 = vld [vmem:[%s1922 + $0xa0] sm:$0xff]
        %v1944 = vld [vmem:[%s1922 + $0xa8] sm:$0xff]
        %v1945 = vld [vmem:[%s1922 + $0xb0] sm:$0xff]
        %v1946 = vld [vmem:[%s1922 + $0xb8] sm:$0xff]
        %v1947 = vld [vmem:[%s1922 + $0xc0] sm:$0xff]
        %v1948 = vld [vmem:[%s1922 + $0xc8] sm:$0xff]
        %v1949 = vld [vmem:[%s1922 + $0xd0] sm:$0xff]
        %v1950 = vld [vmem:[%s1922 + $0xd8] sm:$0xff]
        %v1951 = vld [vmem:[%s1922 + $0xe0] sm:$0xff]
        %v1952 = vld [vmem:[%s1922 + $0xe8] sm:$0xff]
        %v1953 = vld [vmem:[%s1922 + $0xf0] sm:$0xff]
        %v1954 = vld [vmem:[%s1922 + $0xf8] sm:$0xff]
        %s1955 = scalar_lea.vmem %s11, 1
        %v1956 = vld [vmem:[%s1955] sm:$0x1]
        %v1958 = vperm.slane %v1956, 0
        %1960 = vmatpush.msra.mxu0 %v1938
        %1961 = vmatpush.msra.mxu0 %v1937
        %1962 = vmatpush.msra.mxu0 %v1936
        %1963 = vmatpush.msra.mxu0 %v1935
        %1964 = vmatpush.msra.mxu0 %v1934
        %1965 = vmatpush.msra.mxu0 %v1933
        %1966 = vmatpush.msra.mxu0 %v1932
        %1967 = vmatpush.msra.mxu0 %v1931
        %1968 = vmatpush.msra.mxu0 %v1930
        %1969 = vmatpush.msra.mxu0 %v1929
        %1970 = vmatpush.msra.mxu0 %v1928
        %1971 = vmatpush.msra.mxu0 %v1927
        %1972 = vmatpush.msra.mxu0 %v1926
        %1973 = vmatpush.msra.mxu0 %v1925
        %1974 = vmatpush.msra.mxu0 %v1924
        %1975 = vmatpush.msra.mxu0 %v1923
        %1976 = vmatmul.f32.gmra.mxu0 %v1906
        %v1977 = vpop.f32.mrf.mxu0
        %v1978 = vadd.f32 %v1958, %v1977
        %1979 = vmatmul.f32.gmra.mxu0 %v1908
        %v1980 = vpop.f32.mrf.mxu0
        %v1981 = vadd.f32 %v1958, %v1980
        %1982 = vmatmul.f32.gmra.mxu0 %v1910
        %v1983 = vpop.f32.mrf.mxu0
        %v1984 = vadd.f32 %v1958, %v1983
        %1985 = vmatmul.f32.gmra.mxu0 %v1912
        %v1986 = vpop.f32.mrf.mxu0
        %v1987 = vadd.f32 %v1958, %v1986
        %1988 = vmatmul.f32.gmra.mxu0 %v1914
        %v1989 = vpop.f32.mrf.mxu0
        %v1990 = vadd.f32 %v1958, %v1989
        %1991 = vmatmul.f32.gmra.mxu0 %v1916
        %v1992 = vpop.f32.mrf.mxu0
        %v1993 = vadd.f32 %v1958, %v1992
        %1994 = vmatmul.f32.gmra.mxu0 %v1918
        %v1995 = vpop.f32.mrf.mxu0
        %v1996 = vadd.f32 %v1958, %v1995
        %1997 = vmatmul.f32.gmra.mxu0 %v1920
        %v1998 = vpop.f32.mrf.mxu0
        %v1999 = vadd.f32 %v1958, %v1998
        %2000 = vdwg.mxu0
        %2001 = vmatpush.msra.mxu0 %v1954
        %2002 = vmatpush.msra.mxu0 %v1953
        %2003 = vmatpush.msra.mxu0 %v1952
        %2004 = vmatpush.msra.mxu0 %v1951
        %2005 = vmatpush.msra.mxu0 %v1950
        %2006 = vmatpush.msra.mxu0 %v1949
        %2007 = vmatpush.msra.mxu0 %v1948
        %2008 = vmatpush.msra.mxu0 %v1947
        %2009 = vmatpush.msra.mxu0 %v1946
        %2010 = vmatpush.msra.mxu0 %v1945
        %2011 = vmatpush.msra.mxu0 %v1944
        %2012 = vmatpush.msra.mxu0 %v1943
        %2013 = vmatpush.msra.mxu0 %v1942
        %2014 = vmatpush.msra.mxu0 %v1941
        %2015 = vmatpush.msra.mxu0 %v1940
        %2016 = vmatpush.msra.mxu0 %v1939
        %2017 = vmatmul.f32.gmra.mxu0 %v1907
        %v2018 = vpop.f32.mrf.mxu0
        %v2019 = vadd.f32 %v1978, %v2018
        %2020 = vmatmul.f32.gmra.mxu0 %v1909
        %v2021 = vpop.f32.mrf.mxu0
        %v2022 = vadd.f32 %v1981, %v2021
        %2023 = vmatmul.f32.gmra.mxu0 %v1911
        %v2024 = vpop.f32.mrf.mxu0
        %v2025 = vadd.f32 %v1984, %v2024
        %2026 = vmatmul.f32.gmra.mxu0 %v1913
        %v2027 = vpop.f32.mrf.mxu0
        %v2028 = vadd.f32 %v1987, %v2027
        %2029 = vmatmul.f32.gmra.mxu0 %v1915
        %v2030 = vpop.f32.mrf.mxu0
        %v2031 = vadd.f32 %v1990, %v2030
        %2032 = vmatmul.f32.gmra.mxu0 %v1917
        %v2033 = vpop.f32.mrf.mxu0
        %v2034 = vadd.f32 %v1993, %v2033
        %2035 = vmatmul.f32.gmra.mxu0 %v1919
        %v2036 = vpop.f32.mrf.mxu0
        %v2037 = vadd.f32 %v1996, %v2036
        %2038 = vmatmul.f32.gmra.mxu0 %v1921
        %v2039 = vpop.f32.mrf.mxu0
        %v2040 = vadd.f32 %v1999, %v2039
        %2041 = vdwg.mxu0
        %v2042 = vadd.f32 %v1776, %v2019
        %v2043 = vadd.f32 %v1777, %v2022
        %v2044 = vadd.f32 %v1778, %v2025
        %v2045 = vadd.f32 %v1779, %v2028
        %v2046 = vadd.f32 %v1780, %v2031
        %v2047 = vadd.f32 %v1781, %v2034
        %v2048 = vadd.f32 %v1782, %v2037
        %v2049 = vadd.f32 %v1783, %v2040
        %s2050 = scalar_lea.vmem [#allocation19], 1
        %v2051 = vld [vmem:[%s2050] sm:$0x1]
        %s2052 = scalar_lea.vmem %s13, 1
        %v2053 = vld [vmem:[%s2052] sm:$0x1]
        %2054 = vadd.xlane.f32.xlu0 %v2042
        %v2055 = vpop.xlane.xlu0 %2054
        %2056 = vadd.xlane.f32.xlu0 %v2043
        %v2057 = vpop.xlane.xlu0 %2056
        %2058 = vadd.xlane.f32.xlu0 %v2044
        %v2059 = vpop.xlane.xlu0 %2058
        %2060 = vadd.xlane.f32.xlu0 %v2045
        %v2061 = vpop.xlane.xlu0 %2060
        %2062 = vadd.xlane.f32.xlu0 %v2046
        %v2063 = vpop.xlane.xlu0 %2062
        %2064 = vadd.xlane.f32.xlu0 %v2047
        %v2065 = vpop.xlane.xlu0 %2064
        %2066 = vadd.xlane.f32.xlu0 %v2048
        %v2067 = vpop.xlane.xlu0 %2066
        %2068 = vadd.xlane.f32.xlu0 %v2049
        %v2069 = vpop.xlane.xlu0 %2068
        %v2070 = vmul.f32 %v2055, %v851
        %v2071 = vmul.f32 %v2057, %v851
        %v2072 = vmul.f32 %v2059, %v851
        %v2073 = vmul.f32 %v2061, %v851
        %v2074 = vmul.f32 %v2063, %v851
        %v2075 = vmul.f32 %v2065, %v851
        %v2076 = vmul.f32 %v2067, %v851
        %v2077 = vmul.f32 %v2069, %v851
        %v2078 = vsub.f32 %v2042, %v2070
        %v2079 = vsub.f32 %v2043, %v2071
        %v2080 = vsub.f32 %v2044, %v2072
        %v2081 = vsub.f32 %v2045, %v2073
        %v2082 = vsub.f32 %v2046, %v2074
        %v2083 = vsub.f32 %v2047, %v2075
        %v2084 = vsub.f32 %v2048, %v2076
        %v2085 = vsub.f32 %v2049, %v2077
        %v2086 = vmul.f32 %v2078, %v2078
        %v2087 = vmul.f32 %v2079, %v2079
        %v2088 = vmul.f32 %v2080, %v2080
        %v2089 = vmul.f32 %v2081, %v2081
        %v2090 = vmul.f32 %v2082, %v2082
        %v2091 = vmul.f32 %v2083, %v2083
        %v2092 = vmul.f32 %v2084, %v2084
        %v2093 = vmul.f32 %v2085, %v2085
        %2094 = vadd.xlane.f32.xlu0 %v2086
        %v2095 = vpop.xlane.xlu0 %2094
        %2096 = vadd.xlane.f32.xlu0 %v2087
        %v2097 = vpop.xlane.xlu0 %2096
        %2098 = vadd.xlane.f32.xlu0 %v2088
        %v2099 = vpop.xlane.xlu0 %2098
        %2100 = vadd.xlane.f32.xlu0 %v2089
        %v2101 = vpop.xlane.xlu0 %2100
        %2102 = vadd.xlane.f32.xlu0 %v2090
        %v2103 = vpop.xlane.xlu0 %2102
        %2104 = vadd.xlane.f32.xlu0 %v2091
        %v2105 = vpop.xlane.xlu0 %2104
        %2106 = vadd.xlane.f32.xlu0 %v2092
        %v2107 = vpop.xlane.xlu0 %2106
        %2108 = vadd.xlane.f32.xlu0 %v2093
        %v2109 = vpop.xlane.xlu0 %2108
        %v2110 = vmul.f32 %v2095, %v851
        %v2111 = vmul.f32 %v2097, %v851
        %v2112 = vmul.f32 %v2099, %v851
        %v2113 = vmul.f32 %v2101, %v851
        %v2114 = vmul.f32 %v2103, %v851
        %v2115 = vmul.f32 %v2105, %v851
        %v2116 = vmul.f32 %v2107, %v851
        %v2117 = vmul.f32 %v2109, %v851
        %v2118 = vadd.f32 %v2110, 1e-05
        %v2119 = vadd.f32 %v2111, 1e-05
        %v2120 = vadd.f32 %v2112, 1e-05
        %v2121 = vadd.f32 %v2113, 1e-05
        %v2122 = vadd.f32 %v2114, 1e-05
        %v2123 = vadd.f32 %v2115, 1e-05
        %v2124 = vadd.f32 %v2116, 1e-05
        %v2125 = vadd.f32 %v2117, 1e-05
        %v2126 = vrsqrt.pop %v2118
        %v2127 = vmul.f32 %v2126, %v2118
        %v2128 = vmul.f32 %v2127, %v2126
        %v2129 = vmul.f32 0.5, %v2128
        %v2130 = vsub.f32 1.5, %v2129
        %v2131 = vmul.f32 %v2126, %v2130
        %vm2132 = vweird.f32 %v2118
        %vm2133 = vweird.f32 %v2126
        %vm2134 = vmor %vm2132, %vm2133
        %v2135 = vsel %vm2134, %v2126, %v2131
        %v2136 = vrsqrt.pop %v2119
        %v2137 = vmul.f32 %v2136, %v2119
        %v2138 = vmul.f32 %v2137, %v2136
        %v2139 = vmul.f32 0.5, %v2138
        %v2140 = vsub.f32 1.5, %v2139
        %v2141 = vmul.f32 %v2136, %v2140
        %vm2142 = vweird.f32 %v2119
        %vm2143 = vweird.f32 %v2136
        %vm2144 = vmor %vm2142, %vm2143
        %v2145 = vsel %vm2144, %v2136, %v2141
        %v2146 = vrsqrt.pop %v2120
        %v2147 = vmul.f32 %v2146, %v2120
        %v2148 = vmul.f32 %v2147, %v2146
        %v2149 = vmul.f32 0.5, %v2148
        %v2150 = vsub.f32 1.5, %v2149
        %v2151 = vmul.f32 %v2146, %v2150
        %vm2152 = vweird.f32 %v2120
        %vm2153 = vweird.f32 %v2146
        %vm2154 = vmor %vm2152, %vm2153
        %v2155 = vsel %vm2154, %v2146, %v2151
        %v2156 = vrsqrt.pop %v2121
        %v2157 = vmul.f32 %v2156, %v2121
        %v2158 = vmul.f32 %v2157, %v2156
        %v2159 = vmul.f32 0.5, %v2158
        %v2160 = vsub.f32 1.5, %v2159
        %v2161 = vmul.f32 %v2156, %v2160
        %vm2162 = vweird.f32 %v2121
        %vm2163 = vweird.f32 %v2156
        %vm2164 = vmor %vm2162, %vm2163
        %v2165 = vsel %vm2164, %v2156, %v2161
        %v2166 = vrsqrt.pop %v2122
        %v2167 = vmul.f32 %v2166, %v2122
        %v2168 = vmul.f32 %v2167, %v2166
        %v2169 = vmul.f32 0.5, %v2168
        %v2170 = vsub.f32 1.5, %v2169
        %v2171 = vmul.f32 %v2166, %v2170
        %vm2172 = vweird.f32 %v2122
        %vm2173 = vweird.f32 %v2166
        %vm2174 = vmor %vm2172, %vm2173
        %v2175 = vsel %vm2174, %v2166, %v2171
        %v2176 = vrsqrt.pop %v2123
        %v2177 = vmul.f32 %v2176, %v2123
        %v2178 = vmul.f32 %v2177, %v2176
        %v2179 = vmul.f32 0.5, %v2178
        %v2180 = vsub.f32 1.5, %v2179
        %v2181 = vmul.f32 %v2176, %v2180
        %vm2182 = vweird.f32 %v2123
        %vm2183 = vweird.f32 %v2176
        %vm2184 = vmor %vm2182, %vm2183
        %v2185 = vsel %vm2184, %v2176, %v2181
        %v2186 = vrsqrt.pop %v2124
        %v2187 = vmul.f32 %v2186, %v2124
        %v2188 = vmul.f32 %v2187, %v2186
        %v2189 = vmul.f32 0.5, %v2188
        %v2190 = vsub.f32 1.5, %v2189
        %v2191 = vmul.f32 %v2186, %v2190
        %vm2192 = vweird.f32 %v2124
        %vm2193 = vweird.f32 %v2186
        %vm2194 = vmor %vm2192, %vm2193
        %v2195 = vsel %vm2194, %v2186, %v2191
        %v2196 = vrsqrt.pop %v2125
        %v2197 = vmul.f32 %v2196, %v2125
        %v2198 = vmul.f32 %v2197, %v2196
        %v2199 = vmul.f32 0.5, %v2198
        %v2200 = vsub.f32 1.5, %v2199
        %v2201 = vmul.f32 %v2196, %v2200
        %vm2202 = vweird.f32 %v2125
        %vm2203 = vweird.f32 %v2196
        %vm2204 = vmor %vm2202, %vm2203
        %v2205 = vsel %vm2204, %v2196, %v2201
        %v2206 = vmul.f32 %v2078, %v2135
        %v2207 = vmul.f32 %v2079, %v2145
        %v2208 = vmul.f32 %v2080, %v2155
        %v2209 = vmul.f32 %v2081, %v2165
        %v2210 = vmul.f32 %v2082, %v2175
        %v2211 = vmul.f32 %v2083, %v2185
        %v2212 = vmul.f32 %v2084, %v2195
        %v2213 = vmul.f32 %v2085, %v2205
        %v2215 = vperm.slane %v2051, 0
        %v2217 = vmul.f32 %v2206, %v2215
        %v2218 = vmul.f32 %v2207, %v2215
        %v2219 = vmul.f32 %v2208, %v2215
        %v2220 = vmul.f32 %v2209, %v2215
        %v2221 = vmul.f32 %v2210, %v2215
        %v2222 = vmul.f32 %v2211, %v2215
        %v2223 = vmul.f32 %v2212, %v2215
        %v2224 = vmul.f32 %v2213, %v2215
        %v2226 = vperm.slane %v2053, 0
        %v2228 = vadd.f32 %v2217, %v2226
        %v2229 = vadd.f32 %v2218, %v2226
        %v2230 = vadd.f32 %v2219, %v2226
        %v2231 = vadd.f32 %v2220, %v2226
        %v2232 = vadd.f32 %v2221, %v2226
        %v2233 = vadd.f32 %v2222, %v2226
        %v2234 = vadd.f32 %v2223, %v2226
        %v2235 = vadd.f32 %v2224, %v2226
        %s2236 = scalar_lea.vmem [#allocation7], 256
        %v2237 = vld [vmem:[%s2236] sm:$0xff]
        %v2238 = vld [vmem:[%s2236 + $0x8] sm:$0xff]
        %v2239 = vld [vmem:[%s2236 + $0x10] sm:$0xff]
        %v2240 = vld [vmem:[%s2236 + $0x18] sm:$0xff]
        %v2241 = vld [vmem:[%s2236 + $0x20] sm:$0xff]
        %v2242 = vld [vmem:[%s2236 + $0x28] sm:$0xff]
        %v2243 = vld [vmem:[%s2236 + $0x30] sm:$0xff]
        %v2244 = vld [vmem:[%s2236 + $0x38] sm:$0xff]
        %v2245 = vld [vmem:[%s2236 + $0x40] sm:$0xff]
        %v2246 = vld [vmem:[%s2236 + $0x48] sm:$0xff]
        %v2247 = vld [vmem:[%s2236 + $0x50] sm:$0xff]
        %v2248 = vld [vmem:[%s2236 + $0x58] sm:$0xff]
        %v2249 = vld [vmem:[%s2236 + $0x60] sm:$0xff]
        %v2250 = vld [vmem:[%s2236 + $0x68] sm:$0xff]
        %v2251 = vld [vmem:[%s2236 + $0x70] sm:$0xff]
        %v2252 = vld [vmem:[%s2236 + $0x78] sm:$0xff]
        %s2253 = scalar_lea.vmem [#allocation8], 2
        %v2254 = vld [vmem:[%s2253] sm:$0x1]
        %v2256 = vperm.slane %v2254, 0
        %2258 = vmatpush.msra.mxu0 %v2252
        %2259 = vmatpush.msra.mxu0 %v2251
        %2260 = vmatpush.msra.mxu0 %v2250
        %2261 = vmatpush.msra.mxu0 %v2249
        %2262 = vmatpush.msra.mxu0 %v2248
        %2263 = vmatpush.msra.mxu0 %v2247
        %2264 = vmatpush.msra.mxu0 %v2246
        %2265 = vmatpush.msra.mxu0 %v2245
        %2266 = vmatpush.msra.mxu0 %v2244
        %2267 = vmatpush.msra.mxu0 %v2243
        %2268 = vmatpush.msra.mxu0 %v2242
        %2269 = vmatpush.msra.mxu0 %v2241
        %2270 = vmatpush.msra.mxu0 %v2240
        %2271 = vmatpush.msra.mxu0 %v2239
        %2272 = vmatpush.msra.mxu0 %v2238
        %2273 = vmatpush.msra.mxu0 %v2237
        %2274 = vmatmul.f32.gmra.mxu0 %v689
        %v2275 = vpop.f32.mrf.mxu0
        %v2276 = vadd.f32 %v2256, %v2275
        %2277 = vmatmul.f32.gmra.mxu0 %v690
        %v2278 = vpop.f32.mrf.mxu0
        %v2279 = vadd.f32 %v2256, %v2278
        %2280 = vmatmul.f32.gmra.mxu0 %v691
        %v2281 = vpop.f32.mrf.mxu0
        %v2282 = vadd.f32 %v2256, %v2281
        %2283 = vmatmul.f32.gmra.mxu0 %v692
        %v2284 = vpop.f32.mrf.mxu0
        %v2285 = vadd.f32 %v2256, %v2284
        %2286 = vmatmul.f32.gmra.mxu0 %v693
        %v2287 = vpop.f32.mrf.mxu0
        %v2288 = vadd.f32 %v2256, %v2287
        %2289 = vmatmul.f32.gmra.mxu0 %v694
        %v2290 = vpop.f32.mrf.mxu0
        %v2291 = vadd.f32 %v2256, %v2290
        %2292 = vmatmul.f32.gmra.mxu0 %v695
        %v2293 = vpop.f32.mrf.mxu0
        %v2294 = vadd.f32 %v2256, %v2293
        %2295 = vmatmul.f32.gmra.mxu0 %v696
        %v2296 = vpop.f32.mrf.mxu0
        %v2297 = vadd.f32 %v2256, %v2296
        %2298 = vdwg.mxu0
        %s2299 = scalar_lea.vmem [#allocation10], 256
        %v2300 = vld [vmem:[%s2299] sm:$0xff]
        %v2301 = vld [vmem:[%s2299 + $0x8] sm:$0xff]
        %v2302 = vld [vmem:[%s2299 + $0x10] sm:$0xff]
        %v2303 = vld [vmem:[%s2299 + $0x18] sm:$0xff]
        %v2304 = vld [vmem:[%s2299 + $0x20] sm:$0xff]
        %v2305 = vld [vmem:[%s2299 + $0x28] sm:$0xff]
        %v2306 = vld [vmem:[%s2299 + $0x30] sm:$0xff]
        %v2307 = vld [vmem:[%s2299 + $0x38] sm:$0xff]
        %v2308 = vld [vmem:[%s2299 + $0x40] sm:$0xff]
        %v2309 = vld [vmem:[%s2299 + $0x48] sm:$0xff]
        %v2310 = vld [vmem:[%s2299 + $0x50] sm:$0xff]
        %v2311 = vld [vmem:[%s2299 + $0x58] sm:$0xff]
        %v2312 = vld [vmem:[%s2299 + $0x60] sm:$0xff]
        %v2313 = vld [vmem:[%s2299 + $0x68] sm:$0xff]
        %v2314 = vld [vmem:[%s2299 + $0x70] sm:$0xff]
        %v2315 = vld [vmem:[%s2299 + $0x78] sm:$0xff]
        %s2316 = scalar_lea.vmem [#allocation11], 2
        %v2317 = vld [vmem:[%s2316] sm:$0x1]
        %v2319 = vperm.slane %v2317, 0
        %2321 = vmatpush.msra.mxu0 %v2315
        %2322 = vmatpush.msra.mxu0 %v2314
        %2323 = vmatpush.msra.mxu0 %v2313
        %2324 = vmatpush.msra.mxu0 %v2312
        %2325 = vmatpush.msra.mxu0 %v2311
        %2326 = vmatpush.msra.mxu0 %v2310
        %2327 = vmatpush.msra.mxu0 %v2309
        %2328 = vmatpush.msra.mxu0 %v2308
        %2329 = vmatpush.msra.mxu0 %v2307
        %2330 = vmatpush.msra.mxu0 %v2306
        %2331 = vmatpush.msra.mxu0 %v2305
        %2332 = vmatpush.msra.mxu0 %v2304
        %2333 = vmatpush.msra.mxu0 %v2303
        %2334 = vmatpush.msra.mxu0 %v2302
        %2335 = vmatpush.msra.mxu0 %v2301
        %2336 = vmatpush.msra.mxu0 %v2300
        %2337 = vmatmul.f32.gmra.mxu0 %v2276
        %v2338 = vpop.f32.mrf.mxu0
        %v2339 = vadd.f32 %v2319, %v2338
        %2340 = vmatmul.f32.gmra.mxu0 %v2279
        %v2341 = vpop.f32.mrf.mxu0
        %v2342 = vadd.f32 %v2319, %v2341
        %2343 = vmatmul.f32.gmra.mxu0 %v2282
        %v2344 = vpop.f32.mrf.mxu0
        %v2345 = vadd.f32 %v2319, %v2344
        %2346 = vmatmul.f32.gmra.mxu0 %v2285
        %v2347 = vpop.f32.mrf.mxu0
        %v2348 = vadd.f32 %v2319, %v2347
        %2349 = vmatmul.f32.gmra.mxu0 %v2288
        %v2350 = vpop.f32.mrf.mxu0
        %v2351 = vadd.f32 %v2319, %v2350
        %2352 = vmatmul.f32.gmra.mxu0 %v2291
        %v2353 = vpop.f32.mrf.mxu0
        %v2354 = vadd.f32 %v2319, %v2353
        %2355 = vmatmul.f32.gmra.mxu0 %v2294
        %v2356 = vpop.f32.mrf.mxu0
        %v2357 = vadd.f32 %v2319, %v2356
        %2358 = vmatmul.f32.gmra.mxu0 %v2297
        %v2359 = vpop.f32.mrf.mxu0
        %v2360 = vadd.f32 %v2319, %v2359
        %2361 = vdwg.mxu0
        %v2362 = vadd.f32 %v2339, %v2228
        %v2363 = vadd.f32 %v2342, %v2229
        %v2364 = vadd.f32 %v2345, %v2230
        %v2365 = vadd.f32 %v2348, %v2231
        %v2366 = vadd.f32 %v2351, %v2232
        %v2367 = vadd.f32 %v2354, %v2233
        %v2368 = vadd.f32 %v2357, %v2234
        %v2369 = vadd.f32 %v2360, %v2235
        %s2370 = scalar_lea.vmem [#allocation13], 2
        %v2371 = vld [vmem:[%s2370] sm:$0x1]
        %s2372 = scalar_lea.vmem [#allocation14], 2
        %v2373 = vld [vmem:[%s2372] sm:$0x1]
        %2374 = vadd.xlane.f32.xlu0 %v2362
        %v2375 = vpop.xlane.xlu0 %2374
        %2376 = vadd.xlane.f32.xlu0 %v2363
        %v2377 = vpop.xlane.xlu0 %2376
        %2378 = vadd.xlane.f32.xlu0 %v2364
        %v2379 = vpop.xlane.xlu0 %2378
        %2380 = vadd.xlane.f32.xlu0 %v2365
        %v2381 = vpop.xlane.xlu0 %2380
        %2382 = vadd.xlane.f32.xlu0 %v2366
        %v2383 = vpop.xlane.xlu0 %2382
        %2384 = vadd.xlane.f32.xlu0 %v2367
        %v2385 = vpop.xlane.xlu0 %2384
        %2386 = vadd.xlane.f32.xlu0 %v2368
        %v2387 = vpop.xlane.xlu0 %2386
        %2388 = vadd.xlane.f32.xlu0 %v2369
        %v2389 = vpop.xlane.xlu0 %2388
        %v2390 = vmul.f32 %v2375, %v851
        %v2391 = vmul.f32 %v2377, %v851
        %v2392 = vmul.f32 %v2379, %v851
        %v2393 = vmul.f32 %v2381, %v851
        %v2394 = vmul.f32 %v2383, %v851
        %v2395 = vmul.f32 %v2385, %v851
        %v2396 = vmul.f32 %v2387, %v851
        %v2397 = vmul.f32 %v2389, %v851
        %v2398 = vsub.f32 %v2362, %v2390
        %v2399 = vsub.f32 %v2363, %v2391
        %v2400 = vsub.f32 %v2364, %v2392
        %v2401 = vsub.f32 %v2365, %v2393
        %v2402 = vsub.f32 %v2366, %v2394
        %v2403 = vsub.f32 %v2367, %v2395
        %v2404 = vsub.f32 %v2368, %v2396
        %v2405 = vsub.f32 %v2369, %v2397
        %v2406 = vmul.f32 %v2398, %v2398
        %v2407 = vmul.f32 %v2399, %v2399
        %v2408 = vmul.f32 %v2400, %v2400
        %v2409 = vmul.f32 %v2401, %v2401
        %v2410 = vmul.f32 %v2402, %v2402
        %v2411 = vmul.f32 %v2403, %v2403
        %v2412 = vmul.f32 %v2404, %v2404
        %v2413 = vmul.f32 %v2405, %v2405
        %2414 = vadd.xlane.f32.xlu0 %v2406
        %v2415 = vpop.xlane.xlu0 %2414
        %2416 = vadd.xlane.f32.xlu0 %v2407
        %v2417 = vpop.xlane.xlu0 %2416
        %2418 = vadd.xlane.f32.xlu0 %v2408
        %v2419 = vpop.xlane.xlu0 %2418
        %2420 = vadd.xlane.f32.xlu0 %v2409
        %v2421 = vpop.xlane.xlu0 %2420
        %2422 = vadd.xlane.f32.xlu0 %v2410
        %v2423 = vpop.xlane.xlu0 %2422
        %2424 = vadd.xlane.f32.xlu0 %v2411
        %v2425 = vpop.xlane.xlu0 %2424
        %2426 = vadd.xlane.f32.xlu0 %v2412
        %v2427 = vpop.xlane.xlu0 %2426
        %2428 = vadd.xlane.f32.xlu0 %v2413
        %v2429 = vpop.xlane.xlu0 %2428
        %v2430 = vmul.f32 %v2415, %v851
        %v2431 = vmul.f32 %v2417, %v851
        %v2432 = vmul.f32 %v2419, %v851
        %v2433 = vmul.f32 %v2421, %v851
        %v2434 = vmul.f32 %v2423, %v851
        %v2435 = vmul.f32 %v2425, %v851
        %v2436 = vmul.f32 %v2427, %v851
        %v2437 = vmul.f32 %v2429, %v851
        %v2438 = vadd.f32 %v2430, 1e-05
        %v2439 = vadd.f32 %v2431, 1e-05
        %v2440 = vadd.f32 %v2432, 1e-05
        %v2441 = vadd.f32 %v2433, 1e-05
        %v2442 = vadd.f32 %v2434, 1e-05
        %v2443 = vadd.f32 %v2435, 1e-05
        %v2444 = vadd.f32 %v2436, 1e-05
        %v2445 = vadd.f32 %v2437, 1e-05
        %v2446 = vrsqrt.pop %v2438
        %v2447 = vmul.f32 %v2446, %v2438
        %v2448 = vmul.f32 %v2447, %v2446
        %v2449 = vmul.f32 0.5, %v2448
        %v2450 = vsub.f32 1.5, %v2449
        %v2451 = vmul.f32 %v2446, %v2450
        %vm2452 = vweird.f32 %v2438
        %vm2453 = vweird.f32 %v2446
        %vm2454 = vmor %vm2452, %vm2453
        %v2455 = vsel %vm2454, %v2446, %v2451
        %v2456 = vrsqrt.pop %v2439
        %v2457 = vmul.f32 %v2456, %v2439
        %v2458 = vmul.f32 %v2457, %v2456
        %v2459 = vmul.f32 0.5, %v2458
        %v2460 = vsub.f32 1.5, %v2459
        %v2461 = vmul.f32 %v2456, %v2460
        %vm2462 = vweird.f32 %v2439
        %vm2463 = vweird.f32 %v2456
        %vm2464 = vmor %vm2462, %vm2463
        %v2465 = vsel %vm2464, %v2456, %v2461
        %v2466 = vrsqrt.pop %v2440
        %v2467 = vmul.f32 %v2466, %v2440
        %v2468 = vmul.f32 %v2467, %v2466
        %v2469 = vmul.f32 0.5, %v2468
        %v2470 = vsub.f32 1.5, %v2469
        %v2471 = vmul.f32 %v2466, %v2470
        %vm2472 = vweird.f32 %v2440
        %vm2473 = vweird.f32 %v2466
        %vm2474 = vmor %vm2472, %vm2473
        %v2475 = vsel %vm2474, %v2466, %v2471
        %v2476 = vrsqrt.pop %v2441
        %v2477 = vmul.f32 %v2476, %v2441
        %v2478 = vmul.f32 %v2477, %v2476
        %v2479 = vmul.f32 0.5, %v2478
        %v2480 = vsub.f32 1.5, %v2479
        %v2481 = vmul.f32 %v2476, %v2480
        %vm2482 = vweird.f32 %v2441
        %vm2483 = vweird.f32 %v2476
        %vm2484 = vmor %vm2482, %vm2483
        %v2485 = vsel %vm2484, %v2476, %v2481
        %v2486 = vrsqrt.pop %v2442
        %v2487 = vmul.f32 %v2486, %v2442
        %v2488 = vmul.f32 %v2487, %v2486
        %v2489 = vmul.f32 0.5, %v2488
        %v2490 = vsub.f32 1.5, %v2489
        %v2491 = vmul.f32 %v2486, %v2490
        %vm2492 = vweird.f32 %v2442
        %vm2493 = vweird.f32 %v2486
        %vm2494 = vmor %vm2492, %vm2493
        %v2495 = vsel %vm2494, %v2486, %v2491
        %v2496 = vrsqrt.pop %v2443
        %v2497 = vmul.f32 %v2496, %v2443
        %v2498 = vmul.f32 %v2497, %v2496
        %v2499 = vmul.f32 0.5, %v2498
        %v2500 = vsub.f32 1.5, %v2499
        %v2501 = vmul.f32 %v2496, %v2500
        %vm2502 = vweird.f32 %v2443
        %vm2503 = vweird.f32 %v2496
        %vm2504 = vmor %vm2502, %vm2503
        %v2505 = vsel %vm2504, %v2496, %v2501
        %v2506 = vrsqrt.pop %v2444
        %v2507 = vmul.f32 %v2506, %v2444
        %v2508 = vmul.f32 %v2507, %v2506
        %v2509 = vmul.f32 0.5, %v2508
        %v2510 = vsub.f32 1.5, %v2509
        %v2511 = vmul.f32 %v2506, %v2510
        %vm2512 = vweird.f32 %v2444
        %vm2513 = vweird.f32 %v2506
        %vm2514 = vmor %vm2512, %vm2513
        %v2515 = vsel %vm2514, %v2506, %v2511
        %v2516 = vrsqrt.pop %v2445
        %v2517 = vmul.f32 %v2516, %v2445
        %v2518 = vmul.f32 %v2517, %v2516
        %v2519 = vmul.f32 0.5, %v2518
        %v2520 = vsub.f32 1.5, %v2519
        %v2521 = vmul.f32 %v2516, %v2520
        %vm2522 = vweird.f32 %v2445
        %vm2523 = vweird.f32 %v2516
        %vm2524 = vmor %vm2522, %vm2523
        %v2525 = vsel %vm2524, %v2516, %v2521
        %v2526 = vmul.f32 %v2398, %v2455
        %v2527 = vmul.f32 %v2399, %v2465
        %v2528 = vmul.f32 %v2400, %v2475
        %v2529 = vmul.f32 %v2401, %v2485
        %v2530 = vmul.f32 %v2402, %v2495
        %v2531 = vmul.f32 %v2403, %v2505
        %v2532 = vmul.f32 %v2404, %v2515
        %v2533 = vmul.f32 %v2405, %v2525
        %v2535 = vperm.slane %v2371, 0
        %v2537 = vmul.f32 %v2526, %v2535
        %v2538 = vmul.f32 %v2527, %v2535
        %v2539 = vmul.f32 %v2528, %v2535
        %v2540 = vmul.f32 %v2529, %v2535
        %v2541 = vmul.f32 %v2530, %v2535
        %v2542 = vmul.f32 %v2531, %v2535
        %v2543 = vmul.f32 %v2532, %v2535
        %v2544 = vmul.f32 %v2533, %v2535
        %v2546 = vperm.slane %v2373, 0
        %v2548 = vadd.f32 %v2537, %v2546
        %v2549 = vadd.f32 %v2538, %v2546
        %v2550 = vadd.f32 %v2539, %v2546
        %v2551 = vadd.f32 %v2540, %v2546
        %v2552 = vadd.f32 %v2541, %v2546
        %v2553 = vadd.f32 %v2542, %v2546
        %v2554 = vadd.f32 %v2543, %v2546
        %v2555 = vadd.f32 %v2544, %v2546
        %s2556 = scalar_lea.vmem [#allocation16], 512
        %v2557 = vld [vmem:[%s2556] sm:$0xff]
        %v2558 = vld [vmem:[%s2556 + $0x8] sm:$0xff]
        %v2559 = vld [vmem:[%s2556 + $0x10] sm:$0xff]
        %v2560 = vld [vmem:[%s2556 + $0x18] sm:$0xff]
        %v2561 = vld [vmem:[%s2556 + $0x20] sm:$0xff]
        %v2562 = vld [vmem:[%s2556 + $0x28] sm:$0xff]
        %v2563 = vld [vmem:[%s2556 + $0x30] sm:$0xff]
        %v2564 = vld [vmem:[%s2556 + $0x38] sm:$0xff]
        %v2565 = vld [vmem:[%s2556 + $0x40] sm:$0xff]
        %v2566 = vld [vmem:[%s2556 + $0x48] sm:$0xff]
        %v2567 = vld [vmem:[%s2556 + $0x50] sm:$0xff]
        %v2568 = vld [vmem:[%s2556 + $0x58] sm:$0xff]
        %v2569 = vld [vmem:[%s2556 + $0x60] sm:$0xff]
        %v2570 = vld [vmem:[%s2556 + $0x68] sm:$0xff]
        %v2571 = vld [vmem:[%s2556 + $0x70] sm:$0xff]
        %v2572 = vld [vmem:[%s2556 + $0x78] sm:$0xff]
        %v2573 = vld [vmem:[%s2556 + $0x80] sm:$0xff]
        %v2574 = vld [vmem:[%s2556 + $0x88] sm:$0xff]
        %v2575 = vld [vmem:[%s2556 + $0x90] sm:$0xff]
        %v2576 = vld [vmem:[%s2556 + $0x98] sm:$0xff]
        %v2577 = vld [vmem:[%s2556 + $0xa0] sm:$0xff]
        %v2578 = vld [vmem:[%s2556 + $0xa8] sm:$0xff]
        %v2579 = vld [vmem:[%s2556 + $0xb0] sm:$0xff]
        %v2580 = vld [vmem:[%s2556 + $0xb8] sm:$0xff]
        %v2581 = vld [vmem:[%s2556 + $0xc0] sm:$0xff]
        %v2582 = vld [vmem:[%s2556 + $0xc8] sm:$0xff]
        %v2583 = vld [vmem:[%s2556 + $0xd0] sm:$0xff]
        %v2584 = vld [vmem:[%s2556 + $0xd8] sm:$0xff]
        %v2585 = vld [vmem:[%s2556 + $0xe0] sm:$0xff]
        %v2586 = vld [vmem:[%s2556 + $0xe8] sm:$0xff]
        %v2587 = vld [vmem:[%s2556 + $0xf0] sm:$0xff]
        %v2588 = vld [vmem:[%s2556 + $0xf8] sm:$0xff]
        %s2589 = scalar_lea.vmem %s9, 4
        %v2590 = vld [vmem:[%s2589] sm:$0x3]
        %v2592 = vperm.slane %v2590, 0
        %v2593 = vperm.slane %v2590, 1
        %2596 = vmatpush.msra.mxu0 %v2587
        %2597 = vmatpush.msra.mxu0 %v2585
        %2598 = vmatpush.msra.mxu0 %v2583
        %2599 = vmatpush.msra.mxu0 %v2581
        %2600 = vmatpush.msra.mxu0 %v2579
        %2601 = vmatpush.msra.mxu0 %v2577
        %2602 = vmatpush.msra.mxu0 %v2575
        %2603 = vmatpush.msra.mxu0 %v2573
        %2604 = vmatpush.msra.mxu0 %v2571
        %2605 = vmatpush.msra.mxu0 %v2569
        %2606 = vmatpush.msra.mxu0 %v2567
        %2607 = vmatpush.msra.mxu0 %v2565
        %2608 = vmatpush.msra.mxu0 %v2563
        %2609 = vmatpush.msra.mxu0 %v2561
        %2610 = vmatpush.msra.mxu0 %v2559
        %2611 = vmatpush.msra.mxu0 %v2557
        %2612 = vmatmul.f32.gmra.mxu0 %v2548
        %v2613 = vpop.f32.mrf.mxu0
        %v2614 = vadd.f32 %v2592, %v2613
        %2615 = vmatmul.f32.gmra.mxu0 %v2549
        %v2616 = vpop.f32.mrf.mxu0
        %v2617 = vadd.f32 %v2592, %v2616
        %2618 = vmatmul.f32.gmra.mxu0 %v2550
        %v2619 = vpop.f32.mrf.mxu0
        %v2620 = vadd.f32 %v2592, %v2619
        %2621 = vmatmul.f32.gmra.mxu0 %v2551
        %v2622 = vpop.f32.mrf.mxu0
        %v2623 = vadd.f32 %v2592, %v2622
        %2624 = vmatmul.f32.gmra.mxu0 %v2552
        %v2625 = vpop.f32.mrf.mxu0
        %v2626 = vadd.f32 %v2592, %v2625
        %2627 = vmatmul.f32.gmra.mxu0 %v2553
        %v2628 = vpop.f32.mrf.mxu0
        %v2629 = vadd.f32 %v2592, %v2628
        %2630 = vmatmul.f32.gmra.mxu0 %v2554
        %v2631 = vpop.f32.mrf.mxu0
        %v2632 = vadd.f32 %v2592, %v2631
        %2633 = vmatmul.f32.gmra.mxu0 %v2555
        %v2634 = vpop.f32.mrf.mxu0
        %v2635 = vadd.f32 %v2592, %v2634
        %2636 = vdwg.mxu0
        %2637 = vmatpush.msra.mxu0 %v2588
        %2638 = vmatpush.msra.mxu0 %v2586
        %2639 = vmatpush.msra.mxu0 %v2584
        %2640 = vmatpush.msra.mxu0 %v2582
        %2641 = vmatpush.msra.mxu0 %v2580
        %2642 = vmatpush.msra.mxu0 %v2578
        %2643 = vmatpush.msra.mxu0 %v2576
        %2644 = vmatpush.msra.mxu0 %v2574
        %2645 = vmatpush.msra.mxu0 %v2572
        %2646 = vmatpush.msra.mxu0 %v2570
        %2647 = vmatpush.msra.mxu0 %v2568
        %2648 = vmatpush.msra.mxu0 %v2566
        %2649 = vmatpush.msra.mxu0 %v2564
        %2650 = vmatpush.msra.mxu0 %v2562
        %2651 = vmatpush.msra.mxu0 %v2560
        %2652 = vmatpush.msra.mxu0 %v2558
        %2653 = vmatmul.f32.gmra.mxu0 %v2548
        %v2654 = vpop.f32.mrf.mxu0
        %v2655 = vadd.f32 %v2593, %v2654
        %2656 = vmatmul.f32.gmra.mxu0 %v2549
        %v2657 = vpop.f32.mrf.mxu0
        %v2658 = vadd.f32 %v2593, %v2657
        %2659 = vmatmul.f32.gmra.mxu0 %v2550
        %v2660 = vpop.f32.mrf.mxu0
        %v2661 = vadd.f32 %v2593, %v2660
        %2662 = vmatmul.f32.gmra.mxu0 %v2551
        %v2663 = vpop.f32.mrf.mxu0
        %v2664 = vadd.f32 %v2593, %v2663
        %2665 = vmatmul.f32.gmra.mxu0 %v2552
        %v2666 = vpop.f32.mrf.mxu0
        %v2667 = vadd.f32 %v2593, %v2666
        %2668 = vmatmul.f32.gmra.mxu0 %v2553
        %v2669 = vpop.f32.mrf.mxu0
        %v2670 = vadd.f32 %v2593, %v2669
        %2671 = vmatmul.f32.gmra.mxu0 %v2554
        %v2672 = vpop.f32.mrf.mxu0
        %v2673 = vadd.f32 %v2593, %v2672
        %2674 = vmatmul.f32.gmra.mxu0 %v2555
        %v2675 = vpop.f32.mrf.mxu0
        %v2676 = vadd.f32 %v2593, %v2675
        %2677 = vdwg.mxu0
        %v2678 = vmax.f32 %v2614, 0.0
        %v2679 = vmax.f32 %v2655, 0.0
        %v2680 = vmax.f32 %v2617, 0.0
        %v2681 = vmax.f32 %v2658, 0.0
        %v2682 = vmax.f32 %v2620, 0.0
        %v2683 = vmax.f32 %v2661, 0.0
        %v2684 = vmax.f32 %v2623, 0.0
        %v2685 = vmax.f32 %v2664, 0.0
        %v2686 = vmax.f32 %v2626, 0.0
        %v2687 = vmax.f32 %v2667, 0.0
        %v2688 = vmax.f32 %v2629, 0.0
        %v2689 = vmax.f32 %v2670, 0.0
        %v2690 = vmax.f32 %v2632, 0.0
        %v2691 = vmax.f32 %v2673, 0.0
        %v2692 = vmax.f32 %v2635, 0.0
        %v2693 = vmax.f32 %v2676, 0.0
        %s2694 = scalar_lea.vmem [#allocation17], 512
        %v2695 = vld [vmem:[%s2694] sm:$0xff]
        %v2696 = vld [vmem:[%s2694 + $0x8] sm:$0xff]
        %v2697 = vld [vmem:[%s2694 + $0x10] sm:$0xff]
        %v2698 = vld [vmem:[%s2694 + $0x18] sm:$0xff]
        %v2699 = vld [vmem:[%s2694 + $0x20] sm:$0xff]
        %v2700 = vld [vmem:[%s2694 + $0x28] sm:$0xff]
        %v2701 = vld [vmem:[%s2694 + $0x30] sm:$0xff]
        %v2702 = vld [vmem:[%s2694 + $0x38] sm:$0xff]
        %v2703 = vld [vmem:[%s2694 + $0x40] sm:$0xff]
        %v2704 = vld [vmem:[%s2694 + $0x48] sm:$0xff]
        %v2705 = vld [vmem:[%s2694 + $0x50] sm:$0xff]
        %v2706 = vld [vmem:[%s2694 + $0x58] sm:$0xff]
        %v2707 = vld [vmem:[%s2694 + $0x60] sm:$0xff]
        %v2708 = vld [vmem:[%s2694 + $0x68] sm:$0xff]
        %v2709 = vld [vmem:[%s2694 + $0x70] sm:$0xff]
        %v2710 = vld [vmem:[%s2694 + $0x78] sm:$0xff]
        %v2711 = vld [vmem:[%s2694 + $0x80] sm:$0xff]
        %v2712 = vld [vmem:[%s2694 + $0x88] sm:$0xff]
        %v2713 = vld [vmem:[%s2694 + $0x90] sm:$0xff]
        %v2714 = vld [vmem:[%s2694 + $0x98] sm:$0xff]
        %v2715 = vld [vmem:[%s2694 + $0xa0] sm:$0xff]
        %v2716 = vld [vmem:[%s2694 + $0xa8] sm:$0xff]
        %v2717 = vld [vmem:[%s2694 + $0xb0] sm:$0xff]
        %v2718 = vld [vmem:[%s2694 + $0xb8] sm:$0xff]
        %v2719 = vld [vmem:[%s2694 + $0xc0] sm:$0xff]
        %v2720 = vld [vmem:[%s2694 + $0xc8] sm:$0xff]
        %v2721 = vld [vmem:[%s2694 + $0xd0] sm:$0xff]
        %v2722 = vld [vmem:[%s2694 + $0xd8] sm:$0xff]
        %v2723 = vld [vmem:[%s2694 + $0xe0] sm:$0xff]
        %v2724 = vld [vmem:[%s2694 + $0xe8] sm:$0xff]
        %v2725 = vld [vmem:[%s2694 + $0xf0] sm:$0xff]
        %v2726 = vld [vmem:[%s2694 + $0xf8] sm:$0xff]
        %s2727 = scalar_lea.vmem %s11, 2
        %v2728 = vld [vmem:[%s2727] sm:$0x1]
        %v2730 = vperm.slane %v2728, 0
        %2732 = vmatpush.msra.mxu0 %v2710
        %2733 = vmatpush.msra.mxu0 %v2709
        %2734 = vmatpush.msra.mxu0 %v2708
        %2735 = vmatpush.msra.mxu0 %v2707
        %2736 = vmatpush.msra.mxu0 %v2706
        %2737 = vmatpush.msra.mxu0 %v2705
        %2738 = vmatpush.msra.mxu0 %v2704
        %2739 = vmatpush.msra.mxu0 %v2703
        %2740 = vmatpush.msra.mxu0 %v2702
        %2741 = vmatpush.msra.mxu0 %v2701
        %2742 = vmatpush.msra.mxu0 %v2700
        %2743 = vmatpush.msra.mxu0 %v2699
        %2744 = vmatpush.msra.mxu0 %v2698
        %2745 = vmatpush.msra.mxu0 %v2697
        %2746 = vmatpush.msra.mxu0 %v2696
        %2747 = vmatpush.msra.mxu0 %v2695
        %2748 = vmatmul.f32.gmra.mxu0 %v2678
        %v2749 = vpop.f32.mrf.mxu0
        %v2750 = vadd.f32 %v2730, %v2749
        %2751 = vmatmul.f32.gmra.mxu0 %v2680
        %v2752 = vpop.f32.mrf.mxu0
        %v2753 = vadd.f32 %v2730, %v2752
        %2754 = vmatmul.f32.gmra.mxu0 %v2682
        %v2755 = vpop.f32.mrf.mxu0
        %v2756 = vadd.f32 %v2730, %v2755
        %2757 = vmatmul.f32.gmra.mxu0 %v2684
        %v2758 = vpop.f32.mrf.mxu0
        %v2759 = vadd.f32 %v2730, %v2758
        %2760 = vmatmul.f32.gmra.mxu0 %v2686
        %v2761 = vpop.f32.mrf.mxu0
        %v2762 = vadd.f32 %v2730, %v2761
        %2763 = vmatmul.f32.gmra.mxu0 %v2688
        %v2764 = vpop.f32.mrf.mxu0
        %v2765 = vadd.f32 %v2730, %v2764
        %2766 = vmatmul.f32.gmra.mxu0 %v2690
        %v2767 = vpop.f32.mrf.mxu0
        %v2768 = vadd.f32 %v2730, %v2767
        %2769 = vmatmul.f32.gmra.mxu0 %v2692
        %v2770 = vpop.f32.mrf.mxu0
        %v2771 = vadd.f32 %v2730, %v2770
        %2772 = vdwg.mxu0
        %2773 = vmatpush.msra.mxu0 %v2726
        %2774 = vmatpush.msra.mxu0 %v2725
        %2775 = vmatpush.msra.mxu0 %v2724
        %2776 = vmatpush.msra.mxu0 %v2723
        %2777 = vmatpush.msra.mxu0 %v2722
        %2778 = vmatpush.msra.mxu0 %v2721
        %2779 = vmatpush.msra.mxu0 %v2720
        %2780 = vmatpush.msra.mxu0 %v2719
        %2781 = vmatpush.msra.mxu0 %v2718
        %2782 = vmatpush.msra.mxu0 %v2717
        %2783 = vmatpush.msra.mxu0 %v2716
        %2784 = vmatpush.msra.mxu0 %v2715
        %2785 = vmatpush.msra.mxu0 %v2714
        %2786 = vmatpush.msra.mxu0 %v2713
        %2787 = vmatpush.msra.mxu0 %v2712
        %2788 = vmatpush.msra.mxu0 %v2711
        %2789 = vmatmul.f32.gmra.mxu0 %v2679
        %v2790 = vpop.f32.mrf.mxu0
        %v2791 = vadd.f32 %v2750, %v2790
        %2792 = vmatmul.f32.gmra.mxu0 %v2681
        %v2793 = vpop.f32.mrf.mxu0
        %v2794 = vadd.f32 %v2753, %v2793
        %2795 = vmatmul.f32.gmra.mxu0 %v2683
        %v2796 = vpop.f32.mrf.mxu0
        %v2797 = vadd.f32 %v2756, %v2796
        %2798 = vmatmul.f32.gmra.mxu0 %v2685
        %v2799 = vpop.f32.mrf.mxu0
        %v2800 = vadd.f32 %v2759, %v2799
        %2801 = vmatmul.f32.gmra.mxu0 %v2687
        %v2802 = vpop.f32.mrf.mxu0
        %v2803 = vadd.f32 %v2762, %v2802
        %2804 = vmatmul.f32.gmra.mxu0 %v2689
        %v2805 = vpop.f32.mrf.mxu0
        %v2806 = vadd.f32 %v2765, %v2805
        %2807 = vmatmul.f32.gmra.mxu0 %v2691
        %v2808 = vpop.f32.mrf.mxu0
        %v2809 = vadd.f32 %v2768, %v2808
        %2810 = vmatmul.f32.gmra.mxu0 %v2693
        %v2811 = vpop.f32.mrf.mxu0
        %v2812 = vadd.f32 %v2771, %v2811
        %2813 = vdwg.mxu0
        %v2814 = vadd.f32 %v2548, %v2791
        %v2815 = vadd.f32 %v2549, %v2794
        %v2816 = vadd.f32 %v2550, %v2797
        %v2817 = vadd.f32 %v2551, %v2800
        %v2818 = vadd.f32 %v2552, %v2803
        %v2819 = vadd.f32 %v2553, %v2806
        %v2820 = vadd.f32 %v2554, %v2809
        %v2821 = vadd.f32 %v2555, %v2812
        %s2822 = scalar_lea.vmem [#allocation19], 2
        %v2823 = vld [vmem:[%s2822] sm:$0x1]
        %s2824 = scalar_lea.vmem %s13, 2
        %v2825 = vld [vmem:[%s2824] sm:$0x1]
        %2826 = vadd.xlane.f32.xlu0 %v2814
        %v2827 = vpop.xlane.xlu0 %2826
        %2828 = vadd.xlane.f32.xlu0 %v2815
        %v2829 = vpop.xlane.xlu0 %2828
        %2830 = vadd.xlane.f32.xlu0 %v2816
        %v2831 = vpop.xlane.xlu0 %2830
        %2832 = vadd.xlane.f32.xlu0 %v2817
        %v2833 = vpop.xlane.xlu0 %2832
        %2834 = vadd.xlane.f32.xlu0 %v2818
        %v2835 = vpop.xlane.xlu0 %2834
        %2836 = vadd.xlane.f32.xlu0 %v2819
        %v2837 = vpop.xlane.xlu0 %2836
        %2838 = vadd.xlane.f32.xlu0 %v2820
        %v2839 = vpop.xlane.xlu0 %2838
        %2840 = vadd.xlane.f32.xlu0 %v2821
        %v2841 = vpop.xlane.xlu0 %2840
        %v2842 = vmul.f32 %v2827, %v851
        %v2843 = vmul.f32 %v2829, %v851
        %v2844 = vmul.f32 %v2831, %v851
        %v2845 = vmul.f32 %v2833, %v851
        %v2846 = vmul.f32 %v2835, %v851
        %v2847 = vmul.f32 %v2837, %v851
        %v2848 = vmul.f32 %v2839, %v851
        %v2849 = vmul.f32 %v2841, %v851
        %v2850 = vsub.f32 %v2814, %v2842
        %v2851 = vsub.f32 %v2815, %v2843
        %v2852 = vsub.f32 %v2816, %v2844
        %v2853 = vsub.f32 %v2817, %v2845
        %v2854 = vsub.f32 %v2818, %v2846
        %v2855 = vsub.f32 %v2819, %v2847
        %v2856 = vsub.f32 %v2820, %v2848
        %v2857 = vsub.f32 %v2821, %v2849
        %v2858 = vmul.f32 %v2850, %v2850
        %v2859 = vmul.f32 %v2851, %v2851
        %v2860 = vmul.f32 %v2852, %v2852
        %v2861 = vmul.f32 %v2853, %v2853
        %v2862 = vmul.f32 %v2854, %v2854
        %v2863 = vmul.f32 %v2855, %v2855
        %v2864 = vmul.f32 %v2856, %v2856
        %v2865 = vmul.f32 %v2857, %v2857
        %2866 = vadd.xlane.f32.xlu0 %v2858
        %v2867 = vpop.xlane.xlu0 %2866
        %2868 = vadd.xlane.f32.xlu0 %v2859
        %v2869 = vpop.xlane.xlu0 %2868
        %2870 = vadd.xlane.f32.xlu0 %v2860
        %v2871 = vpop.xlane.xlu0 %2870
        %2872 = vadd.xlane.f32.xlu0 %v2861
        %v2873 = vpop.xlane.xlu0 %2872
        %2874 = vadd.xlane.f32.xlu0 %v2862
        %v2875 = vpop.xlane.xlu0 %2874
        %2876 = vadd.xlane.f32.xlu0 %v2863
        %v2877 = vpop.xlane.xlu0 %2876
        %2878 = vadd.xlane.f32.xlu0 %v2864
        %v2879 = vpop.xlane.xlu0 %2878
        %2880 = vadd.xlane.f32.xlu0 %v2865
        %v2881 = vpop.xlane.xlu0 %2880
        %v2882 = vmul.f32 %v2867, %v851
        %v2883 = vmul.f32 %v2869, %v851
        %v2884 = vmul.f32 %v2871, %v851
        %v2885 = vmul.f32 %v2873, %v851
        %v2886 = vmul.f32 %v2875, %v851
        %v2887 = vmul.f32 %v2877, %v851
        %v2888 = vmul.f32 %v2879, %v851
        %v2889 = vmul.f32 %v2881, %v851
        %v2890 = vadd.f32 %v2882, 1e-05
        %v2891 = vadd.f32 %v2883, 1e-05
        %v2892 = vadd.f32 %v2884, 1e-05
        %v2893 = vadd.f32 %v2885, 1e-05
        %v2894 = vadd.f32 %v2886, 1e-05
        %v2895 = vadd.f32 %v2887, 1e-05
        %v2896 = vadd.f32 %v2888, 1e-05
        %v2897 = vadd.f32 %v2889, 1e-05
        %v2898 = vrsqrt.pop %v2890
        %v2899 = vmul.f32 %v2898, %v2890
        %v2900 = vmul.f32 %v2899, %v2898
        %v2901 = vmul.f32 0.5, %v2900
        %v2902 = vsub.f32 1.5, %v2901
        %v2903 = vmul.f32 %v2898, %v2902
        %vm2904 = vweird.f32 %v2890
        %vm2905 = vweird.f32 %v2898
        %vm2906 = vmor %vm2904, %vm2905
        %v2907 = vsel %vm2906, %v2898, %v2903
        %v2908 = vrsqrt.pop %v2891
        %v2909 = vmul.f32 %v2908, %v2891
        %v2910 = vmul.f32 %v2909, %v2908
        %v2911 = vmul.f32 0.5, %v2910
        %v2912 = vsub.f32 1.5, %v2911
        %v2913 = vmul.f32 %v2908, %v2912
        %vm2914 = vweird.f32 %v2891
        %vm2915 = vweird.f32 %v2908
        %vm2916 = vmor %vm2914, %vm2915
        %v2917 = vsel %vm2916, %v2908, %v2913
        %v2918 = vrsqrt.pop %v2892
        %v2919 = vmul.f32 %v2918, %v2892
        %v2920 = vmul.f32 %v2919, %v2918
        %v2921 = vmul.f32 0.5, %v2920
        %v2922 = vsub.f32 1.5, %v2921
        %v2923 = vmul.f32 %v2918, %v2922
        %vm2924 = vweird.f32 %v2892
        %vm2925 = vweird.f32 %v2918
        %vm2926 = vmor %vm2924, %vm2925
        %v2927 = vsel %vm2926, %v2918, %v2923
        %v2928 = vrsqrt.pop %v2893
        %v2929 = vmul.f32 %v2928, %v2893
        %v2930 = vmul.f32 %v2929, %v2928
        %v2931 = vmul.f32 0.5, %v2930
        %v2932 = vsub.f32 1.5, %v2931
        %v2933 = vmul.f32 %v2928, %v2932
        %vm2934 = vweird.f32 %v2893
        %vm2935 = vweird.f32 %v2928
        %vm2936 = vmor %vm2934, %vm2935
        %v2937 = vsel %vm2936, %v2928, %v2933
        %v2938 = vrsqrt.pop %v2894
        %v2939 = vmul.f32 %v2938, %v2894
        %v2940 = vmul.f32 %v2939, %v2938
        %v2941 = vmul.f32 0.5, %v2940
        %v2942 = vsub.f32 1.5, %v2941
        %v2943 = vmul.f32 %v2938, %v2942
        %vm2944 = vweird.f32 %v2894
        %vm2945 = vweird.f32 %v2938
        %vm2946 = vmor %vm2944, %vm2945
        %v2947 = vsel %vm2946, %v2938, %v2943
        %v2948 = vrsqrt.pop %v2895
        %v2949 = vmul.f32 %v2948, %v2895
        %v2950 = vmul.f32 %v2949, %v2948
        %v2951 = vmul.f32 0.5, %v2950
        %v2952 = vsub.f32 1.5, %v2951
        %v2953 = vmul.f32 %v2948, %v2952
        %vm2954 = vweird.f32 %v2895
        %vm2955 = vweird.f32 %v2948
        %vm2956 = vmor %vm2954, %vm2955
        %v2957 = vsel %vm2956, %v2948, %v2953
        %v2958 = vrsqrt.pop %v2896
        %v2959 = vmul.f32 %v2958, %v2896
        %v2960 = vmul.f32 %v2959, %v2958
        %v2961 = vmul.f32 0.5, %v2960
        %v2962 = vsub.f32 1.5, %v2961
        %v2963 = vmul.f32 %v2958, %v2962
        %vm2964 = vweird.f32 %v2896
        %vm2965 = vweird.f32 %v2958
        %vm2966 = vmor %vm2964, %vm2965
        %v2967 = vsel %vm2966, %v2958, %v2963
        %v2968 = vrsqrt.pop %v2897
        %v2969 = vmul.f32 %v2968, %v2897
        %v2970 = vmul.f32 %v2969, %v2968
        %v2971 = vmul.f32 0.5, %v2970
        %v2972 = vsub.f32 1.5, %v2971
        %v2973 = vmul.f32 %v2968, %v2972
        %vm2974 = vweird.f32 %v2897
        %vm2975 = vweird.f32 %v2968
        %vm2976 = vmor %vm2974, %vm2975
        %v2977 = vsel %vm2976, %v2968, %v2973
        %v2978 = vmul.f32 %v2850, %v2907
        %v2979 = vmul.f32 %v2851, %v2917
        %v2980 = vmul.f32 %v2852, %v2927
        %v2981 = vmul.f32 %v2853, %v2937
        %v2982 = vmul.f32 %v2854, %v2947
        %v2983 = vmul.f32 %v2855, %v2957
        %v2984 = vmul.f32 %v2856, %v2967
        %v2985 = vmul.f32 %v2857, %v2977
        %v2987 = vperm.slane %v2823, 0
        %v2989 = vmul.f32 %v2978, %v2987
        %v2990 = vmul.f32 %v2979, %v2987
        %v2991 = vmul.f32 %v2980, %v2987
        %v2992 = vmul.f32 %v2981, %v2987
        %v2993 = vmul.f32 %v2982, %v2987
        %v2994 = vmul.f32 %v2983, %v2987
        %v2995 = vmul.f32 %v2984, %v2987
        %v2996 = vmul.f32 %v2985, %v2987
        %v2998 = vperm.slane %v2825, 0
        %v3000 = vadd.f32 %v2989, %v2998
        %v3001 = vadd.f32 %v2990, %v2998
        %v3002 = vadd.f32 %v2991, %v2998
        %v3003 = vadd.f32 %v2992, %v2998
        %v3004 = vadd.f32 %v2993, %v2998
        %v3005 = vadd.f32 %v2994, %v2998
        %v3006 = vadd.f32 %v2995, %v2998
        %v3007 = vadd.f32 %v2996, %v2998
        %3008 = vst [vmem:[%s677] sm:$0xff] %v3000
        %3009 = vst [vmem:[%s677 + $0x8] sm:$0xff] %v3001
        %3010 = vst [vmem:[%s677 + $0x10] sm:$0xff] %v3002
        %3011 = vst [vmem:[%s677 + $0x18] sm:$0xff] %v3003
        %3012 = vst [vmem:[%s677 + $0x20] sm:$0xff] %v3004
        %3013 = vst [vmem:[%s677 + $0x28] sm:$0xff] %v3005
        %3014 = vst [vmem:[%s677 + $0x30] sm:$0xff] %v3006
        %3015 = vst [vmem:[%s677 + $0x38] sm:$0xff] %v3007
        %s3016 = sand.u32 %s350, 1
        %s3017 = scalar_lea.sflag [#allocation4], %s3016
        %s3018 = sand.u32 %s350, 1
        %s3019 = smul.addr %s3018, 64
        %s3020 = scalar_lea.vmem [#allocation20], %s3019
        // Predicated region
        $region121: #{tpu_custom_call.1} parent=75 // pred_check
          %p3021 = pneg %p360
        $region122: #{tpu_custom_call.1} parent=75 // pred_check_branch
          %3023 = sbr.rel (%p3021) target = $region124
        $region123: #{tpu_custom_call.1} parent=75 // pred_region
          %s3024 = smul.u32 8, %s38
          %3026 = vsyncadd %s3017, 0
          %s3027 = smul.addr %s3024, 8
          %s3028 = scalar_lea.hbm %s14, %s3027
          %s3029 = sshll.u32 %s3020, 4
          %s3030 = int_to_ptr.vmem [resolvable:$true] %s3029
          %s3031 = sshll.u32 %s3028, 4
          %s3032 = int_to_ptr.hbm [resolvable:$true] %s3031
          %3037 = dma.vmem_to_hbm [thread:$0]  %s3030, 1024, %s3032, %s3017, 128, 128, 8
        $region124: #{tpu_custom_call.1} parent=75 // pred_fallthru
          _
      $region76: #{tpu_custom_call.1} parent=5 // pred_fallthru
        _
      %p3038 = scmp.le.s32.totalorder 2, %s33
      // Predicated region
      $region125: #{tpu_custom_call.1} parent=5 // pred_check
        %p3039 = pneg %p3038
      $region126: #{tpu_custom_call.1} parent=5 // pred_check_branch
        %3041 = sbr.rel (%p3039) target = $region128
      $region127: #{tpu_custom_call.1} parent=5 // pred_region
        %s3042 = ssub.s32 %s33, 2
        // Predicated region
        $region129: #{tpu_custom_call.1} parent=127 // pred_check
          %p3043 = pneg %p366
        $region130: #{tpu_custom_call.1} parent=127 // pred_check_branch
          %3045 = sbr.rel (%p3043) target = $region132
        $region131: #{tpu_custom_call.1} parent=127 // pred_region
          %s3046 = sand.u32 %s351, 1
          %s3047 = scalar_lea.sflag [#allocation4], %s3046
          %s3048 = sand.u32 %s351, 1
          %s3049 = smul.addr %s3048, 64
          %s3050 = scalar_lea.vmem [#allocation20], %s3049
          %3052 = dma.done %s3047, 1024
        $region132: #{tpu_custom_call.1} parent=127 // pred_fallthru
          _
      $region128: #{tpu_custom_call.1} parent=5 // pred_fallthru
        _
    $region6: #{tpu_custom_call.1} parent=1 // loop_footer
      %s37 = sadd.s32 1, %s33
    $region7: #{tpu_custom_call.1} parent=1 // loop_footer_branch
      %32 = sbr.rel target = $region3
    $region8: #{tpu_custom_call.1} parent=1 // loop_exit
      _
    %3053 = vsyncpa [#allocation3], 1
    %s3054 = scalar_lea.sflag [#allocation3], 1
    %3055 = vsyncpa %s3054, 1
    %3056 = vsyncpa [#allocation6], 1
    %s3057 = scalar_lea.sflag [#allocation6], 1
    %3058 = vsyncpa %s3057, 1
    %3059 = vsyncpa [#allocation9], 1
    %3060 = vsyncpa [#allocation12], 1
    %3061 = vsyncpa [#allocation15], 1
    %3062 = vsyncpa [#allocation18], 1
    %3063 = vsyncpa [#allocation4], 1
    %s3064 = scalar_lea.sflag [#allocation4], 1
    %3065 = vsyncpa %s3064, 1

</llo_original>
